<compile_context>
chip_gen: v6e
topology: v6e:2x2x1
jax: 0.10.0
libtpu: 0.0.40
codegen_flags: <defaults>
</compile_context>

<pallas_src>
import math

import jax
import jax.numpy as jnp
from jax.experimental import pallas as pl
from jax.experimental.pallas import tpu as pltpu

BN_EPS = 1e-5


# ---------------------------------------------------------------------------
# Fused [per-input: BN scale/shift (+ReLU)] -> 3x3 conv (banded matmuls)
#       -> per-column sum / sum-of-squares.
# One grid step == one image of the batch.
# ---------------------------------------------------------------------------
def _make_conv_bn_stats_kernel(n_in, H, relu_flags):
    def kernel(*refs):
        x_refs = refs[0:n_in]                # (H+2, W*Cin_i)  activations (f32)
        w_refs = refs[n_in:2 * n_in]         # (3, W*Cin_i, W*Cout_p) banded bf16
        sc_refs = refs[2 * n_in:3 * n_in]    # (1, W*Cin_i) per-column BN scale
        sh_refs = refs[3 * n_in:4 * n_in]    # (1, W*Cin_i) per-column BN shift
        y_ref = refs[4 * n_in]               # (H, W*Cout_p) pre-BN conv output
        stats_ref = refs[4 * n_in + 1]       # (2, W*Cout_p) [col sum; col sum sq]

        acc = jnp.zeros(y_ref.shape, jnp.float32)   # (H, 128): a couple of vregs
        for i in range(n_in):
            xb = x_refs[i][...].astype(jnp.float32)
            # Fused BatchNorm+ReLU of the *previous* layer (identity for raw inputs).
            xb = xb * sc_refs[i][...] + sh_refs[i][...]
            if relu_flags[i]:
                xb = jnp.maximum(xb, 0.0)
                # Halo rows must stay exactly zero after the affine transform.
                rid = jax.lax.broadcasted_iota(jnp.int32, xb.shape, 0)
                xb = jnp.where((rid >= 1) & (rid <= H), xb, 0.0)
            xb = xb.astype(jnp.bfloat16)
            # 3 row-tap matmuls; kx taps / W padding live inside the banded weight.
            for ky in range(3):
                acc = acc + jnp.dot(xb[ky:ky + H, :], w_refs[i][ky],
                                    preferred_element_type=jnp.float32)

        y_ref[...] = acc
        s1 = jnp.sum(acc, axis=0, keepdims=True)
        s2 = jnp.sum(acc * acc, axis=0, keepdims=True)
        stats_ref[...] = jnp.concatenate([s1, s2], axis=0)

    return kernel


def conv_bn_stats(xs, wbs, scales, shifts, relu_flags, H, wout):
    """xs[i]: (N, H+2, W*Cin_i) f32; wbs[i]: (3, W*Cin_i, wout) bf16;
    scales/shifts[i]: (1, W*Cin_i) f32.
    Returns pre-BN conv out (N, H, wout) f32 and per-image stats (N, 2, wout) f32."""
    n_in = len(xs)
    N = xs[0].shape[0]
    kernel = _make_conv_bn_stats_kernel(n_in, H, tuple(relu_flags))

    in_specs = (
        [pl.BlockSpec((None,) + x.shape[1:], lambda n: (n, 0, 0)) for x in xs]
        + [pl.BlockSpec(w.shape, lambda n: (0, 0, 0)) for w in wbs]
        + [pl.BlockSpec(s.shape, lambda n: (0, 0)) for s in scales]
        + [pl.BlockSpec(s.shape, lambda n: (0, 0)) for s in shifts]
    )
    out_specs = (
        pl.BlockSpec((None, H, wout), lambda n: (n, 0, 0)),
        pl.BlockSpec((None, 2, wout), lambda n: (n, 0, 0)),
    )
    out_shape = (
        jax.ShapeDtypeStruct((N, H, wout), jnp.float32),
        jax.ShapeDtypeStruct((N, 2, wout), jnp.float32),
    )
    return pl.pallas_call(
        kernel,
        grid=(N,),
        in_specs=in_specs,
        out_specs=out_specs,
        out_shape=out_shape,
        compiler_params=pltpu.CompilerParams(
            dimension_semantics=("parallel",),
            vmem_limit_bytes=32 * 1024 * 1024,
        ),
    )(*xs, *wbs, *scales, *shifts)


# ---------------------------------------------------------------------------
# Final BatchNorm + ReLU apply (only for the last layer; earlier layers have it
# fused into the next conv kernel).
# ---------------------------------------------------------------------------
def _bn_relu_kernel(y_ref, sc_ref, sh_ref, o_ref):
    o_ref[...] = jnp.maximum(y_ref[...] * sc_ref[...] + sh_ref[...], 0.0)


def bn_relu_apply(y, scale_col, shift_col):
    N, H, wout = y.shape
    return pl.pallas_call(
        _bn_relu_kernel,
        grid=(N,),
        in_specs=[
            pl.BlockSpec((None, H, wout), lambda n: (n, 0, 0)),
            pl.BlockSpec((1, wout), lambda n: (0, 0)),
            pl.BlockSpec((1, wout), lambda n: (0, 0)),
        ],
        out_specs=pl.BlockSpec((None, H, wout), lambda n: (n, 0, 0)),
        out_shape=jax.ShapeDtypeStruct((N, H, wout), jnp.float32),
        compiler_params=pltpu.CompilerParams(dimension_semantics=("parallel",)),
    )(y, scale_col, shift_col)


# ---------------------------------------------------------------------------
# Parameter / weight preparation (plain JAX, tiny).
# ---------------------------------------------------------------------------
def banded_conv_weight(w, w_out, cin_pad, cout_pad, upsample_w=False):
    """Fold the kx taps, the W-direction zero padding (pad=1) and optionally the
    W-direction 2x nearest upsample of a 3x3 conv into a banded weight.

    w: (3, 3, Cin, Cout)  ->  (3, W_in*cin_pad, w_out*cout_pad) bf16,
    with W_in = w_out // 2 if upsample_w else w_out.
    """
    KH, KW, cin, cout = w.shape
    w_in = w_out // 2 if upsample_w else w_out
    wp = jnp.zeros((KH, KW, cin_pad, cout_pad), jnp.float32)
    wp = wp.at[:, :, :cin, :cout].set(w.astype(jnp.float32))

    src = jnp.arange(w_out)[None, :] + jnp.arange(KW)[:, None] - 1      # (KW, w_out)
    lim = 2 * w_in if upsample_w else w_in
    valid = (src >= 0) & (src < lim)                                    # zero-pad in W
    src_in = src // 2 if upsample_w else src                            # nearest 2x in W

    wi = jnp.arange(w_in)
    bands = []
    for ky in range(KH):
        m = jnp.zeros((w_in * cin_pad, w_out * cout_pad), jnp.float32)
        for kx in range(KW):
            e = ((wi[:, None] == src_in[kx][None, :]) &
                 valid[kx][None, :]).astype(jnp.float32)                # (w_in, w_out)
            m = m + jnp.einsum("rw,io->riwo", e, wp[ky, kx]).reshape(
                w_in * cin_pad, w_out * cout_pad)
        bands.append(m)
    return jnp.stack(bands, axis=0).astype(jnp.bfloat16)


def _pad_channel_vec(v, cpad, fill):
    return jnp.full((cpad,), fill, v.dtype).at[: v.shape[0]].set(v)


def bn_scale_shift(stats, gamma_p, beta_p, w, cpad, count):
    """Reduce per-image column stats to per-channel BN scale/shift and tile them
    back to per-column (1, w*cpad) vectors for fused application."""
    s = stats.reshape(stats.shape[0], 2, w, cpad).sum(axis=(0, 2))      # (2, cpad)
    mean = s[0] / count
    var = jnp.maximum(s[1] / count - mean * mean, 0.0)                  # biased, one-pass
    scale_c = gamma_p * jax.lax.rsqrt(var + BN_EPS)
    shift_c = beta_p - mean * scale_c
    return jnp.tile(scale_c, (w,))[None, :], jnp.tile(shift_c, (w,))[None, :]


def init_conv_params(key, cin, cout):
    """PyTorch-style init.  The Conv2d bias is kept for parity with the spec but is
    never fed to the kernel: a per-channel constant shift is exactly cancelled by the
    training-mode BatchNorm that immediately follows (dead work)."""
    kw, kb = jax.random.split(key)
    bound = 1.0 / jnp.sqrt(cin * 9.0)
    w = jax.random.uniform(kw, (3, 3, cin, cout), jnp.float32, -bound, bound)
    b = jax.random.uniform(kb, (cout,), jnp.float32, -bound, bound)
    return {"w": w, "b": b,
            "gamma": jnp.ones((cout,), jnp.float32),
            "beta": jnp.zeros((cout,), jnp.float32)}


def init_up_conv_params(key, in_ch, out_ch):
    k_up, k_c1, k_c2 = jax.random.split(key, 3)
    return {
        "up": init_conv_params(k_up, in_ch, out_ch),   # conv inside self.up
        "c1": init_conv_params(k_c1, in_ch, out_ch),   # double-conv block, conv 1
        "c2": init_conv_params(k_c2, out_ch, out_ch),  # double-conv block, conv 2
    }


def _pad_rows(x):
    # Zero halo rows (H-direction padding=1); W padding lives in the banded weight.
    return jnp.pad(x, ((0, 0), (1, 1), (0, 0)))


@jax.jit
def up_conv_forward(params, x1_nchw, x2_nchw):
    """Matches up_conv.forward(x1, x2); NCHW in / NCHW out, float32."""
    N, in_ch, h1, w1 = x1_nchw.shape
    c2ch = x2_nchw.shape[1]
    out_ch = params["up"]["w"].shape[-1]
    H, W = 2 * h1, 2 * w1
    count = N * H * W

    # Pad the per-layer output channels so W * cpad is a multiple of 128
    # (lane-dense, unmasked stores); padded channels stay exactly zero end-to-end.
    q = 128 // math.gcd(W, 128)
    cpad = ((out_ch + q - 1) // q) * q

    x1 = jnp.transpose(x1_nchw, (0, 2, 3, 1)).astype(jnp.float32)   # (N, h1, w1, in_ch)
    x2 = jnp.transpose(x2_nchw, (0, 2, 3, 1)).astype(jnp.float32)   # (N, H,  W,  c2ch)

    # ---- self.up : Upsample(2x nearest) + Conv3x3(p=1) + BN + ReLU ------------
    # H-direction upsample stays in JAX (pre-conv resolution, tiny); the
    # W-direction upsample + W zero padding are folded into the banded weight.
    x1r = _pad_rows(jnp.repeat(x1, 2, axis=1).reshape(N, H, w1 * in_ch))
    wb_up = banded_conv_weight(params["up"]["w"], W, in_ch, cpad, upsample_w=True)
    one_up = jnp.ones((1, w1 * in_ch), jnp.float32)
    zero_up = jnp.zeros((1, w1 * in_ch), jnp.float32)
    y_up, st_up = conv_bn_stats([x1r], [wb_up], [one_up], [zero_up],
                                (False,), H, W * cpad)
    sc_up, sh_up = bn_scale_shift(
        st_up, _pad_channel_vec(params["up"]["gamma"], cpad, 1.0),
        _pad_channel_vec(params["up"]["beta"], cpad, 0.0), W, cpad, count)

    # ---- conv block, conv 1 : cat([x2, up(x1)]) -> Conv3x3 + BN + ReLU --------
    # torch.cat is folded away: split the weight along Cin and sum two banded
    # matmuls; the up-branch BN+ReLU is applied on the fly inside this kernel.
    x2f = _pad_rows(x2.reshape(N, H, W * c2ch))
    w_c1 = params["c1"]["w"]
    wb_c1_x2 = banded_conv_weight(w_c1[:, :, :c2ch, :], W, c2ch, cpad)
    wb_c1_up = banded_conv_weight(w_c1[:, :, c2ch:, :], W, cpad, cpad)
    one_x2 = jnp.ones((1, W * c2ch), jnp.float32)
    zero_x2 = jnp.zeros((1, W * c2ch), jnp.float32)
    y_c1, st_c1 = conv_bn_stats([x2f, _pad_rows(y_up)],
                                [wb_c1_x2, wb_c1_up],
                                [one_x2, sc_up], [zero_x2, sh_up],
                                (False, True), H, W * cpad)
    sc_c1, sh_c1 = bn_scale_shift(
        st_c1, _pad_channel_vec(params["c1"]["gamma"], cpad, 1.0),
        _pad_channel_vec(params["c1"]["beta"], cpad, 0.0), W, cpad, count)

    # ---- conv block, conv 2 : Conv3x3 + BN + ReLU -----------------------------
    wb_c2 = banded_conv_weight(params["c2"]["w"], W, cpad, cpad)
    y_c2, st_c2 = conv_bn_stats([_pad_rows(y_c1)], [wb_c2], [sc_c1], [sh_c1],
                                (True,), H, W * cpad)
    sc_c2, sh_c2 = bn_scale_shift(
        st_c2, _pad_channel_vec(params["c2"]["gamma"], cpad, 1.0),
        _pad_channel_vec(params["c2"]["beta"], cpad, 0.0), W, cpad, count)

    # Final BN + ReLU apply (nothing left to fuse it into).
    out = bn_relu_apply(y_c2, sc_c2, sh_c2)                 # (N, H, W*cpad)
    out = out.reshape(N, H, W, cpad)[..., :out_ch]
    return jnp.transpose(out, (0, 3, 1, 2))                 # NHWC -> NCHW


if __name__ == "__main__":
    # Small UNet-like shapes: in_ch = 8, out_ch = 4.
    # x1 is the coarse map (N, in_ch, H1, W1); x2 is the skip connection
    # (N, in_ch - out_ch, 2*H1, 2*W1) so cat([x2, up(x1)]) has in_ch channels.
    N, in_ch, out_ch, H1, W1 = 2, 8, 4, 8, 8

    key = jax.random.PRNGKey(0)
    k_params, k_x1, k_x2 = jax.random.split(key, 3)

    params = init_up_conv_params(k_params, in_ch, out_ch)
    x1 = jax.random.normal(k_x1, (N, in_ch, H1, W1), jnp.float32)
    x2 = jax.random.normal(k_x2, (N, in_ch - out_ch, 2 * H1, 2 * W1), jnp.float32)

    out = up_conv_forward(params, x1, x2)
    out = jax.block_until_ready(out)

    assert out.shape == (N, out_ch, 2 * H1, 2 * W1), out.shape
    assert bool(jnp.all(jnp.isfinite(out)))
    print("KERNEL_OK")
</pallas_src>

<mosaic_0001>
module attributes {stable_mosaic.version = 11 : i64} {
  func.func @kernel(%arg0: i32, %arg1: memref<1x18x64xf32, #tpu.memory_space<vmem>>, %arg2: memref<3x64x128xbf16, #tpu.memory_space<vmem>>, %arg3: memref<1x64xf32, #tpu.memory_space<vmem>>, %arg4: memref<1x64xf32, #tpu.memory_space<vmem>>, %arg5: memref<1x16x128xf32, #tpu.memory_space<vmem>>, %arg6: memref<1x2x128xf32, #tpu.memory_space<vmem>>) attributes {dimension_semantics = [#tpu.dimension_semantics<parallel>], iteration_bounds = array<i64: 2>, scalar_prefetch = 0 : i64, scratch_operands = 0 : i64, tpu.core_type = #tpu.core_type<tc>, window_params = [{transform_indices = @transform_0, window_bounds = array<i64: 1, 18, 64>}, {pipeline_mode = #tpu.pipeline_mode<synchronous>, transform_indices = @transform_1, window_bounds = array<i64: 3, 64, 128>}, {pipeline_mode = #tpu.pipeline_mode<synchronous>, transform_indices = @transform_2, window_bounds = array<i64: 1, 64>}, {pipeline_mode = #tpu.pipeline_mode<synchronous>, transform_indices = @transform_3, window_bounds = array<i64: 1, 64>}, {transform_indices = @transform_4, window_bounds = array<i64: 1, 16, 128>}, {transform_indices = @transform_5, window_bounds = array<i64: 1, 2, 128>}]} {
    %cst = arith.constant 0.000000e+00 : f32
    %0 = vector.broadcast %cst : f32 to vector<16x128xf32>
    %c0 = arith.constant 0 : index
    %c0_0 = arith.constant 0 : index
    %c0_1 = arith.constant 0 : index
    %1 = vector.load %arg1[%c0, %c0_0, %c0_1] : memref<1x18x64xf32, #tpu.memory_space<vmem>>, vector<1x18x64xf32>
    %2 = vector.shape_cast %1 : vector<1x18x64xf32> to vector<18x64xf32>
    %c0_2 = arith.constant 0 : index
    %c0_3 = arith.constant 0 : index
    %3 = vector.load %arg3[%c0_2, %c0_3] : memref<1x64xf32, #tpu.memory_space<vmem>>, vector<1x64xf32>
    %4 = vector.broadcast %3 : vector<1x64xf32> to vector<18x64xf32>
    %5 = arith.mulf %2, %4 : vector<18x64xf32>
    %c0_4 = arith.constant 0 : index
    %c0_5 = arith.constant 0 : index
    %6 = vector.load %arg4[%c0_4, %c0_5] : memref<1x64xf32, #tpu.memory_space<vmem>>, vector<1x64xf32>
    %7 = vector.broadcast %6 : vector<1x64xf32> to vector<18x64xf32>
    %8 = arith.addf %5, %7 : vector<18x64xf32>
    %9 = arith.truncf %8 : vector<18x64xf32> to vector<18x64xbf16>
    %10 = vector.extract_strided_slice %9 {offsets = [0, 0], sizes = [16, 64], strides = [1, 1]} : vector<18x64xbf16> to vector<16x64xbf16>
    %c0_6 = arith.constant 0 : index
    %c0_7 = arith.constant 0 : index
    %c0_8 = arith.constant 0 : index
    %11 = vector.load %arg2[%c0_6, %c0_7, %c0_8] : memref<3x64x128xbf16, #tpu.memory_space<vmem>>, vector<1x64x128xbf16>
    %12 = vector.shape_cast %11 : vector<1x64x128xbf16> to vector<64x128xbf16>
    %cst_9 = arith.constant dense<0.000000e+00> : vector<16x128xf32>
    %13 = tpu.matmul %10, %12, %cst_9 {dimension_numbers = #tpu.dot_dimension_numbers<[1], [0], [0], [1], [0, 0, 1, 1], [], []>} : vector<16x64xbf16>, vector<64x128xbf16>, vector<16x128xf32> -> vector<16x128xf32>
    %14 = arith.addf %0, %13 : vector<16x128xf32>
    %15 = vector.extract_strided_slice %9 {offsets = [1, 0], sizes = [16, 64], strides = [1, 1]} : vector<18x64xbf16> to vector<16x64xbf16>
    %c1 = arith.constant 1 : index
    %c0_10 = arith.constant 0 : index
    %c0_11 = arith.constant 0 : index
    %16 = vector.load %arg2[%c1, %c0_10, %c0_11] : memref<3x64x128xbf16, #tpu.memory_space<vmem>>, vector<1x64x128xbf16>
    %17 = vector.shape_cast %16 : vector<1x64x128xbf16> to vector<64x128xbf16>
    %cst_12 = arith.constant dense<0.000000e+00> : vector<16x128xf32>
    %18 = tpu.matmul %15, %17, %cst_12 {dimension_numbers = #tpu.dot_dimension_numbers<[1], [0], [0], [1], [0, 0, 1, 1], [], []>} : vector<16x64xbf16>, vector<64x128xbf16>, vector<16x128xf32> -> vector<16x128xf32>
    %19 = arith.addf %14, %18 : vector<16x128xf32>
    %20 = vector.extract_strided_slice %9 {offsets = [2, 0], sizes = [16, 64], strides = [1, 1]} : vector<18x64xbf16> to vector<16x64xbf16>
    %c2 = arith.constant 2 : index
    %c0_13 = arith.constant 0 : index
    %c0_14 = arith.constant 0 : index
    %21 = vector.load %arg2[%c2, %c0_13, %c0_14] : memref<3x64x128xbf16, #tpu.memory_space<vmem>>, vector<1x64x128xbf16>
    %22 = vector.shape_cast %21 : vector<1x64x128xbf16> to vector<64x128xbf16>
    %cst_15 = arith.constant dense<0.000000e+00> : vector<16x128xf32>
    %23 = tpu.matmul %20, %22, %cst_15 {dimension_numbers = #tpu.dot_dimension_numbers<[1], [0], [0], [1], [0, 0, 1, 1], [], []>} : vector<16x64xbf16>, vector<64x128xbf16>, vector<16x128xf32> -> vector<16x128xf32>
    %24 = arith.addf %19, %23 : vector<16x128xf32>
    %c0_16 = arith.constant 0 : index
    %c0_17 = arith.constant 0 : index
    %c0_18 = arith.constant 0 : index
    %25 = vector.load %arg5[%c0_16, %c0_17, %c0_18] : memref<1x16x128xf32, #tpu.memory_space<vmem>>, vector<1x16x128xf32>
    %26 = vector.shape_cast %25 : vector<1x16x128xf32> to vector<16x128xf32>
    %27 = vector.shape_cast %24 : vector<16x128xf32> to vector<1x16x128xf32>
    tpu.vector_store %arg5[%c0_16, %c0_17, %c0_18], %27 {strides = array<i32>} : memref<1x16x128xf32, #tpu.memory_space<vmem>>, vector<1x16x128xf32>,
    %cst_19 = arith.constant dense<0.000000e+00> : vector<128xf32>
    %28 = vector.multi_reduction <add>, %24, %cst_19 [0] : vector<16x128xf32> to vector<128xf32>
    %29 = vector.shape_cast %28 : vector<128xf32> to vector<1x128xf32>
    %30 = arith.mulf %24, %24 : vector<16x128xf32>
    %cst_20 = arith.constant dense<0.000000e+00> : vector<128xf32>
    %31 = vector.multi_reduction <add>, %30, %cst_20 [0] : vector<16x128xf32> to vector<128xf32>
    %32 = vector.shape_cast %31 : vector<128xf32> to vector<1x128xf32>
    %33 = tpu.concatenate %29, %32 in 0 : vector<1x128xf32>, vector<1x128xf32> -> vector<2x128xf32>
    %c0_21 = arith.constant 0 : index
    %c0_22 = arith.constant 0 : index
    %c0_23 = arith.constant 0 : index
    %34 = vector.load %arg6[%c0_21, %c0_22, %c0_23] : memref<1x2x128xf32, #tpu.memory_space<vmem>>, vector<1x2x128xf32>
    %35 = vector.shape_cast %34 : vector<1x2x128xf32> to vector<2x128xf32>
    %36 = vector.shape_cast %33 : vector<2x128xf32> to vector<1x2x128xf32>
    tpu.vector_store %arg6[%c0_21, %c0_22, %c0_23], %36 {strides = array<i32>} : memref<1x2x128xf32, #tpu.memory_space<vmem>>, vector<1x2x128xf32>,
    return
  }
  func.func @transform_0(%arg0: i32) -> (i32, i32, i32) {
    %c0_i32 = arith.constant 0 : i32
    %c0_i32_0 = arith.constant 0 : i32
    %c0_i32_1 = arith.constant 0 : i32
    return %arg0, %c0_i32, %c0_i32_0 : i32, i32, i32
  }
  func.func @transform_1(%arg0: i32) -> (i32, i32, i32) {
    %c0_i32 = arith.constant 0 : i32
    %c0_i32_0 = arith.constant 0 : i32
    %c0_i32_1 = arith.constant 0 : i32
    %c0_i32_2 = arith.constant 0 : i32
    return %c0_i32, %c0_i32_0, %c0_i32_1 : i32, i32, i32
  }
  func.func @transform_2(%arg0: i32) -> (i32, i32) {
    %c0_i32 = arith.constant 0 : i32
    %c0_i32_0 = arith.constant 0 : i32
    %c0_i32_1 = arith.constant 0 : i32
    return %c0_i32, %c0_i32_0 : i32, i32
  }
  func.func @transform_3(%arg0: i32) -> (i32, i32) {
    %c0_i32 = arith.constant 0 : i32
    %c0_i32_0 = arith.constant 0 : i32
    %c0_i32_1 = arith.constant 0 : i32
    return %c0_i32, %c0_i32_0 : i32, i32
  }
  func.func @transform_4(%arg0: i32) -> (i32, i32, i32) {
    %c0_i32 = arith.constant 0 : i32
    %c0_i32_0 = arith.constant 0 : i32
    %c0_i32_1 = arith.constant 0 : i32
    return %arg0, %c0_i32, %c0_i32_0 : i32, i32, i32
  }
  func.func @transform_5(%arg0: i32) -> (i32, i32, i32) {
    %c0_i32 = arith.constant 0 : i32
    %c0_i32_0 = arith.constant 0 : i32
    %c0_i32_1 = arith.constant 0 : i32
    return %arg0, %c0_i32, %c0_i32_0 : i32, i32, i32
  }
}

module attributes {stable_mosaic.version = 11 : i64} {
  func.func @_bn_relu_kernel(%arg0: i32, %arg1: memref<1x16x128xf32, #tpu.memory_space<vmem>>, %arg2: memref<1x128xf32, #tpu.memory_space<vmem>>, %arg3: memref<1x128xf32, #tpu.memory_space<vmem>>, %arg4: memref<1x16x128xf32, #tpu.memory_space<vmem>>) attributes {dimension_semantics = [#tpu.dimension_semantics<parallel>], iteration_bounds = array<i64: 2>, scalar_prefetch = 0 : i64, scratch_operands = 0 : i64, tpu.core_type = #tpu.core_type<tc>, window_params = [{transform_indices = @transform_0, window_bounds = array<i64: 1, 16, 128>}, {pipeline_mode = #tpu.pipeline_mode<synchronous>, transform_indices = @transform_1, window_bounds = array<i64: 1, 128>}, {pipeline_mode = #tpu.pipeline_mode<synchronous>, transform_indices = @transform_2, window_bounds = array<i64: 1, 128>}, {transform_indices = @transform_3, window_bounds = array<i64: 1, 16, 128>}]} {
    %c0 = arith.constant 0 : index
    %c0_0 = arith.constant 0 : index
    %c0_1 = arith.constant 0 : index
    %0 = vector.load %arg1[%c0, %c0_0, %c0_1] : memref<1x16x128xf32, #tpu.memory_space<vmem>>, vector<1x16x128xf32>
    %1 = vector.shape_cast %0 : vector<1x16x128xf32> to vector<16x128xf32>
    %c0_2 = arith.constant 0 : index
    %c0_3 = arith.constant 0 : index
    %2 = vector.load %arg2[%c0_2, %c0_3] : memref<1x128xf32, #tpu.memory_space<vmem>>, vector<1x128xf32>
    %3 = vector.broadcast %2 : vector<1x128xf32> to vector<16x128xf32>
    %4 = arith.mulf %1, %3 : vector<16x128xf32>
    %c0_4 = arith.constant 0 : index
    %c0_5 = arith.constant 0 : index
    %5 = vector.load %arg3[%c0_4, %c0_5] : memref<1x128xf32, #tpu.memory_space<vmem>>, vector<1x128xf32>
    %6 = vector.broadcast %5 : vector<1x128xf32> to vector<16x128xf32>
    %7 = arith.addf %4, %6 : vector<16x128xf32>
    %cst = arith.constant 0.000000e+00 : f32
    %8 = vector.broadcast %cst : f32 to vector<16x128xf32>
    %9 = arith.maximumf %7, %8 : vector<16x128xf32>
    %c0_6 = arith.constant 0 : index
    %c0_7 = arith.constant 0 : index
    %c0_8 = arith.constant 0 : index
    %10 = vector.load %arg4[%c0_6, %c0_7, %c0_8] : memref<1x16x128xf32, #tpu.memory_space<vmem>>, vector<1x16x128xf32>
    %11 = vector.shape_cast %10 : vector<1x16x128xf32> to vector<16x128xf32>
    %12 = vector.shape_cast %9 : vector<16x128xf32> to vector<1x16x128xf32>
    tpu.vector_store %arg4[%c0_6, %c0_7, %c0_8], %12 {strides = array<i32>} : memref<1x16x128xf32, #tpu.memory_space<vmem>>, vector<1x16x128xf32>,
    return
  }
  func.func @transform_0(%arg0: i32) -> (i32, i32, i32) {
    %c0_i32 = arith.constant 0 : i32
    %c0_i32_0 = arith.constant 0 : i32
    %c0_i32_1 = arith.constant 0 : i32
    return %arg0, %c0_i32, %c0_i32_0 : i32, i32, i32
  }
  func.func @transform_1(%arg0: i32) -> (i32, i32) {
    %c0_i32 = arith.constant 0 : i32
    %c0_i32_0 = arith.constant 0 : i32
    %c0_i32_1 = arith.constant 0 : i32
    return %c0_i32, %c0_i32_0 : i32, i32
  }
  func.func @transform_2(%arg0: i32) -> (i32, i32) {
    %c0_i32 = arith.constant 0 : i32
    %c0_i32_0 = arith.constant 0 : i32
    %c0_i32_1 = arith.constant 0 : i32
    return %c0_i32, %c0_i32_0 : i32, i32
  }
  func.func @transform_3(%arg0: i32) -> (i32, i32, i32) {
    %c0_i32 = arith.constant 0 : i32
    %c0_i32_0 = arith.constant 0 : i32
    %c0_i32_1 = arith.constant 0 : i32
    return %arg0, %c0_i32, %c0_i32_0 : i32, i32, i32
  }
}

module attributes {stable_mosaic.version = 11 : i64} {
  func.func @kernel(%arg0: i32, %arg1: memref<1x18x128xf32, #tpu.memory_space<vmem>>, %arg2: memref<3x128x128xbf16, #tpu.memory_space<vmem>>, %arg3: memref<1x128xf32, #tpu.memory_space<vmem>>, %arg4: memref<1x128xf32, #tpu.memory_space<vmem>>, %arg5: memref<1x16x128xf32, #tpu.memory_space<vmem>>, %arg6: memref<1x2x128xf32, #tpu.memory_space<vmem>>) attributes {dimension_semantics = [#tpu.dimension_semantics<parallel>], iteration_bounds = array<i64: 2>, scalar_prefetch = 0 : i64, scratch_operands = 0 : i64, tpu.core_type = #tpu.core_type<tc>, window_params = [{transform_indices = @transform_0, window_bounds = array<i64: 1, 18, 128>}, {pipeline_mode = #tpu.pipeline_mode<synchronous>, transform_indices = @transform_1, window_bounds = array<i64: 3, 128, 128>}, {pipeline_mode = #tpu.pipeline_mode<synchronous>, transform_indices = @transform_2, window_bounds = array<i64: 1, 128>}, {pipeline_mode = #tpu.pipeline_mode<synchronous>, transform_indices = @transform_3, window_bounds = array<i64: 1, 128>}, {transform_indices = @transform_4, window_bounds = array<i64: 1, 16, 128>}, {transform_indices = @transform_5, window_bounds = array<i64: 1, 2, 128>}]} {
    %cst = arith.constant 0.000000e+00 : f32
    %0 = vector.broadcast %cst : f32 to vector<16x128xf32>
    %c0 = arith.constant 0 : index
    %c0_0 = arith.constant 0 : index
    %c0_1 = arith.constant 0 : index
    %1 = vector.load %arg1[%c0, %c0_0, %c0_1] : memref<1x18x128xf32, #tpu.memory_space<vmem>>, vector<1x18x128xf32>
    %2 = vector.shape_cast %1 : vector<1x18x128xf32> to vector<18x128xf32>
    %c0_2 = arith.constant 0 : index
    %c0_3 = arith.constant 0 : index
    %3 = vector.load %arg3[%c0_2, %c0_3] : memref<1x128xf32, #tpu.memory_space<vmem>>, vector<1x128xf32>
    %4 = vector.broadcast %3 : vector<1x128xf32> to vector<18x128xf32>
    %5 = arith.mulf %2, %4 : vector<18x128xf32>
    %c0_4 = arith.constant 0 : index
    %c0_5 = arith.constant 0 : index
    %6 = vector.load %arg4[%c0_4, %c0_5] : memref<1x128xf32, #tpu.memory_space<vmem>>, vector<1x128xf32>
    %7 = vector.broadcast %6 : vector<1x128xf32> to vector<18x128xf32>
    %8 = arith.addf %5, %7 : vector<18x128xf32>
    %cst_6 = arith.constant 0.000000e+00 : f32
    %9 = vector.broadcast %cst_6 : f32 to vector<18x128xf32>
    %10 = arith.maximumf %8, %9 : vector<18x128xf32>
    %11 = tpu.iota {dimensions = array<i32: 0>} : vector<18x128xi32>
    %c1_i32 = arith.constant 1 : i32
    %12 = vector.broadcast %c1_i32 : i32 to vector<18x128xi32>
    %13 = arith.cmpi sge, %11, %12 : vector<18x128xi32>
    %c16_i32 = arith.constant 16 : i32
    %14 = vector.broadcast %c16_i32 : i32 to vector<18x128xi32>
    %15 = arith.cmpi sle, %11, %14 : vector<18x128xi32>
    %16 = arith.andi %13, %15 : vector<18x128xi1>
    %cst_7 = arith.constant 0.000000e+00 : f32
    %17 = vector.broadcast %cst_7 : f32 to vector<18x128xf32>
    %18 = arith.select %16, %10, %17 : vector<18x128xi1>, vector<18x128xf32>
    %19 = arith.truncf %18 : vector<18x128xf32> to vector<18x128xbf16>
    %20 = vector.extract_strided_slice %19 {offsets = [0, 0], sizes = [16, 128], strides = [1, 1]} : vector<18x128xbf16> to vector<16x128xbf16>
    %c0_8 = arith.constant 0 : index
    %c0_9 = arith.constant 0 : index
    %c0_10 = arith.constant 0 : index
    %21 = vector.load %arg2[%c0_8, %c0_9, %c0_10] : memref<3x128x128xbf16, #tpu.memory_space<vmem>>, vector<1x128x128xbf16>
    %22 = vector.shape_cast %21 : vector<1x128x128xbf16> to vector<128x128xbf16>
    %cst_11 = arith.constant dense<0.000000e+00> : vector<16x128xf32>
    %23 = tpu.matmul %20, %22, %cst_11 {dimension_numbers = #tpu.dot_dimension_numbers<[1], [0], [0], [1], [0, 0, 1, 1], [], []>} : vector<16x128xbf16>, vector<128x128xbf16>, vector<16x128xf32> -> vector<16x128xf32>
    %24 = arith.addf %0, %23 : vector<16x128xf32>
    %25 = vector.extract_strided_slice %19 {offsets = [1, 0], sizes = [16, 128], strides = [1, 1]} : vector<18x128xbf16> to vector<16x128xbf16>
    %c1 = arith.constant 1 : index
    %c0_12 = arith.constant 0 : index
    %c0_13 = arith.constant 0 : index
    %26 = vector.load %arg2[%c1, %c0_12, %c0_13] : memref<3x128x128xbf16, #tpu.memory_space<vmem>>, vector<1x128x128xbf16>
    %27 = vector.shape_cast %26 : vector<1x128x128xbf16> to vector<128x128xbf16>
    %cst_14 = arith.constant dense<0.000000e+00> : vector<16x128xf32>
    %28 = tpu.matmul %25, %27, %cst_14 {dimension_numbers = #tpu.dot_dimension_numbers<[1], [0], [0], [1], [0, 0, 1, 1], [], []>} : vector<16x128xbf16>, vector<128x128xbf16>, vector<16x128xf32> -> vector<16x128xf32>
    %29 = arith.addf %24, %28 : vector<16x128xf32>
    %30 = vector.extract_strided_slice %19 {offsets = [2, 0], sizes = [16, 128], strides = [1, 1]} : vector<18x128xbf16> to vector<16x128xbf16>
    %c2 = arith.constant 2 : index
    %c0_15 = arith.constant 0 : index
    %c0_16 = arith.constant 0 : index
    %31 = vector.load %arg2[%c2, %c0_15, %c0_16] : memref<3x128x128xbf16, #tpu.memory_space<vmem>>, vector<1x128x128xbf16>
    %32 = vector.shape_cast %31 : vector<1x128x128xbf16> to vector<128x128xbf16>
    %cst_17 = arith.constant dense<0.000000e+00> : vector<16x128xf32>
    %33 = tpu.matmul %30, %32, %cst_17 {dimension_numbers = #tpu.dot_dimension_numbers<[1], [0], [0], [1], [0, 0, 1, 1], [], []>} : vector<16x128xbf16>, vector<128x128xbf16>, vector<16x128xf32> -> vector<16x128xf32>
    %34 = arith.addf %29, %33 : vector<16x128xf32>
    %c0_18 = arith.constant 0 : index
    %c0_19 = arith.constant 0 : index
    %c0_20 = arith.constant 0 : index
    %35 = vector.load %arg5[%c0_18, %c0_19, %c0_20] : memref<1x16x128xf32, #tpu.memory_space<vmem>>, vector<1x16x128xf32>
    %36 = vector.shape_cast %35 : vector<1x16x128xf32> to vector<16x128xf32>
    %37 = vector.shape_cast %34 : vector<16x128xf32> to vector<1x16x128xf32>
    tpu.vector_store %arg5[%c0_18, %c0_19, %c0_20], %37 {strides = array<i32>} : memref<1x16x128xf32, #tpu.memory_space<vmem>>, vector<1x16x128xf32>,
    %cst_21 = arith.constant dense<0.000000e+00> : vector<128xf32>
    %38 = vector.multi_reduction <add>, %34, %cst_21 [0] : vector<16x128xf32> to vector<128xf32>
    %39 = vector.shape_cast %38 : vector<128xf32> to vector<1x128xf32>
    %40 = arith.mulf %34, %34 : vector<16x128xf32>
    %cst_22 = arith.constant dense<0.000000e+00> : vector<128xf32>
    %41 = vector.multi_reduction <add>, %40, %cst_22 [0] : vector<16x128xf32> to vector<128xf32>
    %42 = vector.shape_cast %41 : vector<128xf32> to vector<1x128xf32>
    %43 = tpu.concatenate %39, %42 in 0 : vector<1x128xf32>, vector<1x128xf32> -> vector<2x128xf32>
    %c0_23 = arith.constant 0 : index
    %c0_24 = arith.constant 0 : index
    %c0_25 = arith.constant 0 : index
    %44 = vector.load %arg6[%c0_23, %c0_24, %c0_25] : memref<1x2x128xf32, #tpu.memory_space<vmem>>, vector<1x2x128xf32>
    %45 = vector.shape_cast %44 : vector<1x2x128xf32> to vector<2x128xf32>
    %46 = vector.shape_cast %43 : vector<2x128xf32> to vector<1x2x128xf32>
    tpu.vector_store %arg6[%c0_23, %c0_24, %c0_25], %46 {strides = array<i32>} : memref<1x2x128xf32, #tpu.memory_space<vmem>>, vector<1x2x128xf32>,
    return
  }
  func.func @transform_0(%arg0: i32) -> (i32, i32, i32) {
    %c0_i32 = arith.constant 0 : i32
    %c0_i32_0 = arith.constant 0 : i32
    %c0_i32_1 = arith.constant 0 : i32
    return %arg0, %c0_i32, %c0_i32_0 : i32, i32, i32
  }
  func.func @transform_1(%arg0: i32) -> (i32, i32, i32) {
    %c0_i32 = arith.constant 0 : i32
    %c0_i32_0 = arith.constant 0 : i32
    %c0_i32_1 = arith.constant 0 : i32
    %c0_i32_2 = arith.constant 0 : i32
    return %c0_i32, %c0_i32_0, %c0_i32_1 : i32, i32, i32
  }
  func.func @transform_2(%arg0: i32) -> (i32, i32) {
    %c0_i32 = arith.constant 0 : i32
    %c0_i32_0 = arith.constant 0 : i32
    %c0_i32_1 = arith.constant 0 : i32
    return %c0_i32, %c0_i32_0 : i32, i32
  }
  func.func @transform_3(%arg0: i32) -> (i32, i32) {
    %c0_i32 = arith.constant 0 : i32
    %c0_i32_0 = arith.constant 0 : i32
    %c0_i32_1 = arith.constant 0 : i32
    return %c0_i32, %c0_i32_0 : i32, i32
  }
  func.func @transform_4(%arg0: i32) -> (i32, i32, i32) {
    %c0_i32 = arith.constant 0 : i32
    %c0_i32_0 = arith.constant 0 : i32
    %c0_i32_1 = arith.constant 0 : i32
    return %arg0, %c0_i32, %c0_i32_0 : i32, i32, i32
  }
  func.func @transform_5(%arg0: i32) -> (i32, i32, i32) {
    %c0_i32 = arith.constant 0 : i32
    %c0_i32_0 = arith.constant 0 : i32
    %c0_i32_1 = arith.constant 0 : i32
    return %arg0, %c0_i32, %c0_i32_0 : i32, i32, i32
  }
}

module attributes {stable_mosaic.version = 11 : i64} {
  func.func @kernel(%arg0: i32, %arg1: memref<1x18x64xf32, #tpu.memory_space<vmem>>, %arg2: memref<1x18x128xf32, #tpu.memory_space<vmem>>, %arg3: memref<3x64x128xbf16, #tpu.memory_space<vmem>>, %arg4: memref<3x128x128xbf16, #tpu.memory_space<vmem>>, %arg5: memref<1x64xf32, #tpu.memory_space<vmem>>, %arg6: memref<1x128xf32, #tpu.memory_space<vmem>>, %arg7: memref<1x64xf32, #tpu.memory_space<vmem>>, %arg8: memref<1x128xf32, #tpu.memory_space<vmem>>, %arg9: memref<1x16x128xf32, #tpu.memory_space<vmem>>, %arg10: memref<1x2x128xf32, #tpu.memory_space<vmem>>) attributes {dimension_semantics = [#tpu.dimension_semantics<parallel>], iteration_bounds = array<i64: 2>, scalar_prefetch = 0 : i64, scratch_operands = 0 : i64, tpu.core_type = #tpu.core_type<tc>, window_params = [{transform_indices = @transform_0, window_bounds = array<i64: 1, 18, 64>}, {transform_indices = @transform_1, window_bounds = array<i64: 1, 18, 128>}, {pipeline_mode = #tpu.pipeline_mode<synchronous>, transform_indices = @transform_2, window_bounds = array<i64: 3, 64, 128>}, {pipeline_mode = #tpu.pipeline_mode<synchronous>, transform_indices = @transform_3, window_bounds = array<i64: 3, 128, 128>}, {pipeline_mode = #tpu.pipeline_mode<synchronous>, transform_indices = @transform_4, window_bounds = array<i64: 1, 64>}, {pipeline_mode = #tpu.pipeline_mode<synchronous>, transform_indices = @transform_5, window_bounds = array<i64: 1, 128>}, {pipeline_mode = #tpu.pipeline_mode<synchronous>, transform_indices = @transform_6, window_bounds = array<i64: 1, 64>}, {pipeline_mode = #tpu.pipeline_mode<synchronous>, transform_indices = @transform_7, window_bounds = array<i64: 1, 128>}, {transform_indices = @transform_8, window_bounds = array<i64: 1, 16, 128>}, {transform_indices = @transform_9, window_bounds = array<i64: 1, 2, 128>}]} {
    %cst = arith.constant 0.000000e+00 : f32
    %0 = vector.broadcast %cst : f32 to vector<16x128xf32>
    %c0 = arith.constant 0 : index
    %c0_0 = arith.constant 0 : index
    %c0_1 = arith.constant 0 : index
    %1 = vector.load %arg1[%c0, %c0_0, %c0_1] : memref<1x18x64xf32, #tpu.memory_space<vmem>>, vector<1x18x64xf32>
    %2 = vector.shape_cast %1 : vector<1x18x64xf32> to vector<18x64xf32>
    %c0_2 = arith.constant 0 : index
    %c0_3 = arith.constant 0 : index
    %3 = vector.load %arg5[%c0_2, %c0_3] : memref<1x64xf32, #tpu.memory_space<vmem>>, vector<1x64xf32>
    %4 = vector.broadcast %3 : vector<1x64xf32> to vector<18x64xf32>
    %5 = arith.mulf %2, %4 : vector<18x64xf32>
    %c0_4 = arith.constant 0 : index
    %c0_5 = arith.constant 0 : index
    %6 = vector.load %arg7[%c0_4, %c0_5] : memref<1x64xf32, #tpu.memory_space<vmem>>, vector<1x64xf32>
    %7 = vector.broadcast %6 : vector<1x64xf32> to vector<18x64xf32>
    %8 = arith.addf %5, %7 : vector<18x64xf32>
    %9 = arith.truncf %8 : vector<18x64xf32> to vector<18x64xbf16>
    %10 = vector.extract_strided_slice %9 {offsets = [0, 0], sizes = [16, 64], strides = [1, 1]} : vector<18x64xbf16> to vector<16x64xbf16>
    %c0_6 = arith.constant 0 : index
    %c0_7 = arith.constant 0 : index
    %c0_8 = arith.constant 0 : index
    %11 = vector.load %arg3[%c0_6, %c0_7, %c0_8] : memref<3x64x128xbf16, #tpu.memory_space<vmem>>, vector<1x64x128xbf16>
    %12 = vector.shape_cast %11 : vector<1x64x128xbf16> to vector<64x128xbf16>
    %cst_9 = arith.constant dense<0.000000e+00> : vector<16x128xf32>
    %13 = tpu.matmul %10, %12, %cst_9 {dimension_numbers = #tpu.dot_dimension_numbers<[1], [0], [0], [1], [0, 0, 1, 1], [], []>} : vector<16x64xbf16>, vector<64x128xbf16>, vector<16x128xf32> -> vector<16x128xf32>
    %14 = arith.addf %0, %13 : vector<16x128xf32>
    %15 = vector.extract_strided_slice %9 {offsets = [1, 0], sizes = [16, 64], strides = [1, 1]} : vector<18x64xbf16> to vector<16x64xbf16>
    %c1 = arith.constant 1 : index
    %c0_10 = arith.constant 0 : index
    %c0_11 = arith.constant 0 : index
    %16 = vector.load %arg3[%c1, %c0_10, %c0_11] : memref<3x64x128xbf16, #tpu.memory_space<vmem>>, vector<1x64x128xbf16>
    %17 = vector.shape_cast %16 : vector<1x64x128xbf16> to vector<64x128xbf16>
    %cst_12 = arith.constant dense<0.000000e+00> : vector<16x128xf32>
    %18 = tpu.matmul %15, %17, %cst_12 {dimension_numbers = #tpu.dot_dimension_numbers<[1], [0], [0], [1], [0, 0, 1, 1], [], []>} : vector<16x64xbf16>, vector<64x128xbf16>, vector<16x128xf32> -> vector<16x128xf32>
    %19 = arith.addf %14, %18 : vector<16x128xf32>
    %20 = vector.extract_strided_slice %9 {offsets = [2, 0], sizes = [16, 64], strides = [1, 1]} : vector<18x64xbf16> to vector<16x64xbf16>
    %c2 = arith.constant 2 : index
    %c0_13 = arith.constant 0 : index
    %c0_14 = arith.constant 0 : index
    %21 = vector.load %arg3[%c2, %c0_13, %c0_14] : memref<3x64x128xbf16, #tpu.memory_space<vmem>>, vector<1x64x128xbf16>
    %22 = vector.shape_cast %21 : vector<1x64x128xbf16> to vector<64x128xbf16>
    %cst_15 = arith.constant dense<0.000000e+00> : vector<16x128xf32>
    %23 = tpu.matmul %20, %22, %cst_15 {dimension_numbers = #tpu.dot_dimension_numbers<[1], [0], [0], [1], [0, 0, 1, 1], [], []>} : vector<16x64xbf16>, vector<64x128xbf16>, vector<16x128xf32> -> vector<16x128xf32>
    %24 = arith.addf %19, %23 : vector<16x128xf32>
    %c0_16 = arith.constant 0 : index
    %c0_17 = arith.constant 0 : index
    %c0_18 = arith.constant 0 : index
    %25 = vector.load %arg2[%c0_16, %c0_17, %c0_18] : memref<1x18x128xf32, #tpu.memory_space<vmem>>, vector<1x18x128xf32>
    %26 = vector.shape_cast %25 : vector<1x18x128xf32> to vector<18x128xf32>
    %c0_19 = arith.constant 0 : index
    %c0_20 = arith.constant 0 : index
    %27 = vector.load %arg6[%c0_19, %c0_20] : memref<1x128xf32, #tpu.memory_space<vmem>>, vector<1x128xf32>
    %28 = vector.broadcast %27 : vector<1x128xf32> to vector<18x128xf32>
    %29 = arith.mulf %26, %28 : vector<18x128xf32>
    %c0_21 = arith.constant 0 : index
    %c0_22 = arith.constant 0 : index
    %30 = vector.load %arg8[%c0_21, %c0_22] : memref<1x128xf32, #tpu.memory_space<vmem>>, vector<1x128xf32>
    %31 = vector.broadcast %30 : vector<1x128xf32> to vector<18x128xf32>
    %32 = arith.addf %29, %31 : vector<18x128xf32>
    %cst_23 = arith.constant 0.000000e+00 : f32
    %33 = vector.broadcast %cst_23 : f32 to vector<18x128xf32>
    %34 = arith.maximumf %32, %33 : vector<18x128xf32>
    %35 = tpu.iota {dimensions = array<i32: 0>} : vector<18x128xi32>
    %c1_i32 = arith.constant 1 : i32
    %36 = vector.broadcast %c1_i32 : i32 to vector<18x128xi32>
    %37 = arith.cmpi sge, %35, %36 : vector<18x128xi32>
    %c16_i32 = arith.constant 16 : i32
    %38 = vector.broadcast %c16_i32 : i32 to vector<18x128xi32>
    %39 = arith.cmpi sle, %35, %38 : vector<18x128xi32>
    %40 = arith.andi %37, %39 : vector<18x128xi1>
    %cst_24 = arith.constant 0.000000e+00 : f32
    %41 = vector.broadcast %cst_24 : f32 to vector<18x128xf32>
    %42 = arith.select %40, %34, %41 : vector<18x128xi1>, vector<18x128xf32>
    %43 = arith.truncf %42 : vector<18x128xf32> to vector<18x128xbf16>
    %44 = vector.extract_strided_slice %43 {offsets = [0, 0], sizes = [16, 128], strides = [1, 1]} : vector<18x128xbf16> to vector<16x128xbf16>
    %c0_25 = arith.constant 0 : index
    %c0_26 = arith.constant 0 : index
    %c0_27 = arith.constant 0 : index
    %45 = vector.load %arg4[%c0_25, %c0_26, %c0_27] : memref<3x128x128xbf16, #tpu.memory_space<vmem>>, vector<1x128x128xbf16>
    %46 = vector.shape_cast %45 : vector<1x128x128xbf16> to vector<128x128xbf16>
    %cst_28 = arith.constant dense<0.000000e+00> : vector<16x128xf32>
    %47 = tpu.matmul %44, %46, %cst_28 {dimension_numbers = #tpu.dot_dimension_numbers<[1], [0], [0], [1], [0, 0, 1, 1], [], []>} : vector<16x128xbf16>, vector<128x128xbf16>, vector<16x128xf32> -> vector<16x128xf32>
    %48 = arith.addf %24, %47 : vector<16x128xf32>
    %49 = vector.extract_strided_slice %43 {offsets = [1, 0], sizes = [16, 128], strides = [1, 1]} : vector<18x128xbf16> to vector<16x128xbf16>
    %c1_29 = arith.constant 1 : index
    %c0_30 = arith.constant 0 : index
    %c0_31 = arith.constant 0 : index
    %50 = vector.load %arg4[%c1_29, %c0_30, %c0_31] : memref<3x128x128xbf16, #tpu.memory_space<vmem>>, vector<1x128x128xbf16>
    %51 = vector.shape_cast %50 : vector<1x128x128xbf16> to vector<128x128xbf16>
    %cst_32 = arith.constant dense<0.000000e+00> : vector<16x128xf32>
    %52 = tpu.matmul %49, %51, %cst_32 {dimension_numbers = #tpu.dot_dimension_numbers<[1], [0], [0], [1], [0, 0, 1, 1], [], []>} : vector<16x128xbf16>, vector<128x128xbf16>, vector<16x128xf32> -> vector<16x128xf32>
    %53 = arith.addf %48, %52 : vector<16x128xf32>
    %54 = vector.extract_strided_slice %43 {offsets = [2, 0], sizes = [16, 128], strides = [1, 1]} : vector<18x128xbf16> to vector<16x128xbf16>
    %c2_33 = arith.constant 2 : index
    %c0_34 = arith.constant 0 : index
    %c0_35 = arith.constant 0 : index
    %55 = vector.load %arg4[%c2_33, %c0_34, %c0_35] : memref<3x128x128xbf16, #tpu.memory_space<vmem>>, vector<1x128x128xbf16>
    %56 = vector.shape_cast %55 : vector<1x128x128xbf16> to vector<128x128xbf16>
    %cst_36 = arith.constant dense<0.000000e+00> : vector<16x128xf32>
    %57 = tpu.matmul %54, %56, %cst_36 {dimension_numbers = #tpu.dot_dimension_numbers<[1], [0], [0], [1], [0, 0, 1, 1], [], []>} : vector<16x128xbf16>, vector<128x128xbf16>, vector<16x128xf32> -> vector<16x128xf32>
    %58 = arith.addf %53, %57 : vector<16x128xf32>
    %c0_37 = arith.constant 0 : index
    %c0_38 = arith.constant 0 : index
    %c0_39 = arith.constant 0 : index
    %59 = vector.load %arg9[%c0_37, %c0_38, %c0_39] : memref<1x16x128xf32, #tpu.memory_space<vmem>>, vector<1x16x128xf32>
    %60 = vector.shape_cast %59 : vector<1x16x128xf32> to vector<16x128xf32>
    %61 = vector.shape_cast %58 : vector<16x128xf32> to vector<1x16x128xf32>
    tpu.vector_store %arg9[%c0_37, %c0_38, %c0_39], %61 {strides = array<i32>} : memref<1x16x128xf32, #tpu.memory_space<vmem>>, vector<1x16x128xf32>,
    %cst_40 = arith.constant dense<0.000000e+00> : vector<128xf32>
    %62 = vector.multi_reduction <add>, %58, %cst_40 [0] : vector<16x128xf32> to vector<128xf32>
    %63 = vector.shape_cast %62 : vector<128xf32> to vector<1x128xf32>
    %64 = arith.mulf %58, %58 : vector<16x128xf32>
    %cst_41 = arith.constant dense<0.000000e+00> : vector<128xf32>
    %65 = vector.multi_reduction <add>, %64, %cst_41 [0] : vector<16x128xf32> to vector<128xf32>
    %66 = vector.shape_cast %65 : vector<128xf32> to vector<1x128xf32>
    %67 = tpu.concatenate %63, %66 in 0 : vector<1x128xf32>, vector<1x128xf32> -> vector<2x128xf32>
    %c0_42 = arith.constant 0 : index
    %c0_43 = arith.constant 0 : index
    %c0_44 = arith.constant 0 : index
    %68 = vector.load %arg10[%c0_42, %c0_43, %c0_44] : memref<1x2x128xf32, #tpu.memory_space<vmem>>, vector<1x2x128xf32>
    %69 = vector.shape_cast %68 : vector<1x2x128xf32> to vector<2x128xf32>
    %70 = vector.shape_cast %67 : vector<2x128xf32> to vector<1x2x128xf32>
    tpu.vector_store %arg10[%c0_42, %c0_43, %c0_44], %70 {strides = array<i32>} : memref<1x2x128xf32, #tpu.memory_space<vmem>>, vector<1x2x128xf32>,
    return
  }
  func.func @transform_0(%arg0: i32) -> (i32, i32, i32) {
    %c0_i32 = arith.constant 0 : i32
    %c0_i32_0 = arith.constant 0 : i32
    %c0_i32_1 = arith.constant 0 : i32
    return %arg0, %c0_i32, %c0_i32_0 : i32, i32, i32
  }
  func.func @transform_1(%arg0: i32) -> (i32, i32, i32) {
    %c0_i32 = arith.constant 0 : i32
    %c0_i32_0 = arith.constant 0 : i32
    %c0_i32_1 = arith.constant 0 : i32
    return %arg0, %c0_i32, %c0_i32_0 : i32, i32, i32
  }
  func.func @transform_2(%arg0: i32) -> (i32, i32, i32) {
    %c0_i32 = arith.constant 0 : i32
    %c0_i32_0 = arith.constant 0 : i32
    %c0_i32_1 = arith.constant 0 : i32
    %c0_i32_2 = arith.constant 0 : i32
    return %c0_i32, %c0_i32_0, %c0_i32_1 : i32, i32, i32
  }
  func.func @transform_3(%arg0: i32) -> (i32, i32, i32) {
    %c0_i32 = arith.constant 0 : i32
    %c0_i32_0 = arith.constant 0 : i32
    %c0_i32_1 = arith.constant 0 : i32
    %c0_i32_2 = arith.constant 0 : i32
    return %c0_i32, %c0_i32_0, %c0_i32_1 : i32, i32, i32
  }
  func.func @transform_4(%arg0: i32) -> (i32, i32) {
    %c0_i32 = arith.constant 0 : i32
    %c0_i32_0 = arith.constant 0 : i32
    %c0_i32_1 = arith.constant 0 : i32
    return %c0_i32, %c0_i32_0 : i32, i32
  }
  func.func @transform_5(%arg0: i32) -> (i32, i32) {
    %c0_i32 = arith.constant 0 : i32
    %c0_i32_0 = arith.constant 0 : i32
    %c0_i32_1 = arith.constant 0 : i32
    return %c0_i32, %c0_i32_0 : i32, i32
  }
  func.func @transform_6(%arg0: i32) -> (i32, i32) {
    %c0_i32 = arith.constant 0 : i32
    %c0_i32_0 = arith.constant 0 : i32
    %c0_i32_1 = arith.constant 0 : i32
    return %c0_i32, %c0_i32_0 : i32, i32
  }
  func.func @transform_7(%arg0: i32) -> (i32, i32) {
    %c0_i32 = arith.constant 0 : i32
    %c0_i32_0 = arith.constant 0 : i32
    %c0_i32_1 = arith.constant 0 : i32
    return %c0_i32, %c0_i32_0 : i32, i32
  }
  func.func @transform_8(%arg0: i32) -> (i32, i32, i32) {
    %c0_i32 = arith.constant 0 : i32
    %c0_i32_0 = arith.constant 0 : i32
    %c0_i32_1 = arith.constant 0 : i32
    return %arg0, %c0_i32, %c0_i32_0 : i32, i32, i32
  }
  func.func @transform_9(%arg0: i32) -> (i32, i32, i32) {
    %c0_i32 = arith.constant 0 : i32
    %c0_i32_0 = arith.constant 0 : i32
    %c0_i32_1 = arith.constant 0 : i32
    return %arg0, %c0_i32, %c0_i32_0 : i32, i32, i32
  }
}

</mosaic_0001>

<llo_original>
// kernel: up_conv_forward.4
$region0: #{up_conv_forward.4}
  #allocation0 [shape = 'u32[]', space=smem, size = 0x4, offset = 0x4, fixed_abs, tag = 'smem constant byte address 0x4 - core index']
  #allocation1 [shape = 'u32[144,128]{1,0:T(1,128)}', space=vmem, size = 0x12000, scoped, tag = 'internal scratch']
  %s0 = inlined_call_operand.vmem [shape: f32[2,18,64], index: 0, kind: input, shape index: {}]
  %s1 = inlined_call_operand.vmem [shape: bf16[3,64,128], index: 1, kind: input, shape index: {}]
  %s2 = inlined_call_operand.vmem [shape: f32[1,64], index: 2, kind: input, shape index: {}]
  %s3 = inlined_call_operand.vmem [shape: f32[1,64], index: 3, kind: input, shape index: {}]
  %s4 = inlined_call_operand.vmem [shape: f32[2,16,128], index: 4, kind: output, shape index: {0}]
  %s5 = inlined_call_operand.vmem [shape: f32[2,2,128], index: 5, kind: output, shape index: {1}]
  %6 = xla_tuple %s4, %s5
  %s7 = sld [smem:[#allocation0]]
  $region57: #{up_conv_forward.4} parent=0
    _
  %s9 = ssub.s32 1, %s7
  %s10 = scalar_select 0, %s9, %s7
  loop: start=0, step=1, limit=4
  $region2: #{up_conv_forward.4} parent=0 // loop_pre_header
    _
  $region3: #{up_conv_forward.4} parent=0 // loop_header
    %s12 = sphi 0, %s16
    %p13 = scmp.ge.s32.totalorder %s12, 4
    %s22 = sphi 0, %s24
    %s25 = sphi 0, %s22
    %s26 = sphi 0, %s25
    %s42 = sphi 0, %s26
    %s46 = sphi 0, %s46
    %s48 = sphi 0, %s46
    %s49 = sphi 0, %s48
    %s63 = sphi 0, %s49
    %s67 = sphi 0, %s67
    %s69 = sphi 0, %s67
    %s70 = sphi 0, %s69
    %s84 = sphi 0, %s70
    %s88 = sphi 0, %s88
    %s90 = sphi 0, %s88
    %s91 = sphi 0, %s90
    %s105 = sphi 0, %s91
    %s111 = sphi 0, %s113
    %s114 = sphi 0, %s111
    %s115 = sphi 0, %s114
    %s131 = sphi 0, %s115
    %s137 = sphi 0, %s139
    %s140 = sphi 0, %s137
    %s141 = sphi 0, %s140
    %s157 = sphi 0, %s141
  $region4: #{up_conv_forward.4} parent=0 // loop_header_branch
    %15 = sbr.rel (%p13) target = $region8
  $region5: #{up_conv_forward.4} parent=0 // loop_body
    %s17 = ssub.s32 %s12, 1
    %s18 = ssub.s32 %s12, 2
    %s19 = sadd.s32 %s12, 1
    %s20 = ssub.s32 %s12, %s19
    %p21 = scmp.eq.s32.totalorder %s20, 0
    %s23 = sadd.s32 %s22, 1
    %s24 = scalar_select %p21, %s22, %s23
    %p27 = pneg %p21
    %p28 = scmp.eq.s32.totalorder %s12, 1
    %p29 = por %p27, %p28
    %p30 = scmp.ne.s32.totalorder %s22, %s25
    %p31 = scmp.eq.s32.totalorder %s12, 0
    %p32 = por %p30, %p31
    %p33 = scmp.ne.s32.totalorder %s22, %s25
    %p34 = scmp.eq.s32.totalorder %s17, 1
    %p35 = por %p33, %p34
    %p36 = scmp.ne.s32.totalorder %s25, %s26
    %p37 = scmp.eq.s32.totalorder %s17, 0
    %p38 = por %p36, %p37
    %p39 = scmp.ne.s32.totalorder %s25, %s26
    %p40 = scmp.eq.s32.totalorder %s18, 1
    %p41 = por %p39, %p40
    %p43 = scmp.ne.s32.totalorder %s26, %s42
    %p44 = scmp.eq.s32.totalorder %s18, 0
    %p45 = por %p43, %p44
    %s47 = sadd.s32 %s46, 1
    %p50 = scmp.eq.s32.totalorder %s12, 1
    %p51 = scmp.ne.s32.totalorder %s46, %s48
    %p52 = scmp.eq.s32.totalorder %s12, 0
    %p53 = por %p51, %p52
    %p54 = scmp.ne.s32.totalorder %s46, %s48
    %p55 = scmp.eq.s32.totalorder %s17, 1
    %p56 = por %p54, %p55
    %p57 = scmp.ne.s32.totalorder %s48, %s49
    %p58 = scmp.eq.s32.totalorder %s17, 0
    %p59 = por %p57, %p58
    %p60 = scmp.ne.s32.totalorder %s48, %s49
    %p61 = scmp.eq.s32.totalorder %s18, 1
    %p62 = por %p60, %p61
    %p64 = scmp.ne.s32.totalorder %s49, %s63
    %p65 = scmp.eq.s32.totalorder %s18, 0
    %p66 = por %p64, %p65
    %s68 = sadd.s32 %s67, 1
    %p71 = scmp.eq.s32.totalorder %s12, 1
    %p72 = scmp.ne.s32.totalorder %s67, %s69
    %p73 = scmp.eq.s32.totalorder %s12, 0
    %p74 = por %p72, %p73
    %p75 = scmp.ne.s32.totalorder %s67, %s69
    %p76 = scmp.eq.s32.totalorder %s17, 1
    %p77 = por %p75, %p76
    %p78 = scmp.ne.s32.totalorder %s69, %s70
    %p79 = scmp.eq.s32.totalorder %s17, 0
    %p80 = por %p78, %p79
    %p81 = scmp.ne.s32.totalorder %s69, %s70
    %p82 = scmp.eq.s32.totalorder %s18, 1
    %p83 = por %p81, %p82
    %p85 = scmp.ne.s32.totalorder %s70, %s84
    %p86 = scmp.eq.s32.totalorder %s18, 0
    %p87 = por %p85, %p86
    %s89 = sadd.s32 %s88, 1
    %p92 = scmp.eq.s32.totalorder %s12, 1
    %p93 = scmp.ne.s32.totalorder %s88, %s90
    %p94 = scmp.eq.s32.totalorder %s12, 0
    %p95 = por %p93, %p94
    %p96 = scmp.ne.s32.totalorder %s88, %s90
    %p97 = scmp.eq.s32.totalorder %s17, 1
    %p98 = por %p96, %p97
    %p99 = scmp.ne.s32.totalorder %s90, %s91
    %p100 = scmp.eq.s32.totalorder %s17, 0
    %p101 = por %p99, %p100
    %p102 = scmp.ne.s32.totalorder %s90, %s91
    %p103 = scmp.eq.s32.totalorder %s18, 1
    %p104 = por %p102, %p103
    %p106 = scmp.ne.s32.totalorder %s91, %s105
    %p107 = scmp.eq.s32.totalorder %s18, 0
    %p108 = por %p106, %p107
    %s109 = ssub.s32 %s12, %s19
    %p110 = scmp.eq.s32.totalorder %s109, 0
    %s112 = sadd.s32 %s111, 1
    %s113 = scalar_select %p110, %s111, %s112
    %p116 = pneg %p110
    %p117 = scmp.eq.s32.totalorder %s12, 1
    %p118 = por %p116, %p117
    %p119 = scmp.ne.s32.totalorder %s111, %s114
    %p120 = scmp.eq.s32.totalorder %s12, 0
    %p121 = por %p119, %p120
    %p122 = scmp.ne.s32.totalorder %s111, %s114
    %p123 = scmp.eq.s32.totalorder %s17, 1
    %p124 = por %p122, %p123
    %p125 = scmp.ne.s32.totalorder %s114, %s115
    %p126 = scmp.eq.s32.totalorder %s17, 0
    %p127 = por %p125, %p126
    %p128 = scmp.ne.s32.totalorder %s114, %s115
    %p129 = scmp.eq.s32.totalorder %s18, 1
    %p130 = por %p128, %p129
    %p132 = scmp.ne.s32.totalorder %s115, %s131
    %p133 = scmp.eq.s32.totalorder %s18, 0
    %p134 = por %p132, %p133
    %s135 = ssub.s32 %s12, %s19
    %p136 = scmp.eq.s32.totalorder %s135, 0
    %s138 = sadd.s32 %s137, 1
    %s139 = scalar_select %p136, %s137, %s138
    %p142 = pneg %p136
    %p143 = scmp.eq.s32.totalorder %s12, 1
    %p144 = por %p142, %p143
    %p145 = scmp.ne.s32.totalorder %s137, %s140
    %p146 = scmp.eq.s32.totalorder %s12, 0
    %p147 = por %p145, %p146
    %p148 = scmp.ne.s32.totalorder %s137, %s140
    %p149 = scmp.eq.s32.totalorder %s17, 1
    %p150 = por %p148, %p149
    %p151 = scmp.ne.s32.totalorder %s140, %s141
    %p152 = scmp.eq.s32.totalorder %s17, 0
    %p153 = por %p151, %p152
    %p154 = scmp.ne.s32.totalorder %s140, %s141
    %p155 = scmp.eq.s32.totalorder %s18, 1
    %p156 = por %p154, %p155
    %p158 = scmp.ne.s32.totalorder %s141, %s157
    %p159 = scmp.eq.s32.totalorder %s18, 0
    %p160 = por %p158, %p159
    %p161 = scmp.le.s32.totalorder 1, %s12
    %p162 = scmp.lt.s32.totalorder %s12, 3
    %p163 = pnand %p161, %p162
    %p164 = pneg %p163
    // Predicated region
    $region9: #{up_conv_forward.4} parent=5 // pred_check
      _
    $region10: #{up_conv_forward.4} parent=5 // pred_check_branch
      %166 = sbr.rel (%p163) target = $region12
    $region11: #{up_conv_forward.4} parent=5 // pred_region
      %s167 = ssub.s32 %s12, 1
      // Predicated region
      $region13: #{up_conv_forward.4} parent=11 // pred_check
        %p168 = pneg %p59
      $region14: #{up_conv_forward.4} parent=11 // pred_check_branch
        %170 = sbr.rel (%p168) target = $region16
      $region15: #{up_conv_forward.4} parent=11 // pred_region
        _
      $region16: #{up_conv_forward.4} parent=11 // pred_fallthru
        _
      // Predicated region
      $region17: #{up_conv_forward.4} parent=11 // pred_check
        %p171 = pneg %p80
      $region18: #{up_conv_forward.4} parent=11 // pred_check_branch
        %173 = sbr.rel (%p171) target = $region20
      $region19: #{up_conv_forward.4} parent=11 // pred_region
        _
      $region20: #{up_conv_forward.4} parent=11 // pred_fallthru
        _
      // Predicated region
      $region21: #{up_conv_forward.4} parent=11 // pred_check
        %p174 = pneg %p101
      $region22: #{up_conv_forward.4} parent=11 // pred_check_branch
        %176 = sbr.rel (%p174) target = $region24
      $region23: #{up_conv_forward.4} parent=11 // pred_region
        _
      $region24: #{up_conv_forward.4} parent=11 // pred_fallthru
        _
    $region12: #{up_conv_forward.4} parent=5 // pred_fallthru
      _
    %p177 = scmp.lt.s32.totalorder %s12, 2
    // Predicated region
    $region25: #{up_conv_forward.4} parent=5 // pred_check
      %p178 = pneg %p177
    $region26: #{up_conv_forward.4} parent=5 // pred_check_branch
      %180 = sbr.rel (%p178) target = $region28
    $region27: #{up_conv_forward.4} parent=5 // pred_region
      // Predicated region
      $region29: #{up_conv_forward.4} parent=27 // pred_check
        %p181 = pneg %p32
      $region30: #{up_conv_forward.4} parent=27 // pred_check_branch
        %183 = sbr.rel (%p181) target = $region32
      $region31: #{up_conv_forward.4} parent=27 // pred_region
        %p184 = scmp.lt.s32.totalorder %s12, 1
        %s185 = scalar_select %p184, %s12, 1
        %s186 = smul.addr %s185, 3
        %s187 = smul.addr %s186, 8
        %s188 = scalar_lea.vmem %s0, %s187
      $region32: #{up_conv_forward.4} parent=27 // pred_fallthru
        _
    $region28: #{up_conv_forward.4} parent=5 // pred_fallthru
      _
    %p189 = scmp.le.s32.totalorder 1, %s12
    %p190 = scmp.lt.s32.totalorder %s12, 3
    %p191 = pnand %p189, %p190
    %p192 = pneg %p191
    // Predicated region
    $region33: #{up_conv_forward.4} parent=5 // pred_check
      _
    $region34: #{up_conv_forward.4} parent=5 // pred_check_branch
      %194 = sbr.rel (%p191) target = $region36
    $region35: #{up_conv_forward.4} parent=5 // pred_region
      %s195 = ssub.s32 %s12, 1
      %p196 = scmp.lt.s32.totalorder %s17, 1
      %s197 = scalar_select %p196, %s17, 1
      %s198 = smul.addr %s197, 3
      %s199 = smul.addr %s198, 8
      %s200 = scalar_lea.vmem %s0, %s199
      %p201 = pneg %p38
      %p202 = pneg %p35
      %p203 = pneg %p59
      %p204 = pneg %p56
      %p205 = pneg %p80
      %p206 = pneg %p77
      %p207 = pneg %p101
      %p208 = pneg %p98
      %p209 = pneg %p127
      %p210 = pneg %p124
      %p211 = scmp.lt.s32.totalorder %s17, 1
      %s212 = scalar_select %p211, %s17, 1
      %s213 = smul.addr %s212, 2
      %s214 = smul.addr %s213, 8
      %s215 = scalar_lea.vmem %s4, %s214
      %p216 = pneg %p153
      %p217 = pneg %p150
      %p218 = scmp.lt.s32.totalorder %s17, 1
      %s219 = scalar_select %p218, %s17, 1
      %s220 = smul.addr %s219, 2
      %s221 = scalar_lea.vmem %s5, %s220
      %p222 = scmp.lt.s32.totalorder %s17, 1
      %s223 = scalar_select %p222, %s17, 1
      %s224 = smul.addr %s223, 3
      %s225 = smul.addr %s224, 8
      %s226 = scalar_lea.vmem %s0, %s225
      %p227 = scmp.lt.s32.totalorder %s17, 1
      %s228 = scalar_select %p227, %s17, 1
      %s229 = smul.addr %s228, 2
      %s230 = smul.addr %s229, 8
      %s231 = scalar_lea.vmem %s4, %s230
      %p232 = scmp.lt.s32.totalorder %s17, 1
      %s233 = scalar_select %p232, %s17, 1
      %s234 = smul.addr %s233, 2
      %s235 = scalar_lea.vmem %s5, %s234
      %v237 = vld [vmem:[%s226] sm:$0xff]
      %v238 = vld [vmem:[%s226 + $0x8] sm:$0xff]
      %v239 = vld [vmem:[%s226 + $0x10] sm:$0x3]
      %v240 = vld [vmem:[%s2] sm:$0x1]
      %v242 = vlaneseq
      %v243 = vshrl.u32 %v242, 7
      %v244 = vsub.s32 0, %v243
      %v245 = vrot.slane %v240, %v244
      %v247 = vmul.f32 %v237, %v245
      %v248 = vmul.f32 %v238, %v245
      %v249 = vmul.f32 %v239, %v245
      %v250 = vld [vmem:[%s3] sm:$0x1]
      %v252 = vlaneseq
      %v253 = vshrl.u32 %v252, 7
      %v254 = vsub.s32 0, %v253
      %v255 = vrot.slane %v250, %v254
      %v257 = vadd.f32 %v247, %v255
      %v258 = vadd.f32 %v248, %v255
      %v259 = vadd.f32 %v249, %v255
      %v260 = vpack.c.bf16 %v258, %v257
      %v261 = vpack.c.bf16 %v259, %v259
      %v262 = vld [vmem:[%s1] sm:$0xf]
      %v263 = vld [vmem:[%s1 + $0x4] sm:$0xf]
      %v264 = vld [vmem:[%s1 + $0x8] sm:$0xf]
      %v265 = vld [vmem:[%s1 + $0xc] sm:$0xf]
      %v266 = vld [vmem:[%s1 + $0x10] sm:$0xf]
      %v267 = vld [vmem:[%s1 + $0x14] sm:$0xf]
      %v268 = vld [vmem:[%s1 + $0x18] sm:$0xf]
      %v269 = vld [vmem:[%s1 + $0x1c] sm:$0xf]
      %s270 = scalar_lea.vmem %s1, 32
      %v271 = vld [vmem:[%s270] sm:$0xf]
      %v272 = vld [vmem:[%s270 + $0x4] sm:$0xf]
      %v273 = vld [vmem:[%s270 + $0x8] sm:$0xf]
      %v274 = vld [vmem:[%s270 + $0xc] sm:$0xf]
      %v275 = vld [vmem:[%s270 + $0x10] sm:$0xf]
      %v276 = vld [vmem:[%s270 + $0x14] sm:$0xf]
      %v277 = vld [vmem:[%s270 + $0x18] sm:$0xf]
      %v278 = vld [vmem:[%s270 + $0x1c] sm:$0xf]
      %vm279 = vsmask.f32 7424
      %v281 = vshrl.u32 %v260, 16
      %v283 = vshll.u32 %v260, 16
      %v285 = vrot.slane %v283, 1
      %v286 = vor.u32 %v281, %v285
      %v288 = vshll.u32 %v261, 16
      %v290 = vrot.slane %v288, 1
      %v291 = vsel %vm279, %v286, %v290
      %v300 = vunpack.c.l.b16 %v271
      %v301 = vunpack.c.l.b16 %v272
      %v302 = vunpack.c.l.b16 %v273
      %v303 = vunpack.c.l.b16 %v274
      %v304 = vunpack.c.l.b16 %v275
      %v305 = vunpack.c.l.b16 %v276
      %v306 = vunpack.c.l.b16 %v277
      %v307 = vunpack.c.l.b16 %v278
      %v308 = vpack.c.b16 %v301, %v300
      %v309 = vpack.c.b16 %v303, %v302
      %v310 = vpack.c.b16 %v305, %v304
      %v311 = vpack.c.b16 %v307, %v306
      %vm316 = vcmask 523264
      %v318 = vsel %vm316, %v291, 0
      %320 = vmatprep.subr.bf16.mxu0 0
      %321 = vmatpush1.bf16.msra.mxu0 0
      %322 = vmatprep.subr.bf16.mxu0 0
      %323 = vmatpush1.bf16.msra.mxu0 0
      %324 = vmatprep.subr.bf16.mxu0 0
      %325 = vmatpush1.bf16.msra.mxu0 0
      %326 = vmatprep.subr.bf16.mxu0 0
      %327 = vmatpush1.bf16.msra.mxu0 0
      %328 = vmatprep.subr.bf16.mxu0 0
      %329 = vmatpush1.bf16.msra.mxu0 %v311
      %330 = vmatprep.subr.bf16.mxu0 0
      %331 = vmatpush1.bf16.msra.mxu0 %v310
      %332 = vmatprep.subr.bf16.mxu0 0
      %333 = vmatpush1.bf16.msra.mxu0 %v309
      %334 = vmatprep.subr.bf16.mxu0 0
      %335 = vmatpush1.bf16.msra.mxu0 %v308
      %336 = vmatprep.subr.bf16.mxu0 0
      %337 = vmatpush2.bf16.msra.mxu0 0
      %338 = vmatprep.subr.bf16.mxu0 0
      %339 = vmatpush2.bf16.msra.mxu0 0
      %340 = vmatprep.subr.bf16.mxu0 0
      %341 = vmatpush2.bf16.msra.mxu0 0
      %342 = vmatprep.subr.bf16.mxu0 0
      %343 = vmatpush2.bf16.msra.mxu0 0
      %344 = vmatprep.subr.bf16.mxu0 0
      %345 = vmatpush2.bf16.msra.mxu0 0
      %346 = vmatprep.subr.bf16.mxu0 0
      %347 = vmatpush2.bf16.msra.mxu0 0
      %348 = vmatprep.subr.bf16.mxu0 0
      %349 = vmatpush2.bf16.msra.mxu0 0
      %350 = vmatprep.subr.bf16.mxu0 0
      %351 = vmatpush2.bf16.msra.mxu0 0
      %352 = vmatprep.mubr.bf16.mxu0 0
      %353 = vmatmul.mubr.bf16.gmra.mxu0 %v318
      %v354 = vpop.f32.mrf.mxu0
      %v355 = vadd.f32 0.0, %v354
      %v356 = vpop.f32.mrf.mxu0
      %v357 = vpop.f32.mrf.mxu0
      %v358 = vadd.f32 0.0, %v357
      %v359 = vpop.f32.mrf.mxu0
      %360 = vdwg.mxu0
      %v369 = vunpack.c.l.b16 %v262
      %v370 = vunpack.c.l.b16 %v263
      %v371 = vunpack.c.l.b16 %v264
      %v372 = vunpack.c.l.b16 %v265
      %v373 = vunpack.c.l.b16 %v266
      %v374 = vunpack.c.l.b16 %v267
      %v375 = vunpack.c.l.b16 %v268
      %v376 = vunpack.c.l.b16 %v269
      %v377 = vpack.c.b16 %v370, %v369
      %v378 = vpack.c.b16 %v372, %v371
      %v379 = vpack.c.b16 %v374, %v373
      %v380 = vpack.c.b16 %v376, %v375
      %v385 = vsel %vm316, %v260, 0
      %387 = vmatprep.subr.bf16.mxu0 0
      %388 = vmatpush1.bf16.msra.mxu0 0
      %389 = vmatprep.subr.bf16.mxu0 0
      %390 = vmatpush1.bf16.msra.mxu0 0
      %391 = vmatprep.subr.bf16.mxu0 0
      %392 = vmatpush1.bf16.msra.mxu0 0
      %393 = vmatprep.subr.bf16.mxu0 0
      %394 = vmatpush1.bf16.msra.mxu0 0
      %395 = vmatprep.subr.bf16.mxu0 0
      %396 = vmatpush1.bf16.msra.mxu0 %v380
      %397 = vmatprep.subr.bf16.mxu0 0
      %398 = vmatpush1.bf16.msra.mxu0 %v379
      %399 = vmatprep.subr.bf16.mxu0 0
      %400 = vmatpush1.bf16.msra.mxu0 %v378
      %401 = vmatprep.subr.bf16.mxu0 0
      %402 = vmatpush1.bf16.msra.mxu0 %v377
      %403 = vmatprep.subr.bf16.mxu0 0
      %404 = vmatpush2.bf16.msra.mxu0 0
      %405 = vmatprep.subr.bf16.mxu0 0
      %406 = vmatpush2.bf16.msra.mxu0 0
      %407 = vmatprep.subr.bf16.mxu0 0
      %408 = vmatpush2.bf16.msra.mxu0 0
      %409 = vmatprep.subr.bf16.mxu0 0
      %410 = vmatpush2.bf16.msra.mxu0 0
      %411 = vmatprep.subr.bf16.mxu0 0
      %412 = vmatpush2.bf16.msra.mxu0 0
      %413 = vmatprep.subr.bf16.mxu0 0
      %414 = vmatpush2.bf16.msra.mxu0 0
      %415 = vmatprep.subr.bf16.mxu0 0
      %416 = vmatpush2.bf16.msra.mxu0 0
      %417 = vmatprep.subr.bf16.mxu0 0
      %418 = vmatpush2.bf16.msra.mxu0 0
      %419 = vmatprep.mubr.bf16.mxu0 0
      %420 = vmatmul.mubr.bf16.gmra.mxu0 %v385
      %v421 = vpop.f32.mrf.mxu0
      %v422 = vadd.f32 %v355, %v421
      %v423 = vpop.f32.mrf.mxu0
      %v424 = vpop.f32.mrf.mxu0
      %v425 = vadd.f32 %v358, %v424
      %v426 = vpop.f32.mrf.mxu0
      %427 = vdwg.mxu0
      %s428 = scalar_lea.vmem %s1, 64
      %v429 = vld [vmem:[%s428] sm:$0xf]
      %v430 = vld [vmem:[%s428 + $0x4] sm:$0xf]
      %v431 = vld [vmem:[%s428 + $0x8] sm:$0xf]
      %v432 = vld [vmem:[%s428 + $0xc] sm:$0xf]
      %v433 = vld [vmem:[%s428 + $0x10] sm:$0xf]
      %v434 = vld [vmem:[%s428 + $0x14] sm:$0xf]
      %v435 = vld [vmem:[%s428 + $0x18] sm:$0xf]
      %v436 = vld [vmem:[%s428 + $0x1c] sm:$0xf]
      %vm439 = vcmask 1046528
      %v440 = vrot.slane %v260, 1
      %v441 = vrot.slane %v261, 1
      %v442 = vsel %vm439, %v440, %v441
      %v451 = vunpack.c.l.b16 %v429
      %v452 = vunpack.c.l.b16 %v430
      %v453 = vunpack.c.l.b16 %v431
      %v454 = vunpack.c.l.b16 %v432
      %v455 = vunpack.c.l.b16 %v433
      %v456 = vunpack.c.l.b16 %v434
      %v457 = vunpack.c.l.b16 %v435
      %v458 = vunpack.c.l.b16 %v436
      %v459 = vpack.c.b16 %v452, %v451
      %v460 = vpack.c.b16 %v454, %v453
      %v461 = vpack.c.b16 %v456, %v455
      %v462 = vpack.c.b16 %v458, %v457
      %v468 = vsel %vm316, %v442, 0
      %470 = vmatprep.subr.bf16.mxu0 0
      %471 = vmatpush1.bf16.msra.mxu0 0
      %472 = vmatprep.subr.bf16.mxu0 0
      %473 = vmatpush1.bf16.msra.mxu0 0
      %474 = vmatprep.subr.bf16.mxu0 0
      %475 = vmatpush1.bf16.msra.mxu0 0
      %476 = vmatprep.subr.bf16.mxu0 0
      %477 = vmatpush1.bf16.msra.mxu0 0
      %478 = vmatprep.subr.bf16.mxu0 0
      %479 = vmatpush1.bf16.msra.mxu0 %v462
      %480 = vmatprep.subr.bf16.mxu0 0
      %481 = vmatpush1.bf16.msra.mxu0 %v461
      %482 = vmatprep.subr.bf16.mxu0 0
      %483 = vmatpush1.bf16.msra.mxu0 %v460
      %484 = vmatprep.subr.bf16.mxu0 0
      %485 = vmatpush1.bf16.msra.mxu0 %v459
      %486 = vmatprep.subr.bf16.mxu0 0
      %487 = vmatpush2.bf16.msra.mxu0 0
      %488 = vmatprep.subr.bf16.mxu0 0
      %489 = vmatpush2.bf16.msra.mxu0 0
      %490 = vmatprep.subr.bf16.mxu0 0
      %491 = vmatpush2.bf16.msra.mxu0 0
      %492 = vmatprep.subr.bf16.mxu0 0
      %493 = vmatpush2.bf16.msra.mxu0 0
      %494 = vmatprep.subr.bf16.mxu0 0
      %495 = vmatpush2.bf16.msra.mxu0 0
      %496 = vmatprep.subr.bf16.mxu0 0
      %497 = vmatpush2.bf16.msra.mxu0 0
      %498 = vmatprep.subr.bf16.mxu0 0
      %499 = vmatpush2.bf16.msra.mxu0 0
      %500 = vmatprep.subr.bf16.mxu0 0
      %501 = vmatpush2.bf16.msra.mxu0 0
      %502 = vmatprep.mubr.bf16.mxu0 0
      %503 = vmatmul.mubr.bf16.gmra.mxu0 %v468
      %v504 = vpop.f32.mrf.mxu0
      %v505 = vadd.f32 0.0, %v504
      %v506 = vpop.f32.mrf.mxu0
      %v507 = vpop.f32.mrf.mxu0
      %v508 = vadd.f32 0.0, %v507
      %v509 = vpop.f32.mrf.mxu0
      %510 = vdwg.mxu0
      %v511 = vadd.f32 %v422, %v505
      %v512 = vadd.f32 %v425, %v508
      %513 = vst [vmem:[%s231] sm:$0xff] %v511
      %514 = vst [vmem:[%s231 + $0x8] sm:$0xff] %v512
      %v515 = vadd.f32 %v511, %v512
      %v516 = vrot.slane %v515, 4
      %v517 = vadd.f32 %v515, %v516
      %v518 = vrot.slane %v517, 2
      %v519 = vadd.f32 %v517, %v518
      %v520 = vrot.slane %v519, 1
      %v521 = vadd.f32 %v519, %v520
      %v522 = vmul.f32 %v511, %v511
      %v523 = vmul.f32 %v512, %v512
      %v524 = vadd.f32 %v522, %v523
      %v525 = vrot.slane %v524, 4
      %v526 = vadd.f32 %v524, %v525
      %v527 = vrot.slane %v526, 2
      %v528 = vadd.f32 %v526, %v527
      %v529 = vrot.slane %v528, 1
      %v530 = vadd.f32 %v528, %v529
      %vm531 = vcmask 1040384
      %v532 = vsel %vm531, %v521, %v530
      %533 = vst [vmem:[%s235] sm:$0x3] %v532
      %p534 = scmp.lt.s32.totalorder %s17, 1
      %s535 = scalar_select %p534, %s17, 1
      %s536 = smul.addr %s535, 2
      %s537 = smul.addr %s536, 8
      %s538 = scalar_lea.vmem %s4, %s537
      %p539 = scmp.lt.s32.totalorder %s17, 1
      %s540 = scalar_select %p539, %s17, 1
      %s541 = smul.addr %s540, 2
      %s542 = scalar_lea.vmem %s5, %s541
      // Predicated region
      $region37: #{up_conv_forward.4} parent=35 // pred_check
        %p543 = pneg %p124
      $region38: #{up_conv_forward.4} parent=35 // pred_check_branch
        %545 = sbr.rel (%p543) target = $region40
      $region39: #{up_conv_forward.4} parent=35 // pred_region
        _
      $region40: #{up_conv_forward.4} parent=35 // pred_fallthru
        _
      // Predicated region
      $region41: #{up_conv_forward.4} parent=35 // pred_check
        %p546 = pneg %p150
      $region42: #{up_conv_forward.4} parent=35 // pred_check_branch
        %548 = sbr.rel (%p546) target = $region44
      $region43: #{up_conv_forward.4} parent=35 // pred_region
        _
      $region44: #{up_conv_forward.4} parent=35 // pred_fallthru
        _
    $region36: #{up_conv_forward.4} parent=5 // pred_fallthru
      _
    %p549 = scmp.le.s32.totalorder 2, %s12
    // Predicated region
    $region45: #{up_conv_forward.4} parent=5 // pred_check
      %p550 = pneg %p549
    $region46: #{up_conv_forward.4} parent=5 // pred_check_branch
      %552 = sbr.rel (%p550) target = $region48
    $region47: #{up_conv_forward.4} parent=5 // pred_region
      %s553 = ssub.s32 %s12, 2
      // Predicated region
      $region49: #{up_conv_forward.4} parent=47 // pred_check
        %p554 = pneg %p130
      $region50: #{up_conv_forward.4} parent=47 // pred_check_branch
        %556 = sbr.rel (%p554) target = $region52
      $region51: #{up_conv_forward.4} parent=47 // pred_region
        %p557 = scmp.lt.s32.totalorder %s18, 1
        %s558 = scalar_select %p557, %s18, 1
        %s559 = smul.addr %s558, 2
        %s560 = smul.addr %s559, 8
        %s561 = scalar_lea.vmem %s4, %s560
      $region52: #{up_conv_forward.4} parent=47 // pred_fallthru
        _
      // Predicated region
      $region53: #{up_conv_forward.4} parent=47 // pred_check
        %p562 = pneg %p156
      $region54: #{up_conv_forward.4} parent=47 // pred_check_branch
        %564 = sbr.rel (%p562) target = $region56
      $region55: #{up_conv_forward.4} parent=47 // pred_region
        %p565 = scmp.lt.s32.totalorder %s18, 1
        %s566 = scalar_select %p565, %s18, 1
        %s567 = smul.addr %s566, 2
        %s568 = scalar_lea.vmem %s5, %s567
      $region56: #{up_conv_forward.4} parent=47 // pred_fallthru
        _
    $region48: #{up_conv_forward.4} parent=5 // pred_fallthru
      _
  $region6: #{up_conv_forward.4} parent=0 // loop_footer
    %s16 = sadd.s32 1, %s12
  $region7: #{up_conv_forward.4} parent=0 // loop_footer_branch
    %11 = sbr.rel target = $region3
  $region8: #{up_conv_forward.4} parent=0 // loop_exit
    _

// kernel: tile.33
$region0: #{tile.33}
  #allocation0 [shape = 's32[1]{0}', space=sflag, size = 0x4, scoped, tag = 'scoped memory for tile.33']
  %s0 = inlined_call_operand.vmem [shape: f32[8], index: 0, kind: input, shape index: {}]
  %s1 = inlined_call_operand.vmem [shape: f32[16,8], index: 1, kind: output, shape index: {}]
  // Predicated region
  $region2: #{tile.33} parent=0 // pred_check
    _
  $region3: #{tile.33} parent=0 // pred_check_branch
    %3 = sbr.rel (0) target = $region5
  $region4: #{tile.33} parent=0 // pred_region
    _
  $region5: #{tile.33} parent=0 // pred_fallthru
    _
  %v4 = vld [vmem:[%s0] ss:$0 sm:$0xff]
  %5 = vst [vmem:[%s1] sm:$0xff] %v4
  %s6 = scalar_lea.vmem %s1, 8
  %7 = vst [vmem:[%s6] sm:$0xff] %v4

// kernel: tile.34
$region0: #{tile.34}
  %s0 = inlined_call_operand.vmem [shape: f32[16,8], index: 0, kind: input, shape index: {}]
  %s1 = inlined_call_operand.vmem [shape: f32[1,128], index: 1, kind: output, shape index: {}]
  $region1: #{tile.34} parent=0
    #allocation0 [shape = 'u8[4096]{0}', space=vmem, size = 0x1000, scoped, tag = 'scoped mem for output reshape']
    %v2 = vld [vmem:[%s0] sm:$0x1]
    %vm3 = vcmask 64512
    %4 = vst.msk [vmem:[#allocation0] sm:$0x1] %vm3, %v2
    %s5 = scalar_lea.vmem %s0, 15
    %v6 = vld [vmem:[%s5] sm:$0x1]
    %7 = vrot.lane.b32.xlu0 %v6, 120
    %v8 = vpop.permute.xlu0 %7
    %vm9 = vcmask 1048512
    %10 = vst.msk [vmem:[#allocation0] sm:$0x1] %vm9, %v8
    %s11 = scalar_lea.vmem %s0, 14
    %v12 = vld [vmem:[%s11] sm:$0x1]
    %13 = vrot.lane.b32.xlu0 %v12, 112
    %v14 = vpop.permute.xlu0 %13
    %vm15 = vcmask 982912
    %16 = vst.msk [vmem:[#allocation0] sm:$0x1] %vm15, %v14
    %s17 = scalar_lea.vmem %s0, 13
    %v18 = vld [vmem:[%s17] sm:$0x1]
    %19 = vrot.lane.b32.xlu0 %v18, 104
    %v20 = vpop.permute.xlu0 %19
    %vm21 = vcmask 917312
    %22 = vst.msk [vmem:[#allocation0] sm:$0x1] %vm21, %v20
    %s23 = scalar_lea.vmem %s0, 12
    %v24 = vld [vmem:[%s23] sm:$0x1]
    %25 = vrot.lane.b32.xlu0 %v24, 96
    %v26 = vpop.permute.xlu0 %25
    %vm27 = vcmask 851712
    %28 = vst.msk [vmem:[#allocation0] sm:$0x1] %vm27, %v26
    %s29 = scalar_lea.vmem %s0, 11
    %v30 = vld [vmem:[%s29] sm:$0x1]
    %31 = vrot.lane.b32.xlu0 %v30, 88
    %v32 = vpop.permute.xlu0 %31
    %vm33 = vcmask 786112
    %34 = vst.msk [vmem:[#allocation0] sm:$0x1] %vm33, %v32
    %s35 = scalar_lea.vmem %s0, 10
    %v36 = vld [vmem:[%s35] sm:$0x1]
    %37 = vrot.lane.b32.xlu0 %v36, 80
    %v38 = vpop.permute.xlu0 %37
    %vm39 = vcmask 720512
    %40 = vst.msk [vmem:[#allocation0] sm:$0x1] %vm39, %v38
    %s41 = scalar_lea.vmem %s0, 9
    %v42 = vld [vmem:[%s41] sm:$0x1]
    %43 = vrot.lane.b32.xlu0 %v42, 72
    %v44 = vpop.permute.xlu0 %43
    %vm45 = vcmask 654912
    %46 = vst.msk [vmem:[#allocation0] sm:$0x1] %vm45, %v44
    %s47 = scalar_lea.vmem %s0, 8
    %v48 = vld [vmem:[%s47] sm:$0x1]
    %49 = vrot.lane.b32.xlu0 %v48, 64
    %v50 = vpop.permute.xlu0 %49
    %vm51 = vcmask 589312
    %52 = vst.msk [vmem:[#allocation0] sm:$0x1] %vm51, %v50
    %s53 = scalar_lea.vmem %s0, 7
    %v54 = vld [vmem:[%s53] sm:$0x1]
    %55 = vrot.lane.b32.xlu0 %v54, 56
    %v56 = vpop.permute.xlu0 %55
    %vm57 = vcmask 523712
    %58 = vst.msk [vmem:[#allocation0] sm:$0x1] %vm57, %v56
    %s59 = scalar_lea.vmem %s0, 6
    %v60 = vld [vmem:[%s59] sm:$0x1]
    %61 = vrot.lane.b32.xlu0 %v60, 48
    %v62 = vpop.permute.xlu0 %61
    %vm63 = vcmask 458112
    %64 = vst.msk [vmem:[#allocation0] sm:$0x1] %vm63, %v62
    %s65 = scalar_lea.vmem %s0, 5
    %v66 = vld [vmem:[%s65] sm:$0x1]
    %67 = vrot.lane.b32.xlu0 %v66, 40
    %v68 = vpop.permute.xlu0 %67
    %vm69 = vcmask 392512
    %70 = vst.msk [vmem:[#allocation0] sm:$0x1] %vm69, %v68
    %s71 = scalar_lea.vmem %s0, 4
    %v72 = vld [vmem:[%s71] sm:$0x1]
    %73 = vrot.lane.b32.xlu0 %v72, 32
    %v74 = vpop.permute.xlu0 %73
    %vm75 = vcmask 326912
    %76 = vst.msk [vmem:[#allocation0] sm:$0x1] %vm75, %v74
    %s77 = scalar_lea.vmem %s0, 3
    %v78 = vld [vmem:[%s77] sm:$0x1]
    %79 = vrot.lane.b32.xlu0 %v78, 24
    %v80 = vpop.permute.xlu0 %79
    %vm81 = vcmask 261312
    %82 = vst.msk [vmem:[#allocation0] sm:$0x1] %vm81, %v80
    %s83 = scalar_lea.vmem %s0, 2
    %v84 = vld [vmem:[%s83] sm:$0x1]
    %85 = vrot.lane.b32.xlu0 %v84, 16
    %v86 = vpop.permute.xlu0 %85
    %vm87 = vcmask 195712
    %88 = vst.msk [vmem:[#allocation0] sm:$0x1] %vm87, %v86
    %s89 = scalar_lea.vmem %s0, 1
    %v90 = vld [vmem:[%s89] sm:$0x1]
    %91 = vrot.lane.b32.xlu0 %v90, 8
    %v92 = vpop.permute.xlu0 %91
    %vm93 = vcmask 130112
    %94 = vst.msk [vmem:[#allocation0] sm:$0x1] %vm93, %v92
    %s96 = sshll.u32 1, 1
    %s97 = ssub.s32 %s96, 1
    %v99 = vld [vmem:[#allocation0] sm:%s97]
    %s100 = sshll.u32 1, 1
    %s101 = ssub.s32 %s100, 1
    %102 = vst [vmem:[%s1] sm:%s101] %v99

// kernel: up_conv_forward.7
$region0: #{up_conv_forward.7}
  #allocation0 [shape = 'u32[]', space=smem, size = 0x4, offset = 0x4, fixed_abs, tag = 'smem constant byte address 0x4 - core index']
  #allocation1 [shape = 'u32[144,128]{1,0:T(1,128)}', space=vmem, size = 0x12000, scoped, tag = 'internal scratch']
  %s0 = inlined_call_operand.vmem [shape: f32[2,16,128], index: 0, kind: input, shape index: {}]
  %s1 = inlined_call_operand.vmem [shape: f32[1,128], index: 1, kind: input, shape index: {}]
  %s2 = inlined_call_operand.vmem [shape: f32[1,128], index: 2, kind: input, shape index: {}]
  %s3 = inlined_call_operand.vmem [shape: f32[2,16,128], index: 3, kind: output, shape index: {}]
  %s4 = sld [smem:[#allocation0]]
  $region45: #{up_conv_forward.7} parent=0
    _
  %s6 = ssub.s32 1, %s4
  %s7 = scalar_select 0, %s6, %s4
  loop: start=0, step=1, limit=4
  $region2: #{up_conv_forward.7} parent=0 // loop_pre_header
    _
  $region3: #{up_conv_forward.7} parent=0 // loop_header
    %s9 = sphi 0, %s13
    %p10 = scmp.ge.s32.totalorder %s9, 4
    %s19 = sphi 0, %s21
    %s22 = sphi 0, %s19
    %s23 = sphi 0, %s22
    %s39 = sphi 0, %s23
    %s43 = sphi 0, %s43
    %s45 = sphi 0, %s43
    %s46 = sphi 0, %s45
    %s60 = sphi 0, %s46
    %s64 = sphi 0, %s64
    %s66 = sphi 0, %s64
    %s67 = sphi 0, %s66
    %s81 = sphi 0, %s67
    %s87 = sphi 0, %s89
    %s90 = sphi 0, %s87
    %s91 = sphi 0, %s90
    %s107 = sphi 0, %s91
  $region4: #{up_conv_forward.7} parent=0 // loop_header_branch
    %12 = sbr.rel (%p10) target = $region8
  $region5: #{up_conv_forward.7} parent=0 // loop_body
    %s14 = ssub.s32 %s9, 1
    %s15 = ssub.s32 %s9, 2
    %s16 = sadd.s32 %s9, 1
    %s17 = ssub.s32 %s9, %s16
    %p18 = scmp.eq.s32.totalorder %s17, 0
    %s20 = sadd.s32 %s19, 1
    %s21 = scalar_select %p18, %s19, %s20
    %p24 = pneg %p18
    %p25 = scmp.eq.s32.totalorder %s9, 1
    %p26 = por %p24, %p25
    %p27 = scmp.ne.s32.totalorder %s19, %s22
    %p28 = scmp.eq.s32.totalorder %s9, 0
    %p29 = por %p27, %p28
    %p30 = scmp.ne.s32.totalorder %s19, %s22
    %p31 = scmp.eq.s32.totalorder %s14, 1
    %p32 = por %p30, %p31
    %p33 = scmp.ne.s32.totalorder %s22, %s23
    %p34 = scmp.eq.s32.totalorder %s14, 0
    %p35 = por %p33, %p34
    %p36 = scmp.ne.s32.totalorder %s22, %s23
    %p37 = scmp.eq.s32.totalorder %s15, 1
    %p38 = por %p36, %p37
    %p40 = scmp.ne.s32.totalorder %s23, %s39
    %p41 = scmp.eq.s32.totalorder %s15, 0
    %p42 = por %p40, %p41
    %s44 = sadd.s32 %s43, 1
    %p47 = scmp.eq.s32.totalorder %s9, 1
    %p48 = scmp.ne.s32.totalorder %s43, %s45
    %p49 = scmp.eq.s32.totalorder %s9, 0
    %p50 = por %p48, %p49
    %p51 = scmp.ne.s32.totalorder %s43, %s45
    %p52 = scmp.eq.s32.totalorder %s14, 1
    %p53 = por %p51, %p52
    %p54 = scmp.ne.s32.totalorder %s45, %s46
    %p55 = scmp.eq.s32.totalorder %s14, 0
    %p56 = por %p54, %p55
    %p57 = scmp.ne.s32.totalorder %s45, %s46
    %p58 = scmp.eq.s32.totalorder %s15, 1
    %p59 = por %p57, %p58
    %p61 = scmp.ne.s32.totalorder %s46, %s60
    %p62 = scmp.eq.s32.totalorder %s15, 0
    %p63 = por %p61, %p62
    %s65 = sadd.s32 %s64, 1
    %p68 = scmp.eq.s32.totalorder %s9, 1
    %p69 = scmp.ne.s32.totalorder %s64, %s66
    %p70 = scmp.eq.s32.totalorder %s9, 0
    %p71 = por %p69, %p70
    %p72 = scmp.ne.s32.totalorder %s64, %s66
    %p73 = scmp.eq.s32.totalorder %s14, 1
    %p74 = por %p72, %p73
    %p75 = scmp.ne.s32.totalorder %s66, %s67
    %p76 = scmp.eq.s32.totalorder %s14, 0
    %p77 = por %p75, %p76
    %p78 = scmp.ne.s32.totalorder %s66, %s67
    %p79 = scmp.eq.s32.totalorder %s15, 1
    %p80 = por %p78, %p79
    %p82 = scmp.ne.s32.totalorder %s67, %s81
    %p83 = scmp.eq.s32.totalorder %s15, 0
    %p84 = por %p82, %p83
    %s85 = ssub.s32 %s9, %s16
    %p86 = scmp.eq.s32.totalorder %s85, 0
    %s88 = sadd.s32 %s87, 1
    %s89 = scalar_select %p86, %s87, %s88
    %p92 = pneg %p86
    %p93 = scmp.eq.s32.totalorder %s9, 1
    %p94 = por %p92, %p93
    %p95 = scmp.ne.s32.totalorder %s87, %s90
    %p96 = scmp.eq.s32.totalorder %s9, 0
    %p97 = por %p95, %p96
    %p98 = scmp.ne.s32.totalorder %s87, %s90
    %p99 = scmp.eq.s32.totalorder %s14, 1
    %p100 = por %p98, %p99
    %p101 = scmp.ne.s32.totalorder %s90, %s91
    %p102 = scmp.eq.s32.totalorder %s14, 0
    %p103 = por %p101, %p102
    %p104 = scmp.ne.s32.totalorder %s90, %s91
    %p105 = scmp.eq.s32.totalorder %s15, 1
    %p106 = por %p104, %p105
    %p108 = scmp.ne.s32.totalorder %s91, %s107
    %p109 = scmp.eq.s32.totalorder %s15, 0
    %p110 = por %p108, %p109
    %p111 = scmp.le.s32.totalorder 1, %s9
    %p112 = scmp.lt.s32.totalorder %s9, 3
    %p113 = pnand %p111, %p112
    %p114 = pneg %p113
    // Predicated region
    $region9: #{up_conv_forward.7} parent=5 // pred_check
      _
    $region10: #{up_conv_forward.7} parent=5 // pred_check_branch
      %116 = sbr.rel (%p113) target = $region12
    $region11: #{up_conv_forward.7} parent=5 // pred_region
      %s117 = ssub.s32 %s9, 1
      // Predicated region
      $region13: #{up_conv_forward.7} parent=11 // pred_check
        %p118 = pneg %p56
      $region14: #{up_conv_forward.7} parent=11 // pred_check_branch
        %120 = sbr.rel (%p118) target = $region16
      $region15: #{up_conv_forward.7} parent=11 // pred_region
        _
      $region16: #{up_conv_forward.7} parent=11 // pred_fallthru
        _
      // Predicated region
      $region17: #{up_conv_forward.7} parent=11 // pred_check
        %p121 = pneg %p77
      $region18: #{up_conv_forward.7} parent=11 // pred_check_branch
        %123 = sbr.rel (%p121) target = $region20
      $region19: #{up_conv_forward.7} parent=11 // pred_region
        _
      $region20: #{up_conv_forward.7} parent=11 // pred_fallthru
        _
    $region12: #{up_conv_forward.7} parent=5 // pred_fallthru
      _
    %p124 = scmp.lt.s32.totalorder %s9, 2
    // Predicated region
    $region21: #{up_conv_forward.7} parent=5 // pred_check
      %p125 = pneg %p124
    $region22: #{up_conv_forward.7} parent=5 // pred_check_branch
      %127 = sbr.rel (%p125) target = $region24
    $region23: #{up_conv_forward.7} parent=5 // pred_region
      // Predicated region
      $region25: #{up_conv_forward.7} parent=23 // pred_check
        %p128 = pneg %p29
      $region26: #{up_conv_forward.7} parent=23 // pred_check_branch
        %130 = sbr.rel (%p128) target = $region28
      $region27: #{up_conv_forward.7} parent=23 // pred_region
        %p131 = scmp.lt.s32.totalorder %s9, 1
        %s132 = scalar_select %p131, %s9, 1
        %s133 = smul.addr %s132, 2
        %s134 = smul.addr %s133, 8
        %s135 = scalar_lea.vmem %s0, %s134
      $region28: #{up_conv_forward.7} parent=23 // pred_fallthru
        _
    $region24: #{up_conv_forward.7} parent=5 // pred_fallthru
      _
    %p136 = scmp.le.s32.totalorder 1, %s9
    %p137 = scmp.lt.s32.totalorder %s9, 3
    %p138 = pnand %p136, %p137
    %p139 = pneg %p138
    // Predicated region
    $region29: #{up_conv_forward.7} parent=5 // pred_check
      _
    $region30: #{up_conv_forward.7} parent=5 // pred_check_branch
      %141 = sbr.rel (%p138) target = $region32
    $region31: #{up_conv_forward.7} parent=5 // pred_region
      %s142 = ssub.s32 %s9, 1
      %p143 = scmp.lt.s32.totalorder %s14, 1
      %s144 = scalar_select %p143, %s14, 1
      %s145 = smul.addr %s144, 2
      %s146 = smul.addr %s145, 8
      %s147 = scalar_lea.vmem %s0, %s146
      %p148 = pneg %p35
      %p149 = pneg %p32
      %p150 = pneg %p56
      %p151 = pneg %p53
      %p152 = pneg %p77
      %p153 = pneg %p74
      %p154 = pneg %p103
      %p155 = pneg %p100
      %p156 = scmp.lt.s32.totalorder %s14, 1
      %s157 = scalar_select %p156, %s14, 1
      %s158 = smul.addr %s157, 2
      %s159 = smul.addr %s158, 8
      %s160 = scalar_lea.vmem %s3, %s159
      %p161 = scmp.lt.s32.totalorder %s14, 1
      %s162 = scalar_select %p161, %s14, 1
      %s163 = smul.addr %s162, 2
      %s164 = smul.addr %s163, 8
      %s165 = scalar_lea.vmem %s0, %s164
      %p166 = scmp.lt.s32.totalorder %s14, 1
      %s167 = scalar_select %p166, %s14, 1
      %s168 = smul.addr %s167, 2
      %s169 = smul.addr %s168, 8
      %s170 = scalar_lea.vmem %s3, %s169
      %v171 = vld [vmem:[%s165] sm:$0xff]
      %v172 = vld [vmem:[%s165 + $0x8] sm:$0xff]
      %v173 = vld [vmem:[%s1] sm:$0x1]
      %v175 = vlaneseq
      %v176 = vshrl.u32 %v175, 7
      %v177 = vsub.s32 0, %v176
      %v178 = vrot.slane %v173, %v177
      %v180 = vmul.f32 %v171, %v178
      %v181 = vmul.f32 %v172, %v178
      %v182 = vld [vmem:[%s2] sm:$0x1]
      %v184 = vlaneseq
      %v185 = vshrl.u32 %v184, 7
      %v186 = vsub.s32 0, %v185
      %v187 = vrot.slane %v182, %v186
      %v189 = vadd.f32 %v180, %v187
      %v190 = vadd.f32 %v181, %v187
      %v191 = vmax.f32 %v189, 0.0
      %v192 = vmax.f32 %v190, 0.0
      %193 = vst [vmem:[%s170] sm:$0xff] %v191
      %194 = vst [vmem:[%s170 + $0x8] sm:$0xff] %v192
      %p195 = scmp.lt.s32.totalorder %s14, 1
      %s196 = scalar_select %p195, %s14, 1
      %s197 = smul.addr %s196, 2
      %s198 = smul.addr %s197, 8
      %s199 = scalar_lea.vmem %s3, %s198
      // Predicated region
      $region33: #{up_conv_forward.7} parent=31 // pred_check
        %p200 = pneg %p100
      $region34: #{up_conv_forward.7} parent=31 // pred_check_branch
        %202 = sbr.rel (%p200) target = $region36
      $region35: #{up_conv_forward.7} parent=31 // pred_region
        _
      $region36: #{up_conv_forward.7} parent=31 // pred_fallthru
        _
    $region32: #{up_conv_forward.7} parent=5 // pred_fallthru
      _
    %p203 = scmp.le.s32.totalorder 2, %s9
    // Predicated region
    $region37: #{up_conv_forward.7} parent=5 // pred_check
      %p204 = pneg %p203
    $region38: #{up_conv_forward.7} parent=5 // pred_check_branch
      %206 = sbr.rel (%p204) target = $region40
    $region39: #{up_conv_forward.7} parent=5 // pred_region
      %s207 = ssub.s32 %s9, 2
      // Predicated region
      $region41: #{up_conv_forward.7} parent=39 // pred_check
        %p208 = pneg %p106
      $region42: #{up_conv_forward.7} parent=39 // pred_check_branch
        %210 = sbr.rel (%p208) target = $region44
      $region43: #{up_conv_forward.7} parent=39 // pred_region
        %p211 = scmp.lt.s32.totalorder %s15, 1
        %s212 = scalar_select %p211, %s15, 1
        %s213 = smul.addr %s212, 2
        %s214 = smul.addr %s213, 8
        %s215 = scalar_lea.vmem %s3, %s214
      $region44: #{up_conv_forward.7} parent=39 // pred_fallthru
        _
    $region40: #{up_conv_forward.7} parent=5 // pred_fallthru
      _
  $region6: #{up_conv_forward.7} parent=0 // loop_footer
    %s13 = sadd.s32 1, %s9
  $region7: #{up_conv_forward.7} parent=0 // loop_footer_branch
    %8 = sbr.rel target = $region3
  $region8: #{up_conv_forward.7} parent=0 // loop_exit
    _

// kernel: up_conv_forward.6
$region0: #{up_conv_forward.6}
  #allocation0 [shape = 'u32[]', space=smem, size = 0x4, offset = 0x4, fixed_abs, tag = 'smem constant byte address 0x4 - core index']
  #allocation1 [shape = 'u32[144,128]{1,0:T(1,128)}', space=vmem, size = 0x12000, scoped, tag = 'internal scratch']
  %s0 = inlined_call_operand.vmem [shape: f32[2,18,128], index: 0, kind: input, shape index: {}]
  %s1 = inlined_call_operand.vmem [shape: bf16[3,128,128], index: 1, kind: input, shape index: {}]
  %s2 = inlined_call_operand.vmem [shape: f32[1,128], index: 2, kind: input, shape index: {}]
  %s3 = inlined_call_operand.vmem [shape: f32[1,128], index: 3, kind: input, shape index: {}]
  %s4 = inlined_call_operand.vmem [shape: f32[2,16,128], index: 4, kind: output, shape index: {0}]
  %s5 = inlined_call_operand.vmem [shape: f32[2,2,128], index: 5, kind: output, shape index: {1}]
  %6 = xla_tuple %s4, %s5
  %s7 = sld [smem:[#allocation0]]
  $region57: #{up_conv_forward.6} parent=0
    _
  %s9 = ssub.s32 1, %s7
  %s10 = scalar_select 0, %s9, %s7
  loop: start=0, step=1, limit=4
  $region2: #{up_conv_forward.6} parent=0 // loop_pre_header
    _
  $region3: #{up_conv_forward.6} parent=0 // loop_header
    %s12 = sphi 0, %s16
    %p13 = scmp.ge.s32.totalorder %s12, 4
    %s22 = sphi 0, %s24
    %s25 = sphi 0, %s22
    %s26 = sphi 0, %s25
    %s42 = sphi 0, %s26
    %s46 = sphi 0, %s46
    %s48 = sphi 0, %s46
    %s49 = sphi 0, %s48
    %s63 = sphi 0, %s49
    %s67 = sphi 0, %s67
    %s69 = sphi 0, %s67
    %s70 = sphi 0, %s69
    %s84 = sphi 0, %s70
    %s88 = sphi 0, %s88
    %s90 = sphi 0, %s88
    %s91 = sphi 0, %s90
    %s105 = sphi 0, %s91
    %s111 = sphi 0, %s113
    %s114 = sphi 0, %s111
    %s115 = sphi 0, %s114
    %s131 = sphi 0, %s115
    %s137 = sphi 0, %s139
    %s140 = sphi 0, %s137
    %s141 = sphi 0, %s140
    %s157 = sphi 0, %s141
  $region4: #{up_conv_forward.6} parent=0 // loop_header_branch
    %15 = sbr.rel (%p13) target = $region8
  $region5: #{up_conv_forward.6} parent=0 // loop_body
    %s17 = ssub.s32 %s12, 1
    %s18 = ssub.s32 %s12, 2
    %s19 = sadd.s32 %s12, 1
    %s20 = ssub.s32 %s12, %s19
    %p21 = scmp.eq.s32.totalorder %s20, 0
    %s23 = sadd.s32 %s22, 1
    %s24 = scalar_select %p21, %s22, %s23
    %p27 = pneg %p21
    %p28 = scmp.eq.s32.totalorder %s12, 1
    %p29 = por %p27, %p28
    %p30 = scmp.ne.s32.totalorder %s22, %s25
    %p31 = scmp.eq.s32.totalorder %s12, 0
    %p32 = por %p30, %p31
    %p33 = scmp.ne.s32.totalorder %s22, %s25
    %p34 = scmp.eq.s32.totalorder %s17, 1
    %p35 = por %p33, %p34
    %p36 = scmp.ne.s32.totalorder %s25, %s26
    %p37 = scmp.eq.s32.totalorder %s17, 0
    %p38 = por %p36, %p37
    %p39 = scmp.ne.s32.totalorder %s25, %s26
    %p40 = scmp.eq.s32.totalorder %s18, 1
    %p41 = por %p39, %p40
    %p43 = scmp.ne.s32.totalorder %s26, %s42
    %p44 = scmp.eq.s32.totalorder %s18, 0
    %p45 = por %p43, %p44
    %s47 = sadd.s32 %s46, 1
    %p50 = scmp.eq.s32.totalorder %s12, 1
    %p51 = scmp.ne.s32.totalorder %s46, %s48
    %p52 = scmp.eq.s32.totalorder %s12, 0
    %p53 = por %p51, %p52
    %p54 = scmp.ne.s32.totalorder %s46, %s48
    %p55 = scmp.eq.s32.totalorder %s17, 1
    %p56 = por %p54, %p55
    %p57 = scmp.ne.s32.totalorder %s48, %s49
    %p58 = scmp.eq.s32.totalorder %s17, 0
    %p59 = por %p57, %p58
    %p60 = scmp.ne.s32.totalorder %s48, %s49
    %p61 = scmp.eq.s32.totalorder %s18, 1
    %p62 = por %p60, %p61
    %p64 = scmp.ne.s32.totalorder %s49, %s63
    %p65 = scmp.eq.s32.totalorder %s18, 0
    %p66 = por %p64, %p65
    %s68 = sadd.s32 %s67, 1
    %p71 = scmp.eq.s32.totalorder %s12, 1
    %p72 = scmp.ne.s32.totalorder %s67, %s69
    %p73 = scmp.eq.s32.totalorder %s12, 0
    %p74 = por %p72, %p73
    %p75 = scmp.ne.s32.totalorder %s67, %s69
    %p76 = scmp.eq.s32.totalorder %s17, 1
    %p77 = por %p75, %p76
    %p78 = scmp.ne.s32.totalorder %s69, %s70
    %p79 = scmp.eq.s32.totalorder %s17, 0
    %p80 = por %p78, %p79
    %p81 = scmp.ne.s32.totalorder %s69, %s70
    %p82 = scmp.eq.s32.totalorder %s18, 1
    %p83 = por %p81, %p82
    %p85 = scmp.ne.s32.totalorder %s70, %s84
    %p86 = scmp.eq.s32.totalorder %s18, 0
    %p87 = por %p85, %p86
    %s89 = sadd.s32 %s88, 1
    %p92 = scmp.eq.s32.totalorder %s12, 1
    %p93 = scmp.ne.s32.totalorder %s88, %s90
    %p94 = scmp.eq.s32.totalorder %s12, 0
    %p95 = por %p93, %p94
    %p96 = scmp.ne.s32.totalorder %s88, %s90
    %p97 = scmp.eq.s32.totalorder %s17, 1
    %p98 = por %p96, %p97
    %p99 = scmp.ne.s32.totalorder %s90, %s91
    %p100 = scmp.eq.s32.totalorder %s17, 0
    %p101 = por %p99, %p100
    %p102 = scmp.ne.s32.totalorder %s90, %s91
    %p103 = scmp.eq.s32.totalorder %s18, 1
    %p104 = por %p102, %p103
    %p106 = scmp.ne.s32.totalorder %s91, %s105
    %p107 = scmp.eq.s32.totalorder %s18, 0
    %p108 = por %p106, %p107
    %s109 = ssub.s32 %s12, %s19
    %p110 = scmp.eq.s32.totalorder %s109, 0
    %s112 = sadd.s32 %s111, 1
    %s113 = scalar_select %p110, %s111, %s112
    %p116 = pneg %p110
    %p117 = scmp.eq.s32.totalorder %s12, 1
    %p118 = por %p116, %p117
    %p119 = scmp.ne.s32.totalorder %s111, %s114
    %p120 = scmp.eq.s32.totalorder %s12, 0
    %p121 = por %p119, %p120
    %p122 = scmp.ne.s32.totalorder %s111, %s114
    %p123 = scmp.eq.s32.totalorder %s17, 1
    %p124 = por %p122, %p123
    %p125 = scmp.ne.s32.totalorder %s114, %s115
    %p126 = scmp.eq.s32.totalorder %s17, 0
    %p127 = por %p125, %p126
    %p128 = scmp.ne.s32.totalorder %s114, %s115
    %p129 = scmp.eq.s32.totalorder %s18, 1
    %p130 = por %p128, %p129
    %p132 = scmp.ne.s32.totalorder %s115, %s131
    %p133 = scmp.eq.s32.totalorder %s18, 0
    %p134 = por %p132, %p133
    %s135 = ssub.s32 %s12, %s19
    %p136 = scmp.eq.s32.totalorder %s135, 0
    %s138 = sadd.s32 %s137, 1
    %s139 = scalar_select %p136, %s137, %s138
    %p142 = pneg %p136
    %p143 = scmp.eq.s32.totalorder %s12, 1
    %p144 = por %p142, %p143
    %p145 = scmp.ne.s32.totalorder %s137, %s140
    %p146 = scmp.eq.s32.totalorder %s12, 0
    %p147 = por %p145, %p146
    %p148 = scmp.ne.s32.totalorder %s137, %s140
    %p149 = scmp.eq.s32.totalorder %s17, 1
    %p150 = por %p148, %p149
    %p151 = scmp.ne.s32.totalorder %s140, %s141
    %p152 = scmp.eq.s32.totalorder %s17, 0
    %p153 = por %p151, %p152
    %p154 = scmp.ne.s32.totalorder %s140, %s141
    %p155 = scmp.eq.s32.totalorder %s18, 1
    %p156 = por %p154, %p155
    %p158 = scmp.ne.s32.totalorder %s141, %s157
    %p159 = scmp.eq.s32.totalorder %s18, 0
    %p160 = por %p158, %p159
    %p161 = scmp.le.s32.totalorder 1, %s12
    %p162 = scmp.lt.s32.totalorder %s12, 3
    %p163 = pnand %p161, %p162
    %p164 = pneg %p163
    // Predicated region
    $region9: #{up_conv_forward.6} parent=5 // pred_check
      _
    $region10: #{up_conv_forward.6} parent=5 // pred_check_branch
      %166 = sbr.rel (%p163) target = $region12
    $region11: #{up_conv_forward.6} parent=5 // pred_region
      %s167 = ssub.s32 %s12, 1
      // Predicated region
      $region13: #{up_conv_forward.6} parent=11 // pred_check
        %p168 = pneg %p59
      $region14: #{up_conv_forward.6} parent=11 // pred_check_branch
        %170 = sbr.rel (%p168) target = $region16
      $region15: #{up_conv_forward.6} parent=11 // pred_region
        _
      $region16: #{up_conv_forward.6} parent=11 // pred_fallthru
        _
      // Predicated region
      $region17: #{up_conv_forward.6} parent=11 // pred_check
        %p171 = pneg %p80
      $region18: #{up_conv_forward.6} parent=11 // pred_check_branch
        %173 = sbr.rel (%p171) target = $region20
      $region19: #{up_conv_forward.6} parent=11 // pred_region
        _
      $region20: #{up_conv_forward.6} parent=11 // pred_fallthru
        _
      // Predicated region
      $region21: #{up_conv_forward.6} parent=11 // pred_check
        %p174 = pneg %p101
      $region22: #{up_conv_forward.6} parent=11 // pred_check_branch
        %176 = sbr.rel (%p174) target = $region24
      $region23: #{up_conv_forward.6} parent=11 // pred_region
        _
      $region24: #{up_conv_forward.6} parent=11 // pred_fallthru
        _
    $region12: #{up_conv_forward.6} parent=5 // pred_fallthru
      _
    %p177 = scmp.lt.s32.totalorder %s12, 2
    // Predicated region
    $region25: #{up_conv_forward.6} parent=5 // pred_check
      %p178 = pneg %p177
    $region26: #{up_conv_forward.6} parent=5 // pred_check_branch
      %180 = sbr.rel (%p178) target = $region28
    $region27: #{up_conv_forward.6} parent=5 // pred_region
      // Predicated region
      $region29: #{up_conv_forward.6} parent=27 // pred_check
        %p181 = pneg %p32
      $region30: #{up_conv_forward.6} parent=27 // pred_check_branch
        %183 = sbr.rel (%p181) target = $region32
      $region31: #{up_conv_forward.6} parent=27 // pred_region
        %p184 = scmp.lt.s32.totalorder %s12, 1
        %s185 = scalar_select %p184, %s12, 1
        %s186 = smul.addr %s185, 3
        %s187 = smul.addr %s186, 8
        %s188 = scalar_lea.vmem %s0, %s187
      $region32: #{up_conv_forward.6} parent=27 // pred_fallthru
        _
    $region28: #{up_conv_forward.6} parent=5 // pred_fallthru
      _
    %p189 = scmp.le.s32.totalorder 1, %s12
    %p190 = scmp.lt.s32.totalorder %s12, 3
    %p191 = pnand %p189, %p190
    %p192 = pneg %p191
    // Predicated region
    $region33: #{up_conv_forward.6} parent=5 // pred_check
      _
    $region34: #{up_conv_forward.6} parent=5 // pred_check_branch
      %194 = sbr.rel (%p191) target = $region36
    $region35: #{up_conv_forward.6} parent=5 // pred_region
      %s195 = ssub.s32 %s12, 1
      %p196 = scmp.lt.s32.totalorder %s17, 1
      %s197 = scalar_select %p196, %s17, 1
      %s198 = smul.addr %s197, 3
      %s199 = smul.addr %s198, 8
      %s200 = scalar_lea.vmem %s0, %s199
      %p201 = pneg %p38
      %p202 = pneg %p35
      %p203 = pneg %p59
      %p204 = pneg %p56
      %p205 = pneg %p80
      %p206 = pneg %p77
      %p207 = pneg %p101
      %p208 = pneg %p98
      %p209 = pneg %p127
      %p210 = pneg %p124
      %p211 = scmp.lt.s32.totalorder %s17, 1
      %s212 = scalar_select %p211, %s17, 1
      %s213 = smul.addr %s212, 2
      %s214 = smul.addr %s213, 8
      %s215 = scalar_lea.vmem %s4, %s214
      %p216 = pneg %p153
      %p217 = pneg %p150
      %p218 = scmp.lt.s32.totalorder %s17, 1
      %s219 = scalar_select %p218, %s17, 1
      %s220 = smul.addr %s219, 2
      %s221 = scalar_lea.vmem %s5, %s220
      %p222 = scmp.lt.s32.totalorder %s17, 1
      %s223 = scalar_select %p222, %s17, 1
      %s224 = smul.addr %s223, 3
      %s225 = smul.addr %s224, 8
      %s226 = scalar_lea.vmem %s0, %s225
      %p227 = scmp.lt.s32.totalorder %s17, 1
      %s228 = scalar_select %p227, %s17, 1
      %s229 = smul.addr %s228, 2
      %s230 = smul.addr %s229, 8
      %s231 = scalar_lea.vmem %s4, %s230
      %p232 = scmp.lt.s32.totalorder %s17, 1
      %s233 = scalar_select %p232, %s17, 1
      %s234 = smul.addr %s233, 2
      %s235 = scalar_lea.vmem %s5, %s234
      %v237 = vld [vmem:[%s226] sm:$0xff]
      %v238 = vld [vmem:[%s226 + $0x8] sm:$0xff]
      %v239 = vld [vmem:[%s226 + $0x10] sm:$0x3]
      %v240 = vld [vmem:[%s2] sm:$0x1]
      %v242 = vlaneseq
      %v243 = vshrl.u32 %v242, 7
      %v244 = vsub.s32 0, %v243
      %v245 = vrot.slane %v240, %v244
      %v247 = vmul.f32 %v237, %v245
      %v248 = vmul.f32 %v238, %v245
      %v249 = vmul.f32 %v239, %v245
      %v250 = vld [vmem:[%s3] sm:$0x1]
      %v252 = vlaneseq
      %v253 = vshrl.u32 %v252, 7
      %v254 = vsub.s32 0, %v253
      %v255 = vrot.slane %v250, %v254
      %v257 = vadd.f32 %v247, %v255
      %v258 = vadd.f32 %v248, %v255
      %v259 = vadd.f32 %v249, %v255
      %v260 = vmax.f32 %v257, 0.0
      %v261 = vmax.f32 %v258, 0.0
      %v262 = vmax.f32 %v259, 0.0
      %v263 = vlaneseq
      %v264 = vshrl.u32 %v263, 7
      %v265 = vadd.s32 %v264, 8
      %v266 = vadd.s32 %v264, 16
      %vm267 = vcmp.ge.s32.totalorder %v264, 1
      %vm268 = vcmp.ge.s32.totalorder %v265, 1
      %vm269 = vcmp.ge.s32.totalorder %v266, 1
      %vm270 = vcmp.le.s32.totalorder %v264, 16
      %vm271 = vcmp.le.s32.totalorder %v265, 16
      %vm272 = vcmp.le.s32.totalorder %v266, 16
      %vm273 = vmand %vm267, %vm270
      %vm274 = vmand %vm268, %vm271
      %vm275 = vmand %vm269, %vm272
      %v276 = vsel %vm273, %v260, 0.0
      %v277 = vsel %vm274, %v261, 0.0
      %v278 = vsel %vm275, %v262, 0.0
      %v279 = vpack.c.bf16 %v277, %v276
      %v280 = vpack.c.bf16 %v278, %v278
      %v281 = vld [vmem:[%s1] sm:$0xf]
      %v282 = vld [vmem:[%s1 + $0x4] sm:$0xf]
      %v283 = vld [vmem:[%s1 + $0x8] sm:$0xf]
      %v284 = vld [vmem:[%s1 + $0xc] sm:$0xf]
      %v285 = vld [vmem:[%s1 + $0x10] sm:$0xf]
      %v286 = vld [vmem:[%s1 + $0x14] sm:$0xf]
      %v287 = vld [vmem:[%s1 + $0x18] sm:$0xf]
      %v288 = vld [vmem:[%s1 + $0x1c] sm:$0xf]
      %v289 = vld [vmem:[%s1 + $0x20] sm:$0xf]
      %v290 = vld [vmem:[%s1 + $0x24] sm:$0xf]
      %v291 = vld [vmem:[%s1 + $0x28] sm:$0xf]
      %v292 = vld [vmem:[%s1 + $0x2c] sm:$0xf]
      %v293 = vld [vmem:[%s1 + $0x30] sm:$0xf]
      %v294 = vld [vmem:[%s1 + $0x34] sm:$0xf]
      %v295 = vld [vmem:[%s1 + $0x38] sm:$0xf]
      %v296 = vld [vmem:[%s1 + $0x3c] sm:$0xf]
      %s297 = scalar_lea.vmem %s1, 64
      %v298 = vld [vmem:[%s297] sm:$0xf]
      %v299 = vld [vmem:[%s297 + $0x4] sm:$0xf]
      %v300 = vld [vmem:[%s297 + $0x8] sm:$0xf]
      %v301 = vld [vmem:[%s297 + $0xc] sm:$0xf]
      %v302 = vld [vmem:[%s297 + $0x10] sm:$0xf]
      %v303 = vld [vmem:[%s297 + $0x14] sm:$0xf]
      %v304 = vld [vmem:[%s297 + $0x18] sm:$0xf]
      %v305 = vld [vmem:[%s297 + $0x1c] sm:$0xf]
      %v306 = vld [vmem:[%s297 + $0x20] sm:$0xf]
      %v307 = vld [vmem:[%s297 + $0x24] sm:$0xf]
      %v308 = vld [vmem:[%s297 + $0x28] sm:$0xf]
      %v309 = vld [vmem:[%s297 + $0x2c] sm:$0xf]
      %v310 = vld [vmem:[%s297 + $0x30] sm:$0xf]
      %v311 = vld [vmem:[%s297 + $0x34] sm:$0xf]
      %v312 = vld [vmem:[%s297 + $0x38] sm:$0xf]
      %v313 = vld [vmem:[%s297 + $0x3c] sm:$0xf]
      %vm314 = vsmask.f32 7424
      %v316 = vshrl.u32 %v279, 16
      %v318 = vshll.u32 %v279, 16
      %v320 = vrot.slane %v318, 1
      %v321 = vor.u32 %v316, %v320
      %v323 = vshll.u32 %v280, 16
      %v325 = vrot.slane %v323, 1
      %v326 = vsel %vm314, %v321, %v325
      %v344 = vunpack.c.l.b16 %v298
      %v345 = vunpack.c.l.b16 %v299
      %v346 = vunpack.c.l.b16 %v300
      %v347 = vunpack.c.l.b16 %v301
      %v348 = vunpack.c.l.b16 %v302
      %v349 = vunpack.c.l.b16 %v303
      %v350 = vunpack.c.l.b16 %v304
      %v351 = vunpack.c.l.b16 %v305
      %v352 = vunpack.c.l.b16 %v306
      %v353 = vunpack.c.l.b16 %v307
      %v354 = vunpack.c.l.b16 %v308
      %v355 = vunpack.c.l.b16 %v309
      %v356 = vunpack.c.l.b16 %v310
      %v357 = vunpack.c.l.b16 %v311
      %v358 = vunpack.c.l.b16 %v312
      %v359 = vunpack.c.l.b16 %v313
      %v360 = vpack.c.b16 %v345, %v344
      %v361 = vpack.c.b16 %v347, %v346
      %v362 = vpack.c.b16 %v349, %v348
      %v363 = vpack.c.b16 %v351, %v350
      %v364 = vpack.c.b16 %v353, %v352
      %v365 = vpack.c.b16 %v355, %v354
      %v366 = vpack.c.b16 %v357, %v356
      %v367 = vpack.c.b16 %v359, %v358
      %376 = vmatprep.subr.bf16.mxu0 0
      %377 = vmatpush1.bf16.msra.mxu0 %v367
      %378 = vmatprep.subr.bf16.mxu0 0
      %379 = vmatpush1.bf16.msra.mxu0 %v366
      %380 = vmatprep.subr.bf16.mxu0 0
      %381 = vmatpush1.bf16.msra.mxu0 %v365
      %382 = vmatprep.subr.bf16.mxu0 0
      %383 = vmatpush1.bf16.msra.mxu0 %v364
      %384 = vmatprep.subr.bf16.mxu0 0
      %385 = vmatpush1.bf16.msra.mxu0 %v363
      %386 = vmatprep.subr.bf16.mxu0 0
      %387 = vmatpush1.bf16.msra.mxu0 %v362
      %388 = vmatprep.subr.bf16.mxu0 0
      %389 = vmatpush1.bf16.msra.mxu0 %v361
      %390 = vmatprep.subr.bf16.mxu0 0
      %391 = vmatpush1.bf16.msra.mxu0 %v360
      %392 = vmatprep.subr.bf16.mxu0 0
      %393 = vmatpush2.bf16.msra.mxu0 0
      %394 = vmatprep.subr.bf16.mxu0 0
      %395 = vmatpush2.bf16.msra.mxu0 0
      %396 = vmatprep.subr.bf16.mxu0 0
      %397 = vmatpush2.bf16.msra.mxu0 0
      %398 = vmatprep.subr.bf16.mxu0 0
      %399 = vmatpush2.bf16.msra.mxu0 0
      %400 = vmatprep.subr.bf16.mxu0 0
      %401 = vmatpush2.bf16.msra.mxu0 0
      %402 = vmatprep.subr.bf16.mxu0 0
      %403 = vmatpush2.bf16.msra.mxu0 0
      %404 = vmatprep.subr.bf16.mxu0 0
      %405 = vmatpush2.bf16.msra.mxu0 0
      %406 = vmatprep.subr.bf16.mxu0 0
      %407 = vmatpush2.bf16.msra.mxu0 0
      %408 = vmatprep.mubr.bf16.mxu0 0
      %409 = vmatmul.mubr.bf16.gmra.mxu0 %v326
      %v410 = vpop.f32.mrf.mxu0
      %v411 = vadd.f32 0.0, %v410
      %v412 = vpop.f32.mrf.mxu0
      %v413 = vpop.f32.mrf.mxu0
      %v414 = vadd.f32 0.0, %v413
      %v415 = vpop.f32.mrf.mxu0
      %416 = vdwg.mxu0
      %v433 = vunpack.c.l.b16 %v281
      %v434 = vunpack.c.l.b16 %v282
      %v435 = vunpack.c.l.b16 %v283
      %v436 = vunpack.c.l.b16 %v284
      %v437 = vunpack.c.l.b16 %v285
      %v438 = vunpack.c.l.b16 %v286
      %v439 = vunpack.c.l.b16 %v287
      %v440 = vunpack.c.l.b16 %v288
      %v441 = vunpack.c.l.b16 %v289
      %v442 = vunpack.c.l.b16 %v290
      %v443 = vunpack.c.l.b16 %v291
      %v444 = vunpack.c.l.b16 %v292
      %v445 = vunpack.c.l.b16 %v293
      %v446 = vunpack.c.l.b16 %v294
      %v447 = vunpack.c.l.b16 %v295
      %v448 = vunpack.c.l.b16 %v296
      %v449 = vpack.c.b16 %v434, %v433
      %v450 = vpack.c.b16 %v436, %v435
      %v451 = vpack.c.b16 %v438, %v437
      %v452 = vpack.c.b16 %v440, %v439
      %v453 = vpack.c.b16 %v442, %v441
      %v454 = vpack.c.b16 %v444, %v443
      %v455 = vpack.c.b16 %v446, %v445
      %v456 = vpack.c.b16 %v448, %v447
      %465 = vmatprep.subr.bf16.mxu0 0
      %466 = vmatpush1.bf16.msra.mxu0 %v456
      %467 = vmatprep.subr.bf16.mxu0 0
      %468 = vmatpush1.bf16.msra.mxu0 %v455
      %469 = vmatprep.subr.bf16.mxu0 0
      %470 = vmatpush1.bf16.msra.mxu0 %v454
      %471 = vmatprep.subr.bf16.mxu0 0
      %472 = vmatpush1.bf16.msra.mxu0 %v453
      %473 = vmatprep.subr.bf16.mxu0 0
      %474 = vmatpush1.bf16.msra.mxu0 %v452
      %475 = vmatprep.subr.bf16.mxu0 0
      %476 = vmatpush1.bf16.msra.mxu0 %v451
      %477 = vmatprep.subr.bf16.mxu0 0
      %478 = vmatpush1.bf16.msra.mxu0 %v450
      %479 = vmatprep.subr.bf16.mxu0 0
      %480 = vmatpush1.bf16.msra.mxu0 %v449
      %481 = vmatprep.subr.bf16.mxu0 0
      %482 = vmatpush2.bf16.msra.mxu0 0
      %483 = vmatprep.subr.bf16.mxu0 0
      %484 = vmatpush2.bf16.msra.mxu0 0
      %485 = vmatprep.subr.bf16.mxu0 0
      %486 = vmatpush2.bf16.msra.mxu0 0
      %487 = vmatprep.subr.bf16.mxu0 0
      %488 = vmatpush2.bf16.msra.mxu0 0
      %489 = vmatprep.subr.bf16.mxu0 0
      %490 = vmatpush2.bf16.msra.mxu0 0
      %491 = vmatprep.subr.bf16.mxu0 0
      %492 = vmatpush2.bf16.msra.mxu0 0
      %493 = vmatprep.subr.bf16.mxu0 0
      %494 = vmatpush2.bf16.msra.mxu0 0
      %495 = vmatprep.subr.bf16.mxu0 0
      %496 = vmatpush2.bf16.msra.mxu0 0
      %497 = vmatprep.mubr.bf16.mxu0 0
      %498 = vmatmul.mubr.bf16.gmra.mxu0 %v279
      %v499 = vpop.f32.mrf.mxu0
      %v500 = vadd.f32 %v411, %v499
      %v501 = vpop.f32.mrf.mxu0
      %v502 = vpop.f32.mrf.mxu0
      %v503 = vadd.f32 %v414, %v502
      %v504 = vpop.f32.mrf.mxu0
      %505 = vdwg.mxu0
      %s506 = scalar_lea.vmem %s1, 128
      %v507 = vld [vmem:[%s506] sm:$0xf]
      %v508 = vld [vmem:[%s506 + $0x4] sm:$0xf]
      %v509 = vld [vmem:[%s506 + $0x8] sm:$0xf]
      %v510 = vld [vmem:[%s506 + $0xc] sm:$0xf]
      %v511 = vld [vmem:[%s506 + $0x10] sm:$0xf]
      %v512 = vld [vmem:[%s506 + $0x14] sm:$0xf]
      %v513 = vld [vmem:[%s506 + $0x18] sm:$0xf]
      %v514 = vld [vmem:[%s506 + $0x1c] sm:$0xf]
      %v515 = vld [vmem:[%s506 + $0x20] sm:$0xf]
      %v516 = vld [vmem:[%s506 + $0x24] sm:$0xf]
      %v517 = vld [vmem:[%s506 + $0x28] sm:$0xf]
      %v518 = vld [vmem:[%s506 + $0x2c] sm:$0xf]
      %v519 = vld [vmem:[%s506 + $0x30] sm:$0xf]
      %v520 = vld [vmem:[%s506 + $0x34] sm:$0xf]
      %v521 = vld [vmem:[%s506 + $0x38] sm:$0xf]
      %v522 = vld [vmem:[%s506 + $0x3c] sm:$0xf]
      %vm525 = vcmask 1046528
      %v526 = vrot.slane %v279, 1
      %v527 = vrot.slane %v280, 1
      %v528 = vsel %vm525, %v526, %v527
      %v546 = vunpack.c.l.b16 %v507
      %v547 = vunpack.c.l.b16 %v508
      %v548 = vunpack.c.l.b16 %v509
      %v549 = vunpack.c.l.b16 %v510
      %v550 = vunpack.c.l.b16 %v511
      %v551 = vunpack.c.l.b16 %v512
      %v552 = vunpack.c.l.b16 %v513
      %v553 = vunpack.c.l.b16 %v514
      %v554 = vunpack.c.l.b16 %v515
      %v555 = vunpack.c.l.b16 %v516
      %v556 = vunpack.c.l.b16 %v517
      %v557 = vunpack.c.l.b16 %v518
      %v558 = vunpack.c.l.b16 %v519
      %v559 = vunpack.c.l.b16 %v520
      %v560 = vunpack.c.l.b16 %v521
      %v561 = vunpack.c.l.b16 %v522
      %v562 = vpack.c.b16 %v547, %v546
      %v563 = vpack.c.b16 %v549, %v548
      %v564 = vpack.c.b16 %v551, %v550
      %v565 = vpack.c.b16 %v553, %v552
      %v566 = vpack.c.b16 %v555, %v554
      %v567 = vpack.c.b16 %v557, %v556
      %v568 = vpack.c.b16 %v559, %v558
      %v569 = vpack.c.b16 %v561, %v560
      %578 = vmatprep.subr.bf16.mxu0 0
      %579 = vmatpush1.bf16.msra.mxu0 %v569
      %580 = vmatprep.subr.bf16.mxu0 0
      %581 = vmatpush1.bf16.msra.mxu0 %v568
      %582 = vmatprep.subr.bf16.mxu0 0
      %583 = vmatpush1.bf16.msra.mxu0 %v567
      %584 = vmatprep.subr.bf16.mxu0 0
      %585 = vmatpush1.bf16.msra.mxu0 %v566
      %586 = vmatprep.subr.bf16.mxu0 0
      %587 = vmatpush1.bf16.msra.mxu0 %v565
      %588 = vmatprep.subr.bf16.mxu0 0
      %589 = vmatpush1.bf16.msra.mxu0 %v564
      %590 = vmatprep.subr.bf16.mxu0 0
      %591 = vmatpush1.bf16.msra.mxu0 %v563
      %592 = vmatprep.subr.bf16.mxu0 0
      %593 = vmatpush1.bf16.msra.mxu0 %v562
      %594 = vmatprep.subr.bf16.mxu0 0
      %595 = vmatpush2.bf16.msra.mxu0 0
      %596 = vmatprep.subr.bf16.mxu0 0
      %597 = vmatpush2.bf16.msra.mxu0 0
      %598 = vmatprep.subr.bf16.mxu0 0
      %599 = vmatpush2.bf16.msra.mxu0 0
      %600 = vmatprep.subr.bf16.mxu0 0
      %601 = vmatpush2.bf16.msra.mxu0 0
      %602 = vmatprep.subr.bf16.mxu0 0
      %603 = vmatpush2.bf16.msra.mxu0 0
      %604 = vmatprep.subr.bf16.mxu0 0
      %605 = vmatpush2.bf16.msra.mxu0 0
      %606 = vmatprep.subr.bf16.mxu0 0
      %607 = vmatpush2.bf16.msra.mxu0 0
      %608 = vmatprep.subr.bf16.mxu0 0
      %609 = vmatpush2.bf16.msra.mxu0 0
      %610 = vmatprep.mubr.bf16.mxu0 0
      %611 = vmatmul.mubr.bf16.gmra.mxu0 %v528
      %v612 = vpop.f32.mrf.mxu0
      %v613 = vadd.f32 0.0, %v612
      %v614 = vpop.f32.mrf.mxu0
      %v615 = vpop.f32.mrf.mxu0
      %v616 = vadd.f32 0.0, %v615
      %v617 = vpop.f32.mrf.mxu0
      %618 = vdwg.mxu0
      %v619 = vadd.f32 %v500, %v613
      %v620 = vadd.f32 %v503, %v616
      %621 = vst [vmem:[%s231] sm:$0xff] %v619
      %622 = vst [vmem:[%s231 + $0x8] sm:$0xff] %v620
      %v623 = vadd.f32 %v619, %v620
      %v624 = vrot.slane %v623, 4
      %v625 = vadd.f32 %v623, %v624
      %v626 = vrot.slane %v625, 2
      %v627 = vadd.f32 %v625, %v626
      %v628 = vrot.slane %v627, 1
      %v629 = vadd.f32 %v627, %v628
      %v630 = vmul.f32 %v619, %v619
      %v631 = vmul.f32 %v620, %v620
      %v632 = vadd.f32 %v630, %v631
      %v633 = vrot.slane %v632, 4
      %v634 = vadd.f32 %v632, %v633
      %v635 = vrot.slane %v634, 2
      %v636 = vadd.f32 %v634, %v635
      %v637 = vrot.slane %v636, 1
      %v638 = vadd.f32 %v636, %v637
      %vm639 = vcmask 1040384
      %v640 = vsel %vm639, %v629, %v638
      %641 = vst [vmem:[%s235] sm:$0x3] %v640
      %p642 = scmp.lt.s32.totalorder %s17, 1
      %s643 = scalar_select %p642, %s17, 1
      %s644 = smul.addr %s643, 2
      %s645 = smul.addr %s644, 8
      %s646 = scalar_lea.vmem %s4, %s645
      %p647 = scmp.lt.s32.totalorder %s17, 1
      %s648 = scalar_select %p647, %s17, 1
      %s649 = smul.addr %s648, 2
      %s650 = scalar_lea.vmem %s5, %s649
      // Predicated region
      $region37: #{up_conv_forward.6} parent=35 // pred_check
        %p651 = pneg %p124
      $region38: #{up_conv_forward.6} parent=35 // pred_check_branch
        %653 = sbr.rel (%p651) target = $region40
      $region39: #{up_conv_forward.6} parent=35 // pred_region
        _
      $region40: #{up_conv_forward.6} parent=35 // pred_fallthru
        _
      // Predicated region
      $region41: #{up_conv_forward.6} parent=35 // pred_check
        %p654 = pneg %p150
      $region42: #{up_conv_forward.6} parent=35 // pred_check_branch
        %656 = sbr.rel (%p654) target = $region44
      $region43: #{up_conv_forward.6} parent=35 // pred_region
        _
      $region44: #{up_conv_forward.6} parent=35 // pred_fallthru
        _
    $region36: #{up_conv_forward.6} parent=5 // pred_fallthru
      _
    %p657 = scmp.le.s32.totalorder 2, %s12
    // Predicated region
    $region45: #{up_conv_forward.6} parent=5 // pred_check
      %p658 = pneg %p657
    $region46: #{up_conv_forward.6} parent=5 // pred_check_branch
      %660 = sbr.rel (%p658) target = $region48
    $region47: #{up_conv_forward.6} parent=5 // pred_region
      %s661 = ssub.s32 %s12, 2
      // Predicated region
      $region49: #{up_conv_forward.6} parent=47 // pred_check
        %p662 = pneg %p130
      $region50: #{up_conv_forward.6} parent=47 // pred_check_branch
        %664 = sbr.rel (%p662) target = $region52
      $region51: #{up_conv_forward.6} parent=47 // pred_region
        %p665 = scmp.lt.s32.totalorder %s18, 1
        %s666 = scalar_select %p665, %s18, 1
        %s667 = smul.addr %s666, 2
        %s668 = smul.addr %s667, 8
        %s669 = scalar_lea.vmem %s4, %s668
      $region52: #{up_conv_forward.6} parent=47 // pred_fallthru
        _
      // Predicated region
      $region53: #{up_conv_forward.6} parent=47 // pred_check
        %p670 = pneg %p156
      $region54: #{up_conv_forward.6} parent=47 // pred_check_branch
        %672 = sbr.rel (%p670) target = $region56
      $region55: #{up_conv_forward.6} parent=47 // pred_region
        %p673 = scmp.lt.s32.totalorder %s18, 1
        %s674 = scalar_select %p673, %s18, 1
        %s675 = smul.addr %s674, 2
        %s676 = scalar_lea.vmem %s5, %s675
      $region56: #{up_conv_forward.6} parent=47 // pred_fallthru
        _
    $region48: #{up_conv_forward.6} parent=5 // pred_fallthru
      _
  $region6: #{up_conv_forward.6} parent=0 // loop_footer
    %s16 = sadd.s32 1, %s12
  $region7: #{up_conv_forward.6} parent=0 // loop_footer_branch
    %11 = sbr.rel target = $region3
  $region8: #{up_conv_forward.6} parent=0 // loop_exit
    _

// kernel: up_conv_forward.5
$region0: #{up_conv_forward.5}
  #allocation0 [shape = 'u32[]', space=smem, size = 0x4, offset = 0x4, fixed_abs, tag = 'smem constant byte address 0x4 - core index']
  #allocation1 [shape = 'u32[144,128]{1,0:T(1,128)}', space=vmem, size = 0x12000, scoped, tag = 'internal scratch']
  %s0 = inlined_call_operand.vmem [shape: f32[2,18,64], index: 0, kind: input, shape index: {}]
  %s1 = inlined_call_operand.vmem [shape: f32[2,18,128], index: 1, kind: input, shape index: {}]
  %s2 = inlined_call_operand.vmem [shape: bf16[3,64,128], index: 2, kind: input, shape index: {}]
  %s3 = inlined_call_operand.vmem [shape: bf16[3,128,128], index: 3, kind: input, shape index: {}]
  %s4 = inlined_call_operand.vmem [shape: f32[1,64], index: 4, kind: input, shape index: {}]
  %s5 = inlined_call_operand.vmem [shape: f32[1,128], index: 5, kind: input, shape index: {}]
  %s6 = inlined_call_operand.vmem [shape: f32[1,64], index: 6, kind: input, shape index: {}]
  %s7 = inlined_call_operand.vmem [shape: f32[1,128], index: 7, kind: input, shape index: {}]
  %s8 = inlined_call_operand.vmem [shape: f32[2,16,128], index: 8, kind: output, shape index: {0}]
  %s9 = inlined_call_operand.vmem [shape: f32[2,2,128], index: 9, kind: output, shape index: {1}]
  %10 = xla_tuple %s8, %s9
  %s11 = sld [smem:[#allocation0]]
  $region73: #{up_conv_forward.5} parent=0
    _
  %s13 = ssub.s32 1, %s11
  %s14 = scalar_select 0, %s13, %s11
  loop: start=0, step=1, limit=4
  $region2: #{up_conv_forward.5} parent=0 // loop_pre_header
    _
  $region3: #{up_conv_forward.5} parent=0 // loop_header
    %s16 = sphi 0, %s20
    %p17 = scmp.ge.s32.totalorder %s16, 4
    %s26 = sphi 0, %s28
    %s29 = sphi 0, %s26
    %s30 = sphi 0, %s29
    %s46 = sphi 0, %s30
    %s52 = sphi 0, %s54
    %s55 = sphi 0, %s52
    %s56 = sphi 0, %s55
    %s72 = sphi 0, %s56
    %s76 = sphi 0, %s76
    %s78 = sphi 0, %s76
    %s79 = sphi 0, %s78
    %s93 = sphi 0, %s79
    %s97 = sphi 0, %s97
    %s99 = sphi 0, %s97
    %s100 = sphi 0, %s99
    %s114 = sphi 0, %s100
    %s118 = sphi 0, %s118
    %s120 = sphi 0, %s118
    %s121 = sphi 0, %s120
    %s135 = sphi 0, %s121
    %s139 = sphi 0, %s139
    %s141 = sphi 0, %s139
    %s142 = sphi 0, %s141
    %s156 = sphi 0, %s142
    %s160 = sphi 0, %s160
    %s162 = sphi 0, %s160
    %s163 = sphi 0, %s162
    %s177 = sphi 0, %s163
    %s181 = sphi 0, %s181
    %s183 = sphi 0, %s181
    %s184 = sphi 0, %s183
    %s198 = sphi 0, %s184
    %s204 = sphi 0, %s206
    %s207 = sphi 0, %s204
    %s208 = sphi 0, %s207
    %s224 = sphi 0, %s208
    %s230 = sphi 0, %s232
    %s233 = sphi 0, %s230
    %s234 = sphi 0, %s233
    %s250 = sphi 0, %s234
  $region4: #{up_conv_forward.5} parent=0 // loop_header_branch
    %19 = sbr.rel (%p17) target = $region8
  $region5: #{up_conv_forward.5} parent=0 // loop_body
    %s21 = ssub.s32 %s16, 1
    %s22 = ssub.s32 %s16, 2
    %s23 = sadd.s32 %s16, 1
    %s24 = ssub.s32 %s16, %s23
    %p25 = scmp.eq.s32.totalorder %s24, 0
    %s27 = sadd.s32 %s26, 1
    %s28 = scalar_select %p25, %s26, %s27
    %p31 = pneg %p25
    %p32 = scmp.eq.s32.totalorder %s16, 1
    %p33 = por %p31, %p32
    %p34 = scmp.ne.s32.totalorder %s26, %s29
    %p35 = scmp.eq.s32.totalorder %s16, 0
    %p36 = por %p34, %p35
    %p37 = scmp.ne.s32.totalorder %s26, %s29
    %p38 = scmp.eq.s32.totalorder %s21, 1
    %p39 = por %p37, %p38
    %p40 = scmp.ne.s32.totalorder %s29, %s30
    %p41 = scmp.eq.s32.totalorder %s21, 0
    %p42 = por %p40, %p41
    %p43 = scmp.ne.s32.totalorder %s29, %s30
    %p44 = scmp.eq.s32.totalorder %s22, 1
    %p45 = por %p43, %p44
    %p47 = scmp.ne.s32.totalorder %s30, %s46
    %p48 = scmp.eq.s32.totalorder %s22, 0
    %p49 = por %p47, %p48
    %s50 = ssub.s32 %s16, %s23
    %p51 = scmp.eq.s32.totalorder %s50, 0
    %s53 = sadd.s32 %s52, 1
    %s54 = scalar_select %p51, %s52, %s53
    %p57 = pneg %p51
    %p58 = scmp.eq.s32.totalorder %s16, 1
    %p59 = por %p57, %p58
    %p60 = scmp.ne.s32.totalorder %s52, %s55
    %p61 = scmp.eq.s32.totalorder %s16, 0
    %p62 = por %p60, %p61
    %p63 = scmp.ne.s32.totalorder %s52, %s55
    %p64 = scmp.eq.s32.totalorder %s21, 1
    %p65 = por %p63, %p64
    %p66 = scmp.ne.s32.totalorder %s55, %s56
    %p67 = scmp.eq.s32.totalorder %s21, 0
    %p68 = por %p66, %p67
    %p69 = scmp.ne.s32.totalorder %s55, %s56
    %p70 = scmp.eq.s32.totalorder %s22, 1
    %p71 = por %p69, %p70
    %p73 = scmp.ne.s32.totalorder %s56, %s72
    %p74 = scmp.eq.s32.totalorder %s22, 0
    %p75 = por %p73, %p74
    %s77 = sadd.s32 %s76, 1
    %p80 = scmp.eq.s32.totalorder %s16, 1
    %p81 = scmp.ne.s32.totalorder %s76, %s78
    %p82 = scmp.eq.s32.totalorder %s16, 0
    %p83 = por %p81, %p82
    %p84 = scmp.ne.s32.totalorder %s76, %s78
    %p85 = scmp.eq.s32.totalorder %s21, 1
    %p86 = por %p84, %p85
    %p87 = scmp.ne.s32.totalorder %s78, %s79
    %p88 = scmp.eq.s32.totalorder %s21, 0
    %p89 = por %p87, %p88
    %p90 = scmp.ne.s32.totalorder %s78, %s79
    %p91 = scmp.eq.s32.totalorder %s22, 1
    %p92 = por %p90, %p91
    %p94 = scmp.ne.s32.totalorder %s79, %s93
    %p95 = scmp.eq.s32.totalorder %s22, 0
    %p96 = por %p94, %p95
    %s98 = sadd.s32 %s97, 1
    %p101 = scmp.eq.s32.totalorder %s16, 1
    %p102 = scmp.ne.s32.totalorder %s97, %s99
    %p103 = scmp.eq.s32.totalorder %s16, 0
    %p104 = por %p102, %p103
    %p105 = scmp.ne.s32.totalorder %s97, %s99
    %p106 = scmp.eq.s32.totalorder %s21, 1
    %p107 = por %p105, %p106
    %p108 = scmp.ne.s32.totalorder %s99, %s100
    %p109 = scmp.eq.s32.totalorder %s21, 0
    %p110 = por %p108, %p109
    %p111 = scmp.ne.s32.totalorder %s99, %s100
    %p112 = scmp.eq.s32.totalorder %s22, 1
    %p113 = por %p111, %p112
    %p115 = scmp.ne.s32.totalorder %s100, %s114
    %p116 = scmp.eq.s32.totalorder %s22, 0
    %p117 = por %p115, %p116
    %s119 = sadd.s32 %s118, 1
    %p122 = scmp.eq.s32.totalorder %s16, 1
    %p123 = scmp.ne.s32.totalorder %s118, %s120
    %p124 = scmp.eq.s32.totalorder %s16, 0
    %p125 = por %p123, %p124
    %p126 = scmp.ne.s32.totalorder %s118, %s120
    %p127 = scmp.eq.s32.totalorder %s21, 1
    %p128 = por %p126, %p127
    %p129 = scmp.ne.s32.totalorder %s120, %s121
    %p130 = scmp.eq.s32.totalorder %s21, 0
    %p131 = por %p129, %p130
    %p132 = scmp.ne.s32.totalorder %s120, %s121
    %p133 = scmp.eq.s32.totalorder %s22, 1
    %p134 = por %p132, %p133
    %p136 = scmp.ne.s32.totalorder %s121, %s135
    %p137 = scmp.eq.s32.totalorder %s22, 0
    %p138 = por %p136, %p137
    %s140 = sadd.s32 %s139, 1
    %p143 = scmp.eq.s32.totalorder %s16, 1
    %p144 = scmp.ne.s32.totalorder %s139, %s141
    %p145 = scmp.eq.s32.totalorder %s16, 0
    %p146 = por %p144, %p145
    %p147 = scmp.ne.s32.totalorder %s139, %s141
    %p148 = scmp.eq.s32.totalorder %s21, 1
    %p149 = por %p147, %p148
    %p150 = scmp.ne.s32.totalorder %s141, %s142
    %p151 = scmp.eq.s32.totalorder %s21, 0
    %p152 = por %p150, %p151
    %p153 = scmp.ne.s32.totalorder %s141, %s142
    %p154 = scmp.eq.s32.totalorder %s22, 1
    %p155 = por %p153, %p154
    %p157 = scmp.ne.s32.totalorder %s142, %s156
    %p158 = scmp.eq.s32.totalorder %s22, 0
    %p159 = por %p157, %p158
    %s161 = sadd.s32 %s160, 1
    %p164 = scmp.eq.s32.totalorder %s16, 1
    %p165 = scmp.ne.s32.totalorder %s160, %s162
    %p166 = scmp.eq.s32.totalorder %s16, 0
    %p167 = por %p165, %p166
    %p168 = scmp.ne.s32.totalorder %s160, %s162
    %p169 = scmp.eq.s32.totalorder %s21, 1
    %p170 = por %p168, %p169
    %p171 = scmp.ne.s32.totalorder %s162, %s163
    %p172 = scmp.eq.s32.totalorder %s21, 0
    %p173 = por %p171, %p172
    %p174 = scmp.ne.s32.totalorder %s162, %s163
    %p175 = scmp.eq.s32.totalorder %s22, 1
    %p176 = por %p174, %p175
    %p178 = scmp.ne.s32.totalorder %s163, %s177
    %p179 = scmp.eq.s32.totalorder %s22, 0
    %p180 = por %p178, %p179
    %s182 = sadd.s32 %s181, 1
    %p185 = scmp.eq.s32.totalorder %s16, 1
    %p186 = scmp.ne.s32.totalorder %s181, %s183
    %p187 = scmp.eq.s32.totalorder %s16, 0
    %p188 = por %p186, %p187
    %p189 = scmp.ne.s32.totalorder %s181, %s183
    %p190 = scmp.eq.s32.totalorder %s21, 1
    %p191 = por %p189, %p190
    %p192 = scmp.ne.s32.totalorder %s183, %s184
    %p193 = scmp.eq.s32.totalorder %s21, 0
    %p194 = por %p192, %p193
    %p195 = scmp.ne.s32.totalorder %s183, %s184
    %p196 = scmp.eq.s32.totalorder %s22, 1
    %p197 = por %p195, %p196
    %p199 = scmp.ne.s32.totalorder %s184, %s198
    %p200 = scmp.eq.s32.totalorder %s22, 0
    %p201 = por %p199, %p200
    %s202 = ssub.s32 %s16, %s23
    %p203 = scmp.eq.s32.totalorder %s202, 0
    %s205 = sadd.s32 %s204, 1
    %s206 = scalar_select %p203, %s204, %s205
    %p209 = pneg %p203
    %p210 = scmp.eq.s32.totalorder %s16, 1
    %p211 = por %p209, %p210
    %p212 = scmp.ne.s32.totalorder %s204, %s207
    %p213 = scmp.eq.s32.totalorder %s16, 0
    %p214 = por %p212, %p213
    %p215 = scmp.ne.s32.totalorder %s204, %s207
    %p216 = scmp.eq.s32.totalorder %s21, 1
    %p217 = por %p215, %p216
    %p218 = scmp.ne.s32.totalorder %s207, %s208
    %p219 = scmp.eq.s32.totalorder %s21, 0
    %p220 = por %p218, %p219
    %p221 = scmp.ne.s32.totalorder %s207, %s208
    %p222 = scmp.eq.s32.totalorder %s22, 1
    %p223 = por %p221, %p222
    %p225 = scmp.ne.s32.totalorder %s208, %s224
    %p226 = scmp.eq.s32.totalorder %s22, 0
    %p227 = por %p225, %p226
    %s228 = ssub.s32 %s16, %s23
    %p229 = scmp.eq.s32.totalorder %s228, 0
    %s231 = sadd.s32 %s230, 1
    %s232 = scalar_select %p229, %s230, %s231
    %p235 = pneg %p229
    %p236 = scmp.eq.s32.totalorder %s16, 1
    %p237 = por %p235, %p236
    %p238 = scmp.ne.s32.totalorder %s230, %s233
    %p239 = scmp.eq.s32.totalorder %s16, 0
    %p240 = por %p238, %p239
    %p241 = scmp.ne.s32.totalorder %s230, %s233
    %p242 = scmp.eq.s32.totalorder %s21, 1
    %p243 = por %p241, %p242
    %p244 = scmp.ne.s32.totalorder %s233, %s234
    %p245 = scmp.eq.s32.totalorder %s21, 0
    %p246 = por %p244, %p245
    %p247 = scmp.ne.s32.totalorder %s233, %s234
    %p248 = scmp.eq.s32.totalorder %s22, 1
    %p249 = por %p247, %p248
    %p251 = scmp.ne.s32.totalorder %s234, %s250
    %p252 = scmp.eq.s32.totalorder %s22, 0
    %p253 = por %p251, %p252
    %p254 = scmp.le.s32.totalorder 1, %s16
    %p255 = scmp.lt.s32.totalorder %s16, 3
    %p256 = pnand %p254, %p255
    %p257 = pneg %p256
    // Predicated region
    $region9: #{up_conv_forward.5} parent=5 // pred_check
      _
    $region10: #{up_conv_forward.5} parent=5 // pred_check_branch
      %259 = sbr.rel (%p256) target = $region12
    $region11: #{up_conv_forward.5} parent=5 // pred_region
      %s260 = ssub.s32 %s16, 1
      // Predicated region
      $region13: #{up_conv_forward.5} parent=11 // pred_check
        %p261 = pneg %p89
      $region14: #{up_conv_forward.5} parent=11 // pred_check_branch
        %263 = sbr.rel (%p261) target = $region16
      $region15: #{up_conv_forward.5} parent=11 // pred_region
        _
      $region16: #{up_conv_forward.5} parent=11 // pred_fallthru
        _
      // Predicated region
      $region17: #{up_conv_forward.5} parent=11 // pred_check
        %p264 = pneg %p110
      $region18: #{up_conv_forward.5} parent=11 // pred_check_branch
        %266 = sbr.rel (%p264) target = $region20
      $region19: #{up_conv_forward.5} parent=11 // pred_region
        _
      $region20: #{up_conv_forward.5} parent=11 // pred_fallthru
        _
      // Predicated region
      $region21: #{up_conv_forward.5} parent=11 // pred_check
        %p267 = pneg %p131
      $region22: #{up_conv_forward.5} parent=11 // pred_check_branch
        %269 = sbr.rel (%p267) target = $region24
      $region23: #{up_conv_forward.5} parent=11 // pred_region
        _
      $region24: #{up_conv_forward.5} parent=11 // pred_fallthru
        _
      // Predicated region
      $region25: #{up_conv_forward.5} parent=11 // pred_check
        %p270 = pneg %p152
      $region26: #{up_conv_forward.5} parent=11 // pred_check_branch
        %272 = sbr.rel (%p270) target = $region28
      $region27: #{up_conv_forward.5} parent=11 // pred_region
        _
      $region28: #{up_conv_forward.5} parent=11 // pred_fallthru
        _
      // Predicated region
      $region29: #{up_conv_forward.5} parent=11 // pred_check
        %p273 = pneg %p173
      $region30: #{up_conv_forward.5} parent=11 // pred_check_branch
        %275 = sbr.rel (%p273) target = $region32
      $region31: #{up_conv_forward.5} parent=11 // pred_region
        _
      $region32: #{up_conv_forward.5} parent=11 // pred_fallthru
        _
      // Predicated region
      $region33: #{up_conv_forward.5} parent=11 // pred_check
        %p276 = pneg %p194
      $region34: #{up_conv_forward.5} parent=11 // pred_check_branch
        %278 = sbr.rel (%p276) target = $region36
      $region35: #{up_conv_forward.5} parent=11 // pred_region
        _
      $region36: #{up_conv_forward.5} parent=11 // pred_fallthru
        _
    $region12: #{up_conv_forward.5} parent=5 // pred_fallthru
      _
    %p279 = scmp.lt.s32.totalorder %s16, 2
    // Predicated region
    $region37: #{up_conv_forward.5} parent=5 // pred_check
      %p280 = pneg %p279
    $region38: #{up_conv_forward.5} parent=5 // pred_check_branch
      %282 = sbr.rel (%p280) target = $region40
    $region39: #{up_conv_forward.5} parent=5 // pred_region
      // Predicated region
      $region41: #{up_conv_forward.5} parent=39 // pred_check
        %p283 = pneg %p36
      $region42: #{up_conv_forward.5} parent=39 // pred_check_branch
        %285 = sbr.rel (%p283) target = $region44
      $region43: #{up_conv_forward.5} parent=39 // pred_region
        %p286 = scmp.lt.s32.totalorder %s16, 1
        %s287 = scalar_select %p286, %s16, 1
        %s288 = smul.addr %s287, 3
        %s289 = smul.addr %s288, 8
        %s290 = scalar_lea.vmem %s0, %s289
      $region44: #{up_conv_forward.5} parent=39 // pred_fallthru
        _
      // Predicated region
      $region45: #{up_conv_forward.5} parent=39 // pred_check
        %p291 = pneg %p62
      $region46: #{up_conv_forward.5} parent=39 // pred_check_branch
        %293 = sbr.rel (%p291) target = $region48
      $region47: #{up_conv_forward.5} parent=39 // pred_region
        %p294 = scmp.lt.s32.totalorder %s16, 1
        %s295 = scalar_select %p294, %s16, 1
        %s296 = smul.addr %s295, 3
        %s297 = smul.addr %s296, 8
        %s298 = scalar_lea.vmem %s1, %s297
      $region48: #{up_conv_forward.5} parent=39 // pred_fallthru
        _
    $region40: #{up_conv_forward.5} parent=5 // pred_fallthru
      _
    %p299 = scmp.le.s32.totalorder 1, %s16
    %p300 = scmp.lt.s32.totalorder %s16, 3
    %p301 = pnand %p299, %p300
    %p302 = pneg %p301
    // Predicated region
    $region49: #{up_conv_forward.5} parent=5 // pred_check
      _
    $region50: #{up_conv_forward.5} parent=5 // pred_check_branch
      %304 = sbr.rel (%p301) target = $region52
    $region51: #{up_conv_forward.5} parent=5 // pred_region
      %s305 = ssub.s32 %s16, 1
      %p306 = scmp.lt.s32.totalorder %s21, 1
      %s307 = scalar_select %p306, %s21, 1
      %s308 = smul.addr %s307, 3
      %s309 = smul.addr %s308, 8
      %s310 = scalar_lea.vmem %s0, %s309
      %p311 = pneg %p42
      %p312 = pneg %p39
      %p313 = scmp.lt.s32.totalorder %s21, 1
      %s314 = scalar_select %p313, %s21, 1
      %s315 = smul.addr %s314, 3
      %s316 = smul.addr %s315, 8
      %s317 = scalar_lea.vmem %s1, %s316
      %p318 = pneg %p68
      %p319 = pneg %p65
      %p320 = pneg %p89
      %p321 = pneg %p86
      %p322 = pneg %p110
      %p323 = pneg %p107
      %p324 = pneg %p131
      %p325 = pneg %p128
      %p326 = pneg %p152
      %p327 = pneg %p149
      %p328 = pneg %p173
      %p329 = pneg %p170
      %p330 = pneg %p194
      %p331 = pneg %p191
      %p332 = pneg %p220
      %p333 = pneg %p217
      %p334 = scmp.lt.s32.totalorder %s21, 1
      %s335 = scalar_select %p334, %s21, 1
      %s336 = smul.addr %s335, 2
      %s337 = smul.addr %s336, 8
      %s338 = scalar_lea.vmem %s8, %s337
      %p339 = pneg %p246
      %p340 = pneg %p243
      %p341 = scmp.lt.s32.totalorder %s21, 1
      %s342 = scalar_select %p341, %s21, 1
      %s343 = smul.addr %s342, 2
      %s344 = scalar_lea.vmem %s9, %s343
      %p345 = scmp.lt.s32.totalorder %s21, 1
      %s346 = scalar_select %p345, %s21, 1
      %s347 = smul.addr %s346, 3
      %s348 = smul.addr %s347, 8
      %s349 = scalar_lea.vmem %s0, %s348
      %p350 = scmp.lt.s32.totalorder %s21, 1
      %s351 = scalar_select %p350, %s21, 1
      %s352 = smul.addr %s351, 3
      %s353 = smul.addr %s352, 8
      %s354 = scalar_lea.vmem %s1, %s353
      %p355 = scmp.lt.s32.totalorder %s21, 1
      %s356 = scalar_select %p355, %s21, 1
      %s357 = smul.addr %s356, 2
      %s358 = smul.addr %s357, 8
      %s359 = scalar_lea.vmem %s8, %s358
      %p360 = scmp.lt.s32.totalorder %s21, 1
      %s361 = scalar_select %p360, %s21, 1
      %s362 = smul.addr %s361, 2
      %s363 = scalar_lea.vmem %s9, %s362
      %v365 = vld [vmem:[%s349] sm:$0xff]
      %v366 = vld [vmem:[%s349 + $0x8] sm:$0xff]
      %v367 = vld [vmem:[%s349 + $0x10] sm:$0x3]
      %v368 = vld [vmem:[%s4] sm:$0x1]
      %v370 = vlaneseq
      %v371 = vshrl.u32 %v370, 7
      %v372 = vsub.s32 0, %v371
      %v373 = vrot.slane %v368, %v372
      %v375 = vmul.f32 %v365, %v373
      %v376 = vmul.f32 %v366, %v373
      %v377 = vmul.f32 %v367, %v373
      %v378 = vld [vmem:[%s6] sm:$0x1]
      %v380 = vlaneseq
      %v381 = vshrl.u32 %v380, 7
      %v382 = vsub.s32 0, %v381
      %v383 = vrot.slane %v378, %v382
      %v385 = vadd.f32 %v375, %v383
      %v386 = vadd.f32 %v376, %v383
      %v387 = vadd.f32 %v377, %v383
      %v388 = vpack.c.bf16 %v386, %v385
      %v389 = vpack.c.bf16 %v387, %v387
      %v390 = vld [vmem:[%s2] sm:$0xf]
      %v391 = vld [vmem:[%s2 + $0x4] sm:$0xf]
      %v392 = vld [vmem:[%s2 + $0x8] sm:$0xf]
      %v393 = vld [vmem:[%s2 + $0xc] sm:$0xf]
      %v394 = vld [vmem:[%s2 + $0x10] sm:$0xf]
      %v395 = vld [vmem:[%s2 + $0x14] sm:$0xf]
      %v396 = vld [vmem:[%s2 + $0x18] sm:$0xf]
      %v397 = vld [vmem:[%s2 + $0x1c] sm:$0xf]
      %s398 = scalar_lea.vmem %s2, 32
      %v399 = vld [vmem:[%s398] sm:$0xf]
      %v400 = vld [vmem:[%s398 + $0x4] sm:$0xf]
      %v401 = vld [vmem:[%s398 + $0x8] sm:$0xf]
      %v402 = vld [vmem:[%s398 + $0xc] sm:$0xf]
      %v403 = vld [vmem:[%s398 + $0x10] sm:$0xf]
      %v404 = vld [vmem:[%s398 + $0x14] sm:$0xf]
      %v405 = vld [vmem:[%s398 + $0x18] sm:$0xf]
      %v406 = vld [vmem:[%s398 + $0x1c] sm:$0xf]
      %vm407 = vsmask.f32 7424
      %v409 = vshrl.u32 %v388, 16
      %v411 = vshll.u32 %v388, 16
      %v413 = vrot.slane %v411, 1
      %v414 = vor.u32 %v409, %v413
      %v416 = vshll.u32 %v389, 16
      %v418 = vrot.slane %v416, 1
      %v419 = vsel %vm407, %v414, %v418
      %v428 = vunpack.c.l.b16 %v399
      %v429 = vunpack.c.l.b16 %v400
      %v430 = vunpack.c.l.b16 %v401
      %v431 = vunpack.c.l.b16 %v402
      %v432 = vunpack.c.l.b16 %v403
      %v433 = vunpack.c.l.b16 %v404
      %v434 = vunpack.c.l.b16 %v405
      %v435 = vunpack.c.l.b16 %v406
      %v436 = vpack.c.b16 %v429, %v428
      %v437 = vpack.c.b16 %v431, %v430
      %v438 = vpack.c.b16 %v433, %v432
      %v439 = vpack.c.b16 %v435, %v434
      %vm444 = vcmask 523264
      %v446 = vsel %vm444, %v419, 0
      %448 = vmatprep.subr.bf16.mxu0 0
      %449 = vmatpush1.bf16.msra.mxu0 0
      %450 = vmatprep.subr.bf16.mxu0 0
      %451 = vmatpush1.bf16.msra.mxu0 0
      %452 = vmatprep.subr.bf16.mxu0 0
      %453 = vmatpush1.bf16.msra.mxu0 0
      %454 = vmatprep.subr.bf16.mxu0 0
      %455 = vmatpush1.bf16.msra.mxu0 0
      %456 = vmatprep.subr.bf16.mxu0 0
      %457 = vmatpush1.bf16.msra.mxu0 %v439
      %458 = vmatprep.subr.bf16.mxu0 0
      %459 = vmatpush1.bf16.msra.mxu0 %v438
      %460 = vmatprep.subr.bf16.mxu0 0
      %461 = vmatpush1.bf16.msra.mxu0 %v437
      %462 = vmatprep.subr.bf16.mxu0 0
      %463 = vmatpush1.bf16.msra.mxu0 %v436
      %464 = vmatprep.subr.bf16.mxu0 0
      %465 = vmatpush2.bf16.msra.mxu0 0
      %466 = vmatprep.subr.bf16.mxu0 0
      %467 = vmatpush2.bf16.msra.mxu0 0
      %468 = vmatprep.subr.bf16.mxu0 0
      %469 = vmatpush2.bf16.msra.mxu0 0
      %470 = vmatprep.subr.bf16.mxu0 0
      %471 = vmatpush2.bf16.msra.mxu0 0
      %472 = vmatprep.subr.bf16.mxu0 0
      %473 = vmatpush2.bf16.msra.mxu0 0
      %474 = vmatprep.subr.bf16.mxu0 0
      %475 = vmatpush2.bf16.msra.mxu0 0
      %476 = vmatprep.subr.bf16.mxu0 0
      %477 = vmatpush2.bf16.msra.mxu0 0
      %478 = vmatprep.subr.bf16.mxu0 0
      %479 = vmatpush2.bf16.msra.mxu0 0
      %480 = vmatprep.mubr.bf16.mxu0 0
      %481 = vmatmul.mubr.bf16.gmra.mxu0 %v446
      %v482 = vpop.f32.mrf.mxu0
      %v483 = vadd.f32 0.0, %v482
      %v484 = vpop.f32.mrf.mxu0
      %v485 = vpop.f32.mrf.mxu0
      %v486 = vadd.f32 0.0, %v485
      %v487 = vpop.f32.mrf.mxu0
      %488 = vdwg.mxu0
      %v497 = vunpack.c.l.b16 %v390
      %v498 = vunpack.c.l.b16 %v391
      %v499 = vunpack.c.l.b16 %v392
      %v500 = vunpack.c.l.b16 %v393
      %v501 = vunpack.c.l.b16 %v394
      %v502 = vunpack.c.l.b16 %v395
      %v503 = vunpack.c.l.b16 %v396
      %v504 = vunpack.c.l.b16 %v397
      %v505 = vpack.c.b16 %v498, %v497
      %v506 = vpack.c.b16 %v500, %v499
      %v507 = vpack.c.b16 %v502, %v501
      %v508 = vpack.c.b16 %v504, %v503
      %v513 = vsel %vm444, %v388, 0
      %515 = vmatprep.subr.bf16.mxu0 0
      %516 = vmatpush1.bf16.msra.mxu0 0
      %517 = vmatprep.subr.bf16.mxu0 0
      %518 = vmatpush1.bf16.msra.mxu0 0
      %519 = vmatprep.subr.bf16.mxu0 0
      %520 = vmatpush1.bf16.msra.mxu0 0
      %521 = vmatprep.subr.bf16.mxu0 0
      %522 = vmatpush1.bf16.msra.mxu0 0
      %523 = vmatprep.subr.bf16.mxu0 0
      %524 = vmatpush1.bf16.msra.mxu0 %v508
      %525 = vmatprep.subr.bf16.mxu0 0
      %526 = vmatpush1.bf16.msra.mxu0 %v507
      %527 = vmatprep.subr.bf16.mxu0 0
      %528 = vmatpush1.bf16.msra.mxu0 %v506
      %529 = vmatprep.subr.bf16.mxu0 0
      %530 = vmatpush1.bf16.msra.mxu0 %v505
      %531 = vmatprep.subr.bf16.mxu0 0
      %532 = vmatpush2.bf16.msra.mxu0 0
      %533 = vmatprep.subr.bf16.mxu0 0
      %534 = vmatpush2.bf16.msra.mxu0 0
      %535 = vmatprep.subr.bf16.mxu0 0
      %536 = vmatpush2.bf16.msra.mxu0 0
      %537 = vmatprep.subr.bf16.mxu0 0
      %538 = vmatpush2.bf16.msra.mxu0 0
      %539 = vmatprep.subr.bf16.mxu0 0
      %540 = vmatpush2.bf16.msra.mxu0 0
      %541 = vmatprep.subr.bf16.mxu0 0
      %542 = vmatpush2.bf16.msra.mxu0 0
      %543 = vmatprep.subr.bf16.mxu0 0
      %544 = vmatpush2.bf16.msra.mxu0 0
      %545 = vmatprep.subr.bf16.mxu0 0
      %546 = vmatpush2.bf16.msra.mxu0 0
      %547 = vmatprep.mubr.bf16.mxu0 0
      %548 = vmatmul.mubr.bf16.gmra.mxu0 %v513
      %v549 = vpop.f32.mrf.mxu0
      %v550 = vadd.f32 %v483, %v549
      %v551 = vpop.f32.mrf.mxu0
      %v552 = vpop.f32.mrf.mxu0
      %v553 = vadd.f32 %v486, %v552
      %v554 = vpop.f32.mrf.mxu0
      %555 = vdwg.mxu0
      %s556 = scalar_lea.vmem %s2, 64
      %v557 = vld [vmem:[%s556] sm:$0xf]
      %v558 = vld [vmem:[%s556 + $0x4] sm:$0xf]
      %v559 = vld [vmem:[%s556 + $0x8] sm:$0xf]
      %v560 = vld [vmem:[%s556 + $0xc] sm:$0xf]
      %v561 = vld [vmem:[%s556 + $0x10] sm:$0xf]
      %v562 = vld [vmem:[%s556 + $0x14] sm:$0xf]
      %v563 = vld [vmem:[%s556 + $0x18] sm:$0xf]
      %v564 = vld [vmem:[%s556 + $0x1c] sm:$0xf]
      %vm567 = vcmask 1046528
      %v568 = vrot.slane %v388, 1
      %v569 = vrot.slane %v389, 1
      %v570 = vsel %vm567, %v568, %v569
      %v579 = vunpack.c.l.b16 %v557
      %v580 = vunpack.c.l.b16 %v558
      %v581 = vunpack.c.l.b16 %v559
      %v582 = vunpack.c.l.b16 %v560
      %v583 = vunpack.c.l.b16 %v561
      %v584 = vunpack.c.l.b16 %v562
      %v585 = vunpack.c.l.b16 %v563
      %v586 = vunpack.c.l.b16 %v564
      %v587 = vpack.c.b16 %v580, %v579
      %v588 = vpack.c.b16 %v582, %v581
      %v589 = vpack.c.b16 %v584, %v583
      %v590 = vpack.c.b16 %v586, %v585
      %v596 = vsel %vm444, %v570, 0
      %598 = vmatprep.subr.bf16.mxu0 0
      %599 = vmatpush1.bf16.msra.mxu0 0
      %600 = vmatprep.subr.bf16.mxu0 0
      %601 = vmatpush1.bf16.msra.mxu0 0
      %602 = vmatprep.subr.bf16.mxu0 0
      %603 = vmatpush1.bf16.msra.mxu0 0
      %604 = vmatprep.subr.bf16.mxu0 0
      %605 = vmatpush1.bf16.msra.mxu0 0
      %606 = vmatprep.subr.bf16.mxu0 0
      %607 = vmatpush1.bf16.msra.mxu0 %v590
      %608 = vmatprep.subr.bf16.mxu0 0
      %609 = vmatpush1.bf16.msra.mxu0 %v589
      %610 = vmatprep.subr.bf16.mxu0 0
      %611 = vmatpush1.bf16.msra.mxu0 %v588
      %612 = vmatprep.subr.bf16.mxu0 0
      %613 = vmatpush1.bf16.msra.mxu0 %v587
      %614 = vmatprep.subr.bf16.mxu0 0
      %615 = vmatpush2.bf16.msra.mxu0 0
      %616 = vmatprep.subr.bf16.mxu0 0
      %617 = vmatpush2.bf16.msra.mxu0 0
      %618 = vmatprep.subr.bf16.mxu0 0
      %619 = vmatpush2.bf16.msra.mxu0 0
      %620 = vmatprep.subr.bf16.mxu0 0
      %621 = vmatpush2.bf16.msra.mxu0 0
      %622 = vmatprep.subr.bf16.mxu0 0
      %623 = vmatpush2.bf16.msra.mxu0 0
      %624 = vmatprep.subr.bf16.mxu0 0
      %625 = vmatpush2.bf16.msra.mxu0 0
      %626 = vmatprep.subr.bf16.mxu0 0
      %627 = vmatpush2.bf16.msra.mxu0 0
      %628 = vmatprep.subr.bf16.mxu0 0
      %629 = vmatpush2.bf16.msra.mxu0 0
      %630 = vmatprep.mubr.bf16.mxu0 0
      %631 = vmatmul.mubr.bf16.gmra.mxu0 %v596
      %v632 = vpop.f32.mrf.mxu0
      %v633 = vadd.f32 0.0, %v632
      %v634 = vpop.f32.mrf.mxu0
      %v635 = vpop.f32.mrf.mxu0
      %v636 = vadd.f32 0.0, %v635
      %v637 = vpop.f32.mrf.mxu0
      %638 = vdwg.mxu0
      %v639 = vadd.f32 %v550, %v633
      %v640 = vadd.f32 %v553, %v636
      %v641 = vld [vmem:[%s354] sm:$0xff]
      %v642 = vld [vmem:[%s354 + $0x8] sm:$0xff]
      %v643 = vld [vmem:[%s354 + $0x10] sm:$0x3]
      %v644 = vld [vmem:[%s5] sm:$0x1]
      %v646 = vlaneseq
      %v647 = vshrl.u32 %v646, 7
      %v648 = vsub.s32 0, %v647
      %v649 = vrot.slane %v644, %v648
      %v651 = vmul.f32 %v641, %v649
      %v652 = vmul.f32 %v642, %v649
      %v653 = vmul.f32 %v643, %v649
      %v654 = vld [vmem:[%s7] sm:$0x1]
      %v656 = vlaneseq
      %v657 = vshrl.u32 %v656, 7
      %v658 = vsub.s32 0, %v657
      %v659 = vrot.slane %v654, %v658
      %v661 = vadd.f32 %v651, %v659
      %v662 = vadd.f32 %v652, %v659
      %v663 = vadd.f32 %v653, %v659
      %v664 = vmax.f32 %v661, 0.0
      %v665 = vmax.f32 %v662, 0.0
      %v666 = vmax.f32 %v663, 0.0
      %v667 = vlaneseq
      %v668 = vshrl.u32 %v667, 7
      %v669 = vadd.s32 %v668, 8
      %v670 = vadd.s32 %v668, 16
      %vm671 = vcmp.ge.s32.totalorder %v668, 1
      %vm672 = vcmp.ge.s32.totalorder %v669, 1
      %vm673 = vcmp.ge.s32.totalorder %v670, 1
      %vm674 = vcmp.le.s32.totalorder %v668, 16
      %vm675 = vcmp.le.s32.totalorder %v669, 16
      %vm676 = vcmp.le.s32.totalorder %v670, 16
      %vm677 = vmand %vm671, %vm674
      %vm678 = vmand %vm672, %vm675
      %vm679 = vmand %vm673, %vm676
      %v680 = vsel %vm677, %v664, 0.0
      %v681 = vsel %vm678, %v665, 0.0
      %v682 = vsel %vm679, %v666, 0.0
      %v683 = vpack.c.bf16 %v681, %v680
      %v684 = vpack.c.bf16 %v682, %v682
      %v685 = vld [vmem:[%s3] sm:$0xf]
      %v686 = vld [vmem:[%s3 + $0x4] sm:$0xf]
      %v687 = vld [vmem:[%s3 + $0x8] sm:$0xf]
      %v688 = vld [vmem:[%s3 + $0xc] sm:$0xf]
      %v689 = vld [vmem:[%s3 + $0x10] sm:$0xf]
      %v690 = vld [vmem:[%s3 + $0x14] sm:$0xf]
      %v691 = vld [vmem:[%s3 + $0x18] sm:$0xf]
      %v692 = vld [vmem:[%s3 + $0x1c] sm:$0xf]
      %v693 = vld [vmem:[%s3 + $0x20] sm:$0xf]
      %v694 = vld [vmem:[%s3 + $0x24] sm:$0xf]
      %v695 = vld [vmem:[%s3 + $0x28] sm:$0xf]
      %v696 = vld [vmem:[%s3 + $0x2c] sm:$0xf]
      %v697 = vld [vmem:[%s3 + $0x30] sm:$0xf]
      %v698 = vld [vmem:[%s3 + $0x34] sm:$0xf]
      %v699 = vld [vmem:[%s3 + $0x38] sm:$0xf]
      %v700 = vld [vmem:[%s3 + $0x3c] sm:$0xf]
      %v717 = vunpack.c.l.b16 %v685
      %v718 = vunpack.c.l.b16 %v686
      %v719 = vunpack.c.l.b16 %v687
      %v720 = vunpack.c.l.b16 %v688
      %v721 = vunpack.c.l.b16 %v689
      %v722 = vunpack.c.l.b16 %v690
      %v723 = vunpack.c.l.b16 %v691
      %v724 = vunpack.c.l.b16 %v692
      %v725 = vunpack.c.l.b16 %v693
      %v726 = vunpack.c.l.b16 %v694
      %v727 = vunpack.c.l.b16 %v695
      %v728 = vunpack.c.l.b16 %v696
      %v729 = vunpack.c.l.b16 %v697
      %v730 = vunpack.c.l.b16 %v698
      %v731 = vunpack.c.l.b16 %v699
      %v732 = vunpack.c.l.b16 %v700
      %v733 = vpack.c.b16 %v718, %v717
      %v734 = vpack.c.b16 %v720, %v719
      %v735 = vpack.c.b16 %v722, %v721
      %v736 = vpack.c.b16 %v724, %v723
      %v737 = vpack.c.b16 %v726, %v725
      %v738 = vpack.c.b16 %v728, %v727
      %v739 = vpack.c.b16 %v730, %v729
      %v740 = vpack.c.b16 %v732, %v731
      %749 = vmatprep.subr.bf16.mxu0 0
      %750 = vmatpush1.bf16.msra.mxu0 %v740
      %751 = vmatprep.subr.bf16.mxu0 0
      %752 = vmatpush1.bf16.msra.mxu0 %v739
      %753 = vmatprep.subr.bf16.mxu0 0
      %754 = vmatpush1.bf16.msra.mxu0 %v738
      %755 = vmatprep.subr.bf16.mxu0 0
      %756 = vmatpush1.bf16.msra.mxu0 %v737
      %757 = vmatprep.subr.bf16.mxu0 0
      %758 = vmatpush1.bf16.msra.mxu0 %v736
      %759 = vmatprep.subr.bf16.mxu0 0
      %760 = vmatpush1.bf16.msra.mxu0 %v735
      %761 = vmatprep.subr.bf16.mxu0 0
      %762 = vmatpush1.bf16.msra.mxu0 %v734
      %763 = vmatprep.subr.bf16.mxu0 0
      %764 = vmatpush1.bf16.msra.mxu0 %v733
      %765 = vmatprep.subr.bf16.mxu0 0
      %766 = vmatpush2.bf16.msra.mxu0 0
      %767 = vmatprep.subr.bf16.mxu0 0
      %768 = vmatpush2.bf16.msra.mxu0 0
      %769 = vmatprep.subr.bf16.mxu0 0
      %770 = vmatpush2.bf16.msra.mxu0 0
      %771 = vmatprep.subr.bf16.mxu0 0
      %772 = vmatpush2.bf16.msra.mxu0 0
      %773 = vmatprep.subr.bf16.mxu0 0
      %774 = vmatpush2.bf16.msra.mxu0 0
      %775 = vmatprep.subr.bf16.mxu0 0
      %776 = vmatpush2.bf16.msra.mxu0 0
      %777 = vmatprep.subr.bf16.mxu0 0
      %778 = vmatpush2.bf16.msra.mxu0 0
      %779 = vmatprep.subr.bf16.mxu0 0
      %780 = vmatpush2.bf16.msra.mxu0 0
      %781 = vmatprep.mubr.bf16.mxu0 0
      %782 = vmatmul.mubr.bf16.gmra.mxu0 %v683
      %v783 = vpop.f32.mrf.mxu0
      %v784 = vadd.f32 0.0, %v783
      %v785 = vpop.f32.mrf.mxu0
      %v786 = vpop.f32.mrf.mxu0
      %v787 = vadd.f32 0.0, %v786
      %v788 = vpop.f32.mrf.mxu0
      %789 = vdwg.mxu0
      %v790 = vadd.f32 %v639, %v784
      %v791 = vadd.f32 %v640, %v787
      %s792 = scalar_lea.vmem %s3, 64
      %v793 = vld [vmem:[%s792] sm:$0xf]
      %v794 = vld [vmem:[%s792 + $0x4] sm:$0xf]
      %v795 = vld [vmem:[%s792 + $0x8] sm:$0xf]
      %v796 = vld [vmem:[%s792 + $0xc] sm:$0xf]
      %v797 = vld [vmem:[%s792 + $0x10] sm:$0xf]
      %v798 = vld [vmem:[%s792 + $0x14] sm:$0xf]
      %v799 = vld [vmem:[%s792 + $0x18] sm:$0xf]
      %v800 = vld [vmem:[%s792 + $0x1c] sm:$0xf]
      %v801 = vld [vmem:[%s792 + $0x20] sm:$0xf]
      %v802 = vld [vmem:[%s792 + $0x24] sm:$0xf]
      %v803 = vld [vmem:[%s792 + $0x28] sm:$0xf]
      %v804 = vld [vmem:[%s792 + $0x2c] sm:$0xf]
      %v805 = vld [vmem:[%s792 + $0x30] sm:$0xf]
      %v806 = vld [vmem:[%s792 + $0x34] sm:$0xf]
      %v807 = vld [vmem:[%s792 + $0x38] sm:$0xf]
      %v808 = vld [vmem:[%s792 + $0x3c] sm:$0xf]
      %v810 = vshrl.u32 %v683, 16
      %v812 = vshll.u32 %v683, 16
      %v814 = vrot.slane %v812, 1
      %v815 = vor.u32 %v810, %v814
      %v817 = vshll.u32 %v684, 16
      %v819 = vrot.slane %v817, 1
      %v820 = vsel %vm407, %v815, %v819
      %v838 = vunpack.c.l.b16 %v793
      %v839 = vunpack.c.l.b16 %v794
      %v840 = vunpack.c.l.b16 %v795
      %v841 = vunpack.c.l.b16 %v796
      %v842 = vunpack.c.l.b16 %v797
      %v843 = vunpack.c.l.b16 %v798
      %v844 = vunpack.c.l.b16 %v799
      %v845 = vunpack.c.l.b16 %v800
      %v846 = vunpack.c.l.b16 %v801
      %v847 = vunpack.c.l.b16 %v802
      %v848 = vunpack.c.l.b16 %v803
      %v849 = vunpack.c.l.b16 %v804
      %v850 = vunpack.c.l.b16 %v805
      %v851 = vunpack.c.l.b16 %v806
      %v852 = vunpack.c.l.b16 %v807
      %v853 = vunpack.c.l.b16 %v808
      %v854 = vpack.c.b16 %v839, %v838
      %v855 = vpack.c.b16 %v841, %v840
      %v856 = vpack.c.b16 %v843, %v842
      %v857 = vpack.c.b16 %v845, %v844
      %v858 = vpack.c.b16 %v847, %v846
      %v859 = vpack.c.b16 %v849, %v848
      %v860 = vpack.c.b16 %v851, %v850
      %v861 = vpack.c.b16 %v853, %v852
      %870 = vmatprep.subr.bf16.mxu0 0
      %871 = vmatpush1.bf16.msra.mxu0 %v861
      %872 = vmatprep.subr.bf16.mxu0 0
      %873 = vmatpush1.bf16.msra.mxu0 %v860
      %874 = vmatprep.subr.bf16.mxu0 0
      %875 = vmatpush1.bf16.msra.mxu0 %v859
      %876 = vmatprep.subr.bf16.mxu0 0
      %877 = vmatpush1.bf16.msra.mxu0 %v858
      %878 = vmatprep.subr.bf16.mxu0 0
      %879 = vmatpush1.bf16.msra.mxu0 %v857
      %880 = vmatprep.subr.bf16.mxu0 0
      %881 = vmatpush1.bf16.msra.mxu0 %v856
      %882 = vmatprep.subr.bf16.mxu0 0
      %883 = vmatpush1.bf16.msra.mxu0 %v855
      %884 = vmatprep.subr.bf16.mxu0 0
      %885 = vmatpush1.bf16.msra.mxu0 %v854
      %886 = vmatprep.subr.bf16.mxu0 0
      %887 = vmatpush2.bf16.msra.mxu0 0
      %888 = vmatprep.subr.bf16.mxu0 0
      %889 = vmatpush2.bf16.msra.mxu0 0
      %890 = vmatprep.subr.bf16.mxu0 0
      %891 = vmatpush2.bf16.msra.mxu0 0
      %892 = vmatprep.subr.bf16.mxu0 0
      %893 = vmatpush2.bf16.msra.mxu0 0
      %894 = vmatprep.subr.bf16.mxu0 0
      %895 = vmatpush2.bf16.msra.mxu0 0
      %896 = vmatprep.subr.bf16.mxu0 0
      %897 = vmatpush2.bf16.msra.mxu0 0
      %898 = vmatprep.subr.bf16.mxu0 0
      %899 = vmatpush2.bf16.msra.mxu0 0
      %900 = vmatprep.subr.bf16.mxu0 0
      %901 = vmatpush2.bf16.msra.mxu0 0
      %902 = vmatprep.mubr.bf16.mxu0 0
      %903 = vmatmul.mubr.bf16.gmra.mxu0 %v820
      %v904 = vpop.f32.mrf.mxu0
      %v905 = vadd.f32 0.0, %v904
      %v906 = vpop.f32.mrf.mxu0
      %v907 = vpop.f32.mrf.mxu0
      %v908 = vadd.f32 0.0, %v907
      %v909 = vpop.f32.mrf.mxu0
      %910 = vdwg.mxu0
      %v911 = vadd.f32 %v790, %v905
      %v912 = vadd.f32 %v791, %v908
      %s913 = scalar_lea.vmem %s3, 128
      %v914 = vld [vmem:[%s913] sm:$0xf]
      %v915 = vld [vmem:[%s913 + $0x4] sm:$0xf]
      %v916 = vld [vmem:[%s913 + $0x8] sm:$0xf]
      %v917 = vld [vmem:[%s913 + $0xc] sm:$0xf]
      %v918 = vld [vmem:[%s913 + $0x10] sm:$0xf]
      %v919 = vld [vmem:[%s913 + $0x14] sm:$0xf]
      %v920 = vld [vmem:[%s913 + $0x18] sm:$0xf]
      %v921 = vld [vmem:[%s913 + $0x1c] sm:$0xf]
      %v922 = vld [vmem:[%s913 + $0x20] sm:$0xf]
      %v923 = vld [vmem:[%s913 + $0x24] sm:$0xf]
      %v924 = vld [vmem:[%s913 + $0x28] sm:$0xf]
      %v925 = vld [vmem:[%s913 + $0x2c] sm:$0xf]
      %v926 = vld [vmem:[%s913 + $0x30] sm:$0xf]
      %v927 = vld [vmem:[%s913 + $0x34] sm:$0xf]
      %v928 = vld [vmem:[%s913 + $0x38] sm:$0xf]
      %v929 = vld [vmem:[%s913 + $0x3c] sm:$0xf]
      %v932 = vrot.slane %v683, 1
      %v933 = vrot.slane %v684, 1
      %v934 = vsel %vm567, %v932, %v933
      %v952 = vunpack.c.l.b16 %v914
      %v953 = vunpack.c.l.b16 %v915
      %v954 = vunpack.c.l.b16 %v916
      %v955 = vunpack.c.l.b16 %v917
      %v956 = vunpack.c.l.b16 %v918
      %v957 = vunpack.c.l.b16 %v919
      %v958 = vunpack.c.l.b16 %v920
      %v959 = vunpack.c.l.b16 %v921
      %v960 = vunpack.c.l.b16 %v922
      %v961 = vunpack.c.l.b16 %v923
      %v962 = vunpack.c.l.b16 %v924
      %v963 = vunpack.c.l.b16 %v925
      %v964 = vunpack.c.l.b16 %v926
      %v965 = vunpack.c.l.b16 %v927
      %v966 = vunpack.c.l.b16 %v928
      %v967 = vunpack.c.l.b16 %v929
      %v968 = vpack.c.b16 %v953, %v952
      %v969 = vpack.c.b16 %v955, %v954
      %v970 = vpack.c.b16 %v957, %v956
      %v971 = vpack.c.b16 %v959, %v958
      %v972 = vpack.c.b16 %v961, %v960
      %v973 = vpack.c.b16 %v963, %v962
      %v974 = vpack.c.b16 %v965, %v964
      %v975 = vpack.c.b16 %v967, %v966
      %984 = vmatprep.subr.bf16.mxu0 0
      %985 = vmatpush1.bf16.msra.mxu0 %v975
      %986 = vmatprep.subr.bf16.mxu0 0
      %987 = vmatpush1.bf16.msra.mxu0 %v974
      %988 = vmatprep.subr.bf16.mxu0 0
      %989 = vmatpush1.bf16.msra.mxu0 %v973
      %990 = vmatprep.subr.bf16.mxu0 0
      %991 = vmatpush1.bf16.msra.mxu0 %v972
      %992 = vmatprep.subr.bf16.mxu0 0
      %993 = vmatpush1.bf16.msra.mxu0 %v971
      %994 = vmatprep.subr.bf16.mxu0 0
      %995 = vmatpush1.bf16.msra.mxu0 %v970
      %996 = vmatprep.subr.bf16.mxu0 0
      %997 = vmatpush1.bf16.msra.mxu0 %v969
      %998 = vmatprep.subr.bf16.mxu0 0
      %999 = vmatpush1.bf16.msra.mxu0 %v968
      %1000 = vmatprep.subr.bf16.mxu0 0
      %1001 = vmatpush2.bf16.msra.mxu0 0
      %1002 = vmatprep.subr.bf16.mxu0 0
      %1003 = vmatpush2.bf16.msra.mxu0 0
      %1004 = vmatprep.subr.bf16.mxu0 0
      %1005 = vmatpush2.bf16.msra.mxu0 0
      %1006 = vmatprep.subr.bf16.mxu0 0
      %1007 = vmatpush2.bf16.msra.mxu0 0
      %1008 = vmatprep.subr.bf16.mxu0 0
      %1009 = vmatpush2.bf16.msra.mxu0 0
      %1010 = vmatprep.subr.bf16.mxu0 0
      %1011 = vmatpush2.bf16.msra.mxu0 0
      %1012 = vmatprep.subr.bf16.mxu0 0
      %1013 = vmatpush2.bf16.msra.mxu0 0
      %1014 = vmatprep.subr.bf16.mxu0 0
      %1015 = vmatpush2.bf16.msra.mxu0 0
      %1016 = vmatprep.mubr.bf16.mxu0 0
      %1017 = vmatmul.mubr.bf16.gmra.mxu0 %v934
      %v1018 = vpop.f32.mrf.mxu0
      %v1019 = vadd.f32 0.0, %v1018
      %v1020 = vpop.f32.mrf.mxu0
      %v1021 = vpop.f32.mrf.mxu0
      %v1022 = vadd.f32 0.0, %v1021
      %v1023 = vpop.f32.mrf.mxu0
      %1024 = vdwg.mxu0
      %v1025 = vadd.f32 %v911, %v1019
      %v1026 = vadd.f32 %v912, %v1022
      %1027 = vst [vmem:[%s359] sm:$0xff] %v1025
      %1028 = vst [vmem:[%s359 + $0x8] sm:$0xff] %v1026
      %v1029 = vadd.f32 %v1025, %v1026
      %v1030 = vrot.slane %v1029, 4
      %v1031 = vadd.f32 %v1029, %v1030
      %v1032 = vrot.slane %v1031, 2
      %v1033 = vadd.f32 %v1031, %v1032
      %v1034 = vrot.slane %v1033, 1
      %v1035 = vadd.f32 %v1033, %v1034
      %v1036 = vmul.f32 %v1025, %v1025
      %v1037 = vmul.f32 %v1026, %v1026
      %v1038 = vadd.f32 %v1036, %v1037
      %v1039 = vrot.slane %v1038, 4
      %v1040 = vadd.f32 %v1038, %v1039
      %v1041 = vrot.slane %v1040, 2
      %v1042 = vadd.f32 %v1040, %v1041
      %v1043 = vrot.slane %v1042, 1
      %v1044 = vadd.f32 %v1042, %v1043
      %vm1045 = vcmask 1040384
      %v1046 = vsel %vm1045, %v1035, %v1044
      %1047 = vst [vmem:[%s363] sm:$0x3] %v1046
      %p1048 = scmp.lt.s32.totalorder %s21, 1
      %s1049 = scalar_select %p1048, %s21, 1
      %s1050 = smul.addr %s1049, 2
      %s1051 = smul.addr %s1050, 8
      %s1052 = scalar_lea.vmem %s8, %s1051
      %p1053 = scmp.lt.s32.totalorder %s21, 1
      %s1054 = scalar_select %p1053, %s21, 1
      %s1055 = smul.addr %s1054, 2
      %s1056 = scalar_lea.vmem %s9, %s1055
      // Predicated region
      $region53: #{up_conv_forward.5} parent=51 // pred_check
        %p1057 = pneg %p217
      $region54: #{up_conv_forward.5} parent=51 // pred_check_branch
        %1059 = sbr.rel (%p1057) target = $region56
      $region55: #{up_conv_forward.5} parent=51 // pred_region
        _
      $region56: #{up_conv_forward.5} parent=51 // pred_fallthru
        _
      // Predicated region
      $region57: #{up_conv_forward.5} parent=51 // pred_check
        %p1060 = pneg %p243
      $region58: #{up_conv_forward.5} parent=51 // pred_check_branch
        %1062 = sbr.rel (%p1060) target = $region60
      $region59: #{up_conv_forward.5} parent=51 // pred_region
        _
      $region60: #{up_conv_forward.5} parent=51 // pred_fallthru
        _
    $region52: #{up_conv_forward.5} parent=5 // pred_fallthru
      _
    %p1063 = scmp.le.s32.totalorder 2, %s16
    // Predicated region
    $region61: #{up_conv_forward.5} parent=5 // pred_check
      %p1064 = pneg %p1063
    $region62: #{up_conv_forward.5} parent=5 // pred_check_branch
      %1066 = sbr.rel (%p1064) target = $region64
    $region63: #{up_conv_forward.5} parent=5 // pred_region
      %s1067 = ssub.s32 %s16, 2
      // Predicated region
      $region65: #{up_conv_forward.5} parent=63 // pred_check
        %p1068 = pneg %p223
      $region66: #{up_conv_forward.5} parent=63 // pred_check_branch
        %1070 = sbr.rel (%p1068) target = $region68
      $region67: #{up_conv_forward.5} parent=63 // pred_region
        %p1071 = scmp.lt.s32.totalorder %s22, 1
        %s1072 = scalar_select %p1071, %s22, 1
        %s1073 = smul.addr %s1072, 2
        %s1074 = smul.addr %s1073, 8
        %s1075 = scalar_lea.vmem %s8, %s1074
      $region68: #{up_conv_forward.5} parent=63 // pred_fallthru
        _
      // Predicated region
      $region69: #{up_conv_forward.5} parent=63 // pred_check
        %p1076 = pneg %p249
      $region70: #{up_conv_forward.5} parent=63 // pred_check_branch
        %1078 = sbr.rel (%p1076) target = $region72
      $region71: #{up_conv_forward.5} parent=63 // pred_region
        %p1079 = scmp.lt.s32.totalorder %s22, 1
        %s1080 = scalar_select %p1079, %s22, 1
        %s1081 = smul.addr %s1080, 2
        %s1082 = scalar_lea.vmem %s9, %s1081
      $region72: #{up_conv_forward.5} parent=63 // pred_fallthru
        _
    $region64: #{up_conv_forward.5} parent=5 // pred_fallthru
      _
  $region6: #{up_conv_forward.5} parent=0 // loop_footer
    %s20 = sadd.s32 1, %s16
  $region7: #{up_conv_forward.5} parent=0 // loop_footer_branch
    %15 = sbr.rel target = $region3
  $region8: #{up_conv_forward.5} parent=0 // loop_exit
    _

</llo_original>
